<compile_context>
chip_gen: v6e
topology: v6e:2x2x1
jax: 0.10.0
libtpu: 0.0.40
codegen_flags: <defaults>
</compile_context>

<pallas_src>
import functools

import jax
import jax.numpy as jnp
from jax.experimental import pallas as pl
from jax.experimental.pallas import tpu as pltpu


def _conv_bn_relu_kernel(x_ref, w_ref, shift_ref, o_ref, acc_ref, *, Wp, TH_W):
    # x_ref:     (P_ext, Cin)        flattened zero-padded image (resident per batch step)
    # w_ref:     (9, Cin, COUT_PAD)  BN-scale-folded weights, tap-major (kh, kw)
    # shift_ref: (1, COUT_PAD)       folded BN shift
    # o_ref:     (TH_W, COUT_PAD)    one row-tile of the padded-width output
    # acc_ref:   (TH_W, COUT_PAD)    f32 VMEM scratch accumulator
    base = pl.program_id(1) * TH_W            # start row of this output tile (flat, padded grid)
    if TH_W % 8 == 0:
        base = pl.multiple_of(base, 8)

    acc_ref[...] = jnp.zeros_like(acc_ref)
    for kh in range(3):                        # static 9-tap unroll: im2col lives only in VMEM
        for kw in range(3):
            d = kh * Wp + kw                   # flat offset of tap (kh, kw)
            tap = x_ref[pl.ds(base + d, TH_W), :]                       # (TH_W, Cin)
            acc_ref[...] += jnp.dot(tap, w_ref[3 * kh + kw],
                                    preferred_element_type=jnp.float32)  # MXU

    y = acc_ref[...] + shift_ref[...]          # folded BatchNorm shift (scale is in the weights)
    o_ref[...] = jnp.maximum(y, 0.0).astype(o_ref.dtype)                 # ReLU, lane-dense store


def _pick_tile_h(H, Wp, max_rows):
    """Largest divisor of H whose row tile (th*Wp) is 8-aligned and <= max_rows."""
    if H * Wp <= max_rows:
        return H
    cands = [th for th in range(1, H)
             if H % th == 0 and (th * Wp) % 8 == 0 and th * Wp <= max_rows]
    return max(cands) if cands else H


def conv2d_relu(x_nchw, weight_oihw, gamma, beta, running_mean, running_var,
                eps=1e-5, max_rows_per_tile=512):
    N, Cin, H, W = x_nchw.shape
    Cout = weight_oihw.shape[0]
    Wp = W + 2
    COUT_PAD = ((Cout + 127) // 128) * 128     # lane-dense output channels

    # ---- fold BatchNorm (eval / running-stats mode) into the conv ----
    # TODO(synk): training-mode batch statistics (mean/var over N,H,W) are not computed in-kernel.
    scale = (gamma / jnp.sqrt(running_var + eps)).astype(jnp.float32)       # (Cout,)
    shift = (beta - running_mean * scale).astype(jnp.float32)               # (Cout,)

    # Weights OIHW -> (tap, Cin, Cout); BN scale folded into output channels; Cout padded to 128.
    w_taps = jnp.transpose(weight_oihw, (2, 3, 1, 0)).reshape(9, Cin, Cout).astype(jnp.float32)
    w_taps = w_taps * scale[None, None, :]
    w_taps = jnp.pad(w_taps, ((0, 0), (0, 0), (0, COUT_PAD - Cout)))
    shift_p = jnp.pad(shift, (0, COUT_PAD - Cout)).reshape(1, COUT_PAD)

    # ---- layout glue (no FLOPs): NCHW -> NHWC, zero-pad (top=1,bottom=2,left/right=1), flatten rows.
    # The extra bottom row keeps the garbage-column tap reads in-bounds.
    x_nhwc = jnp.transpose(x_nchw, (0, 2, 3, 1))
    x_pad = jnp.pad(x_nhwc, ((0, 0), (1, 2), (1, 1), (0, 0)))   # (N, H+3, Wp, Cin)
    P_ext = (H + 3) * Wp
    x_flat = x_pad.reshape(N, P_ext, Cin)                        # free row-major reshape

    TH = _pick_tile_h(H, Wp, max_rows_per_tile)                  # output rows per tile (image rows)
    TH_W = TH * Wp
    n_tiles = H // TH
    M_img = H * Wp                                               # padded-width output rows / image

    kernel = functools.partial(_conv_bn_relu_kernel, Wp=Wp, TH_W=TH_W)

    cost = pl.CostEstimate(
        flops=2 * N * M_img * 9 * Cin * COUT_PAD,
        transcendentals=0,
        bytes_accessed=(x_flat.size + w_taps.size + shift_p.size
                        + N * M_img * COUT_PAD) * 4,
    )

    out = pl.pallas_call(
        kernel,
        out_shape=jax.ShapeDtypeStruct((N, M_img, COUT_PAD), x_nchw.dtype),
        grid_spec=pltpu.PrefetchScalarGridSpec(
            num_scalar_prefetch=0,
            grid=(N, n_tiles),
            in_specs=[
                # Padded image (resident across the row tiles of one image).
                pl.BlockSpec((None, P_ext, Cin), lambda n, m: (n, 0, 0)),
                # Folded weights + shift stay resident for the whole grid.
                pl.BlockSpec((9, Cin, COUT_PAD), lambda n, m: (0, 0, 0)),
                pl.BlockSpec((1, COUT_PAD), lambda n, m: (0, 0)),
            ],
            out_specs=pl.BlockSpec((None, TH_W, COUT_PAD), lambda n, m: (n, m, 0)),
            scratch_shapes=[pltpu.VMEM((TH_W, COUT_PAD), jnp.float32)],
        ),
        compiler_params=pltpu.CompilerParams(
            dimension_semantics=("parallel", "parallel"),
            vmem_limit_bytes=48 * 1024 * 1024,
        ),
        cost_estimate=cost,
    )(x_flat, w_taps, shift_p)

    # Drop the 2 garbage columns per row and the channel padding; back to NCHW (PyTorch layout).
    y = out.reshape(N, H, Wp, COUT_PAD)[:, :, :W, :Cout]
    return jnp.transpose(y, (0, 3, 1, 2))


if __name__ == "__main__":
    key = jax.random.PRNGKey(0)
    k_x, k_w, k_g, k_b, k_m, k_v = jax.random.split(key, 6)

    N, Cin, H, W, Cout = 2, 4, 16, 16, 8

    x = jax.random.normal(k_x, (N, Cin, H, W), dtype=jnp.float32)

    # Deterministic parameter init (PyTorch-style kaiming-uniform bound for conv,
    # non-trivial BN running stats to exercise the folded scale/shift path).
    fan_in = Cin * 3 * 3
    bound = 1.0 / (fan_in ** 0.5)
    weight = jax.random.uniform(k_w, (Cout, Cin, 3, 3), jnp.float32, -bound, bound)
    gamma = jax.random.uniform(k_g, (Cout,), jnp.float32, 0.5, 1.5)
    beta = 0.1 * jax.random.normal(k_b, (Cout,), jnp.float32)
    running_mean = 0.1 * jax.random.normal(k_m, (Cout,), jnp.float32)
    running_var = jax.random.uniform(k_v, (Cout,), jnp.float32, 0.5, 1.5)

    # Default path (single row tile per image at this size).
    y = conv2d_relu(x, weight, gamma, beta, running_mean, running_var)
    y = jax.block_until_ready(y)
    # Forced multi-row-tile path (TH=8 -> grid=(N, 2)) to exercise M tiling.
    y_tiled = conv2d_relu(x, weight, gamma, beta, running_mean, running_var,
                          max_rows_per_tile=144)
    y_tiled = jax.block_until_ready(y_tiled)

    # Pure-JAX reference (conv + eval-mode BN + ReLU).
    ref = jax.lax.conv_general_dilated(
        x, weight, window_strides=(1, 1), padding=((1, 1), (1, 1)),
        dimension_numbers=("NCHW", "OIHW", "NCHW"))
    s = gamma / jnp.sqrt(running_var + 1e-5)
    b = beta - running_mean * s
    ref = jnp.maximum(ref * s[None, :, None, None] + b[None, :, None, None], 0.0)

    assert y.shape == (N, Cout, H, W), y.shape
    assert jnp.allclose(y, ref, atol=1e-4, rtol=1e-4), float(jnp.max(jnp.abs(y - ref)))
    assert jnp.allclose(y_tiled, ref, atol=1e-4, rtol=1e-4), float(jnp.max(jnp.abs(y_tiled - ref)))
    print("KERNEL_OK")
</pallas_src>

<mosaic_0001>
module attributes {stable_mosaic.version = 11 : i64} {
  func.func @_conv_bn_relu_kernel(%arg0: i32, %arg1: i32, %arg2: memref<1x342x4xf32, #tpu.memory_space<vmem>>, %arg3: memref<9x4x128xf32, #tpu.memory_space<vmem>>, %arg4: memref<1x128xf32, #tpu.memory_space<vmem>>, %arg5: memref<1x288x128xf32, #tpu.memory_space<vmem>>, %arg6: memref<288x128xf32, #tpu.memory_space<vmem>>) attributes {dimension_semantics = [#tpu.dimension_semantics<parallel>, #tpu.dimension_semantics<parallel>], iteration_bounds = array<i64: 2, 1>, scalar_prefetch = 0 : i64, scratch_operands = 1 : i64, tpu.core_type = #tpu.core_type<tc>, window_params = [{transform_indices = @transform_0, window_bounds = array<i64: 1, 342, 4>}, {pipeline_mode = #tpu.pipeline_mode<synchronous>, transform_indices = @transform_1, window_bounds = array<i64: 9, 4, 128>}, {pipeline_mode = #tpu.pipeline_mode<synchronous>, transform_indices = @transform_2, window_bounds = array<i64: 1, 128>}, {transform_indices = @transform_3, window_bounds = array<i64: 1, 288, 128>}]} {
    %c288_i32 = arith.constant 288 : i32
    %0 = arith.muli %arg1, %c288_i32 : i32
    %1 = tpu.assume_multiple %0, 8 : i32
    %cst = arith.constant 0.000000e+00 : f32
    %2 = vector.broadcast %cst : f32 to vector<288x128xf32>
    %c0 = arith.constant 0 : index
    %c0_0 = arith.constant 0 : index
    %3 = vector.load %arg6[%c0, %c0_0] : memref<288x128xf32, #tpu.memory_space<vmem>>, vector<288x128xf32>
    tpu.vector_store %arg6[%c0, %c0_0], %2 {strides = array<i32>} : memref<288x128xf32, #tpu.memory_space<vmem>>, vector<288x128xf32>,
    %c0_i32 = arith.constant 0 : i32
    %4 = arith.addi %1, %c0_i32 : i32
    %c0_1 = arith.constant 0 : index
    %5 = arith.index_cast %4 : i32 to index
    %c0_2 = arith.constant 0 : index
    %6 = vector.load %arg2[%c0_1, %5, %c0_2] : memref<1x342x4xf32, #tpu.memory_space<vmem>>, vector<1x288x4xf32>
    %7 = vector.shape_cast %6 : vector<1x288x4xf32> to vector<288x4xf32>
    %c0_3 = arith.constant 0 : index
    %c0_4 = arith.constant 0 : index
    %8 = vector.load %arg6[%c0_3, %c0_4] : memref<288x128xf32, #tpu.memory_space<vmem>>, vector<288x128xf32>
    %c0_5 = arith.constant 0 : index
    %c0_6 = arith.constant 0 : index
    %c0_7 = arith.constant 0 : index
    %9 = vector.load %arg3[%c0_5, %c0_6, %c0_7] : memref<9x4x128xf32, #tpu.memory_space<vmem>>, vector<1x4x128xf32>
    %10 = vector.shape_cast %9 : vector<1x4x128xf32> to vector<4x128xf32>
    %cst_8 = arith.constant dense<0.000000e+00> : vector<288x128xf32>
    %11 = tpu.matmul %7, %10, %cst_8 {dimension_numbers = #tpu.dot_dimension_numbers<[1], [0], [0], [1], [0, 0, 1, 1], [], []>} : vector<288x4xf32>, vector<4x128xf32>, vector<288x128xf32> -> vector<288x128xf32>
    %12 = arith.addf %8, %11 : vector<288x128xf32>
    %c0_9 = arith.constant 0 : index
    %c0_10 = arith.constant 0 : index
    %13 = vector.load %arg6[%c0_9, %c0_10] : memref<288x128xf32, #tpu.memory_space<vmem>>, vector<288x128xf32>
    tpu.vector_store %arg6[%c0_9, %c0_10], %12 {strides = array<i32>} : memref<288x128xf32, #tpu.memory_space<vmem>>, vector<288x128xf32>,
    %c1_i32 = arith.constant 1 : i32
    %14 = arith.addi %1, %c1_i32 : i32
    %c0_11 = arith.constant 0 : index
    %15 = arith.index_cast %14 : i32 to index
    %c0_12 = arith.constant 0 : index
    %16 = vector.load %arg2[%c0_11, %15, %c0_12] : memref<1x342x4xf32, #tpu.memory_space<vmem>>, vector<1x288x4xf32>
    %17 = vector.shape_cast %16 : vector<1x288x4xf32> to vector<288x4xf32>
    %c0_13 = arith.constant 0 : index
    %c0_14 = arith.constant 0 : index
    %18 = vector.load %arg6[%c0_13, %c0_14] : memref<288x128xf32, #tpu.memory_space<vmem>>, vector<288x128xf32>
    %c1 = arith.constant 1 : index
    %c0_15 = arith.constant 0 : index
    %c0_16 = arith.constant 0 : index
    %19 = vector.load %arg3[%c1, %c0_15, %c0_16] : memref<9x4x128xf32, #tpu.memory_space<vmem>>, vector<1x4x128xf32>
    %20 = vector.shape_cast %19 : vector<1x4x128xf32> to vector<4x128xf32>
    %cst_17 = arith.constant dense<0.000000e+00> : vector<288x128xf32>
    %21 = tpu.matmul %17, %20, %cst_17 {dimension_numbers = #tpu.dot_dimension_numbers<[1], [0], [0], [1], [0, 0, 1, 1], [], []>} : vector<288x4xf32>, vector<4x128xf32>, vector<288x128xf32> -> vector<288x128xf32>
    %22 = arith.addf %18, %21 : vector<288x128xf32>
    %c0_18 = arith.constant 0 : index
    %c0_19 = arith.constant 0 : index
    %23 = vector.load %arg6[%c0_18, %c0_19] : memref<288x128xf32, #tpu.memory_space<vmem>>, vector<288x128xf32>
    tpu.vector_store %arg6[%c0_18, %c0_19], %22 {strides = array<i32>} : memref<288x128xf32, #tpu.memory_space<vmem>>, vector<288x128xf32>,
    %c2_i32 = arith.constant 2 : i32
    %24 = arith.addi %1, %c2_i32 : i32
    %c0_20 = arith.constant 0 : index
    %25 = arith.index_cast %24 : i32 to index
    %c0_21 = arith.constant 0 : index
    %26 = vector.load %arg2[%c0_20, %25, %c0_21] : memref<1x342x4xf32, #tpu.memory_space<vmem>>, vector<1x288x4xf32>
    %27 = vector.shape_cast %26 : vector<1x288x4xf32> to vector<288x4xf32>
    %c0_22 = arith.constant 0 : index
    %c0_23 = arith.constant 0 : index
    %28 = vector.load %arg6[%c0_22, %c0_23] : memref<288x128xf32, #tpu.memory_space<vmem>>, vector<288x128xf32>
    %c2 = arith.constant 2 : index
    %c0_24 = arith.constant 0 : index
    %c0_25 = arith.constant 0 : index
    %29 = vector.load %arg3[%c2, %c0_24, %c0_25] : memref<9x4x128xf32, #tpu.memory_space<vmem>>, vector<1x4x128xf32>
    %30 = vector.shape_cast %29 : vector<1x4x128xf32> to vector<4x128xf32>
    %cst_26 = arith.constant dense<0.000000e+00> : vector<288x128xf32>
    %31 = tpu.matmul %27, %30, %cst_26 {dimension_numbers = #tpu.dot_dimension_numbers<[1], [0], [0], [1], [0, 0, 1, 1], [], []>} : vector<288x4xf32>, vector<4x128xf32>, vector<288x128xf32> -> vector<288x128xf32>
    %32 = arith.addf %28, %31 : vector<288x128xf32>
    %c0_27 = arith.constant 0 : index
    %c0_28 = arith.constant 0 : index
    %33 = vector.load %arg6[%c0_27, %c0_28] : memref<288x128xf32, #tpu.memory_space<vmem>>, vector<288x128xf32>
    tpu.vector_store %arg6[%c0_27, %c0_28], %32 {strides = array<i32>} : memref<288x128xf32, #tpu.memory_space<vmem>>, vector<288x128xf32>,
    %c18_i32 = arith.constant 18 : i32
    %34 = arith.addi %1, %c18_i32 : i32
    %c0_29 = arith.constant 0 : index
    %35 = arith.index_cast %34 : i32 to index
    %c0_30 = arith.constant 0 : index
    %36 = vector.load %arg2[%c0_29, %35, %c0_30] : memref<1x342x4xf32, #tpu.memory_space<vmem>>, vector<1x288x4xf32>
    %37 = vector.shape_cast %36 : vector<1x288x4xf32> to vector<288x4xf32>
    %c0_31 = arith.constant 0 : index
    %c0_32 = arith.constant 0 : index
    %38 = vector.load %arg6[%c0_31, %c0_32] : memref<288x128xf32, #tpu.memory_space<vmem>>, vector<288x128xf32>
    %c3 = arith.constant 3 : index
    %c0_33 = arith.constant 0 : index
    %c0_34 = arith.constant 0 : index
    %39 = vector.load %arg3[%c3, %c0_33, %c0_34] : memref<9x4x128xf32, #tpu.memory_space<vmem>>, vector<1x4x128xf32>
    %40 = vector.shape_cast %39 : vector<1x4x128xf32> to vector<4x128xf32>
    %cst_35 = arith.constant dense<0.000000e+00> : vector<288x128xf32>
    %41 = tpu.matmul %37, %40, %cst_35 {dimension_numbers = #tpu.dot_dimension_numbers<[1], [0], [0], [1], [0, 0, 1, 1], [], []>} : vector<288x4xf32>, vector<4x128xf32>, vector<288x128xf32> -> vector<288x128xf32>
    %42 = arith.addf %38, %41 : vector<288x128xf32>
    %c0_36 = arith.constant 0 : index
    %c0_37 = arith.constant 0 : index
    %43 = vector.load %arg6[%c0_36, %c0_37] : memref<288x128xf32, #tpu.memory_space<vmem>>, vector<288x128xf32>
    tpu.vector_store %arg6[%c0_36, %c0_37], %42 {strides = array<i32>} : memref<288x128xf32, #tpu.memory_space<vmem>>, vector<288x128xf32>,
    %c19_i32 = arith.constant 19 : i32
    %44 = arith.addi %1, %c19_i32 : i32
    %c0_38 = arith.constant 0 : index
    %45 = arith.index_cast %44 : i32 to index
    %c0_39 = arith.constant 0 : index
    %46 = vector.load %arg2[%c0_38, %45, %c0_39] : memref<1x342x4xf32, #tpu.memory_space<vmem>>, vector<1x288x4xf32>
    %47 = vector.shape_cast %46 : vector<1x288x4xf32> to vector<288x4xf32>
    %c0_40 = arith.constant 0 : index
    %c0_41 = arith.constant 0 : index
    %48 = vector.load %arg6[%c0_40, %c0_41] : memref<288x128xf32, #tpu.memory_space<vmem>>, vector<288x128xf32>
    %c4 = arith.constant 4 : index
    %c0_42 = arith.constant 0 : index
    %c0_43 = arith.constant 0 : index
    %49 = vector.load %arg3[%c4, %c0_42, %c0_43] : memref<9x4x128xf32, #tpu.memory_space<vmem>>, vector<1x4x128xf32>
    %50 = vector.shape_cast %49 : vector<1x4x128xf32> to vector<4x128xf32>
    %cst_44 = arith.constant dense<0.000000e+00> : vector<288x128xf32>
    %51 = tpu.matmul %47, %50, %cst_44 {dimension_numbers = #tpu.dot_dimension_numbers<[1], [0], [0], [1], [0, 0, 1, 1], [], []>} : vector<288x4xf32>, vector<4x128xf32>, vector<288x128xf32> -> vector<288x128xf32>
    %52 = arith.addf %48, %51 : vector<288x128xf32>
    %c0_45 = arith.constant 0 : index
    %c0_46 = arith.constant 0 : index
    %53 = vector.load %arg6[%c0_45, %c0_46] : memref<288x128xf32, #tpu.memory_space<vmem>>, vector<288x128xf32>
    tpu.vector_store %arg6[%c0_45, %c0_46], %52 {strides = array<i32>} : memref<288x128xf32, #tpu.memory_space<vmem>>, vector<288x128xf32>,
    %c20_i32 = arith.constant 20 : i32
    %54 = arith.addi %1, %c20_i32 : i32
    %c0_47 = arith.constant 0 : index
    %55 = arith.index_cast %54 : i32 to index
    %c0_48 = arith.constant 0 : index
    %56 = vector.load %arg2[%c0_47, %55, %c0_48] : memref<1x342x4xf32, #tpu.memory_space<vmem>>, vector<1x288x4xf32>
    %57 = vector.shape_cast %56 : vector<1x288x4xf32> to vector<288x4xf32>
    %c0_49 = arith.constant 0 : index
    %c0_50 = arith.constant 0 : index
    %58 = vector.load %arg6[%c0_49, %c0_50] : memref<288x128xf32, #tpu.memory_space<vmem>>, vector<288x128xf32>
    %c5 = arith.constant 5 : index
    %c0_51 = arith.constant 0 : index
    %c0_52 = arith.constant 0 : index
    %59 = vector.load %arg3[%c5, %c0_51, %c0_52] : memref<9x4x128xf32, #tpu.memory_space<vmem>>, vector<1x4x128xf32>
    %60 = vector.shape_cast %59 : vector<1x4x128xf32> to vector<4x128xf32>
    %cst_53 = arith.constant dense<0.000000e+00> : vector<288x128xf32>
    %61 = tpu.matmul %57, %60, %cst_53 {dimension_numbers = #tpu.dot_dimension_numbers<[1], [0], [0], [1], [0, 0, 1, 1], [], []>} : vector<288x4xf32>, vector<4x128xf32>, vector<288x128xf32> -> vector<288x128xf32>
    %62 = arith.addf %58, %61 : vector<288x128xf32>
    %c0_54 = arith.constant 0 : index
    %c0_55 = arith.constant 0 : index
    %63 = vector.load %arg6[%c0_54, %c0_55] : memref<288x128xf32, #tpu.memory_space<vmem>>, vector<288x128xf32>
    tpu.vector_store %arg6[%c0_54, %c0_55], %62 {strides = array<i32>} : memref<288x128xf32, #tpu.memory_space<vmem>>, vector<288x128xf32>,
    %c36_i32 = arith.constant 36 : i32
    %64 = arith.addi %1, %c36_i32 : i32
    %c0_56 = arith.constant 0 : index
    %65 = arith.index_cast %64 : i32 to index
    %c0_57 = arith.constant 0 : index
    %66 = vector.load %arg2[%c0_56, %65, %c0_57] : memref<1x342x4xf32, #tpu.memory_space<vmem>>, vector<1x288x4xf32>
    %67 = vector.shape_cast %66 : vector<1x288x4xf32> to vector<288x4xf32>
    %c0_58 = arith.constant 0 : index
    %c0_59 = arith.constant 0 : index
    %68 = vector.load %arg6[%c0_58, %c0_59] : memref<288x128xf32, #tpu.memory_space<vmem>>, vector<288x128xf32>
    %c6 = arith.constant 6 : index
    %c0_60 = arith.constant 0 : index
    %c0_61 = arith.constant 0 : index
    %69 = vector.load %arg3[%c6, %c0_60, %c0_61] : memref<9x4x128xf32, #tpu.memory_space<vmem>>, vector<1x4x128xf32>
    %70 = vector.shape_cast %69 : vector<1x4x128xf32> to vector<4x128xf32>
    %cst_62 = arith.constant dense<0.000000e+00> : vector<288x128xf32>
    %71 = tpu.matmul %67, %70, %cst_62 {dimension_numbers = #tpu.dot_dimension_numbers<[1], [0], [0], [1], [0, 0, 1, 1], [], []>} : vector<288x4xf32>, vector<4x128xf32>, vector<288x128xf32> -> vector<288x128xf32>
    %72 = arith.addf %68, %71 : vector<288x128xf32>
    %c0_63 = arith.constant 0 : index
    %c0_64 = arith.constant 0 : index
    %73 = vector.load %arg6[%c0_63, %c0_64] : memref<288x128xf32, #tpu.memory_space<vmem>>, vector<288x128xf32>
    tpu.vector_store %arg6[%c0_63, %c0_64], %72 {strides = array<i32>} : memref<288x128xf32, #tpu.memory_space<vmem>>, vector<288x128xf32>,
    %c37_i32 = arith.constant 37 : i32
    %74 = arith.addi %1, %c37_i32 : i32
    %c0_65 = arith.constant 0 : index
    %75 = arith.index_cast %74 : i32 to index
    %c0_66 = arith.constant 0 : index
    %76 = vector.load %arg2[%c0_65, %75, %c0_66] : memref<1x342x4xf32, #tpu.memory_space<vmem>>, vector<1x288x4xf32>
    %77 = vector.shape_cast %76 : vector<1x288x4xf32> to vector<288x4xf32>
    %c0_67 = arith.constant 0 : index
    %c0_68 = arith.constant 0 : index
    %78 = vector.load %arg6[%c0_67, %c0_68] : memref<288x128xf32, #tpu.memory_space<vmem>>, vector<288x128xf32>
    %c7 = arith.constant 7 : index
    %c0_69 = arith.constant 0 : index
    %c0_70 = arith.constant 0 : index
    %79 = vector.load %arg3[%c7, %c0_69, %c0_70] : memref<9x4x128xf32, #tpu.memory_space<vmem>>, vector<1x4x128xf32>
    %80 = vector.shape_cast %79 : vector<1x4x128xf32> to vector<4x128xf32>
    %cst_71 = arith.constant dense<0.000000e+00> : vector<288x128xf32>
    %81 = tpu.matmul %77, %80, %cst_71 {dimension_numbers = #tpu.dot_dimension_numbers<[1], [0], [0], [1], [0, 0, 1, 1], [], []>} : vector<288x4xf32>, vector<4x128xf32>, vector<288x128xf32> -> vector<288x128xf32>
    %82 = arith.addf %78, %81 : vector<288x128xf32>
    %c0_72 = arith.constant 0 : index
    %c0_73 = arith.constant 0 : index
    %83 = vector.load %arg6[%c0_72, %c0_73] : memref<288x128xf32, #tpu.memory_space<vmem>>, vector<288x128xf32>
    tpu.vector_store %arg6[%c0_72, %c0_73], %82 {strides = array<i32>} : memref<288x128xf32, #tpu.memory_space<vmem>>, vector<288x128xf32>,
    %c38_i32 = arith.constant 38 : i32
    %84 = arith.addi %1, %c38_i32 : i32
    %c0_74 = arith.constant 0 : index
    %85 = arith.index_cast %84 : i32 to index
    %c0_75 = arith.constant 0 : index
    %86 = vector.load %arg2[%c0_74, %85, %c0_75] : memref<1x342x4xf32, #tpu.memory_space<vmem>>, vector<1x288x4xf32>
    %87 = vector.shape_cast %86 : vector<1x288x4xf32> to vector<288x4xf32>
    %c0_76 = arith.constant 0 : index
    %c0_77 = arith.constant 0 : index
    %88 = vector.load %arg6[%c0_76, %c0_77] : memref<288x128xf32, #tpu.memory_space<vmem>>, vector<288x128xf32>
    %c8 = arith.constant 8 : index
    %c0_78 = arith.constant 0 : index
    %c0_79 = arith.constant 0 : index
    %89 = vector.load %arg3[%c8, %c0_78, %c0_79] : memref<9x4x128xf32, #tpu.memory_space<vmem>>, vector<1x4x128xf32>
    %90 = vector.shape_cast %89 : vector<1x4x128xf32> to vector<4x128xf32>
    %cst_80 = arith.constant dense<0.000000e+00> : vector<288x128xf32>
    %91 = tpu.matmul %87, %90, %cst_80 {dimension_numbers = #tpu.dot_dimension_numbers<[1], [0], [0], [1], [0, 0, 1, 1], [], []>} : vector<288x4xf32>, vector<4x128xf32>, vector<288x128xf32> -> vector<288x128xf32>
    %92 = arith.addf %88, %91 : vector<288x128xf32>
    %c0_81 = arith.constant 0 : index
    %c0_82 = arith.constant 0 : index
    %93 = vector.load %arg6[%c0_81, %c0_82] : memref<288x128xf32, #tpu.memory_space<vmem>>, vector<288x128xf32>
    tpu.vector_store %arg6[%c0_81, %c0_82], %92 {strides = array<i32>} : memref<288x128xf32, #tpu.memory_space<vmem>>, vector<288x128xf32>,
    %c0_83 = arith.constant 0 : index
    %c0_84 = arith.constant 0 : index
    %94 = vector.load %arg6[%c0_83, %c0_84] : memref<288x128xf32, #tpu.memory_space<vmem>>, vector<288x128xf32>
    %c0_85 = arith.constant 0 : index
    %c0_86 = arith.constant 0 : index
    %95 = vector.load %arg4[%c0_85, %c0_86] : memref<1x128xf32, #tpu.memory_space<vmem>>, vector<1x128xf32>
    %96 = vector.broadcast %95 : vector<1x128xf32> to vector<288x128xf32>
    %97 = arith.addf %94, %96 : vector<288x128xf32>
    %cst_87 = arith.constant 0.000000e+00 : f32
    %98 = vector.broadcast %cst_87 : f32 to vector<288x128xf32>
    %99 = arith.maximumf %97, %98 : vector<288x128xf32>
    %c0_88 = arith.constant 0 : index
    %c0_89 = arith.constant 0 : index
    %c0_90 = arith.constant 0 : index
    %100 = vector.load %arg5[%c0_88, %c0_89, %c0_90] : memref<1x288x128xf32, #tpu.memory_space<vmem>>, vector<1x288x128xf32>
    %101 = vector.shape_cast %100 : vector<1x288x128xf32> to vector<288x128xf32>
    %102 = vector.shape_cast %99 : vector<288x128xf32> to vector<1x288x128xf32>
    tpu.vector_store %arg5[%c0_88, %c0_89, %c0_90], %102 {strides = array<i32>} : memref<1x288x128xf32, #tpu.memory_space<vmem>>, vector<1x288x128xf32>,
    return
  }
  func.func @transform_0(%arg0: i32, %arg1: i32) -> (i32, i32, i32) {
    %c0_i32 = arith.constant 0 : i32
    %c0_i32_0 = arith.constant 0 : i32
    %c0_i32_1 = arith.constant 0 : i32
    return %arg0, %c0_i32, %c0_i32_0 : i32, i32, i32
  }
  func.func @transform_1(%arg0: i32, %arg1: i32) -> (i32, i32, i32) {
    %c0_i32 = arith.constant 0 : i32
    %c0_i32_0 = arith.constant 0 : i32
    %c0_i32_1 = arith.constant 0 : i32
    %c0_i32_2 = arith.constant 0 : i32
    return %c0_i32, %c0_i32_0, %c0_i32_1 : i32, i32, i32
  }
  func.func @transform_2(%arg0: i32, %arg1: i32) -> (i32, i32) {
    %c0_i32 = arith.constant 0 : i32
    %c0_i32_0 = arith.constant 0 : i32
    %c0_i32_1 = arith.constant 0 : i32
    return %c0_i32, %c0_i32_0 : i32, i32
  }
  func.func @transform_3(%arg0: i32, %arg1: i32) -> (i32, i32, i32) {
    %c0_i32 = arith.constant 0 : i32
    %c0_i32_0 = arith.constant 0 : i32
    return %arg0, %arg1, %c0_i32 : i32, i32, i32
  }
}

</mosaic_0001>

<llo_original>
// kernel: tpu_custom_call.1
$region0: #{tpu_custom_call.1}
  #allocation0 [shape = 'u32[]', space=smem, size = 0x4, offset = 0x4, fixed_abs, tag = 'smem constant byte address 0x4 - core index']
  #allocation1 [shape = 'u32[144,128]{1,0:T(1,128)}', space=vmem, size = 0x12000, scoped, tag = 'internal scratch']
  #allocation2 [shape = 'f32[288,128]{1,0:T(8,128)}', space=vmem, size = 0x24000, scoped, tag = 'scratch operand']
  %s0 = inlined_call_operand.vmem [shape: f32[2,342,4], index: 0, kind: input, shape index: {}]
  %s1 = inlined_call_operand.vmem [shape: f32[9,4,128], index: 1, kind: input, shape index: {}]
  %s2 = inlined_call_operand.vmem [shape: f32[1,128], index: 2, kind: input, shape index: {}]
  %s3 = inlined_call_operand.hbm [shape: f32[2,288,128], index: 3, kind: output, shape index: {}]
  %s4 = sld [smem:[#allocation0]]
  $region45: #{tpu_custom_call.1} parent=0
    _
  %s6 = ssub.s32 1, %s4
  %s7 = scalar_select 0, %s6, %s4
  $region1: #{tpu_custom_call.1} parent=0
    #allocation3 [shape = 'u8[294912]{0}', space=vmem, size = 0x48000, scoped, tag = 'output window, operand 0']
    #allocation4 [shape = 's32[2]{0}', space=sflag, size = 0x8, scoped, tag = 'scoped memory for tpu_custom_call.1']
    %8 = vsyncpa [#allocation4], 0
    %s9 = scalar_lea.sflag [#allocation4], 1
    %10 = vsyncpa %s9, 0
    loop: start=0, step=1, limit=4
    $region2: #{tpu_custom_call.1} parent=1 // loop_pre_header
      _
    $region3: #{tpu_custom_call.1} parent=1 // loop_header
      %s12 = sphi 0, %s16
      %p13 = scmp.ge.s32.totalorder %s12, 4
      %s19 = sphi 0, %s31
      %s20 = sphi 0, %s27
      %s21 = sphi 0, %s19
      %s22 = sphi 0, %s20
      %s23 = sphi 0, %s21
      %s24 = sphi 0, %s22
      %s34 = sphi 0, %s36
      %s37 = sphi 0, %s34
      %s38 = sphi 0, %s37
      %s54 = sphi 0, %s38
      %s58 = sphi 0, %s58
      %s60 = sphi 0, %s58
      %s61 = sphi 0, %s60
      %s75 = sphi 0, %s61
      %s79 = sphi 0, %s79
      %s81 = sphi 0, %s79
      %s82 = sphi 0, %s81
      %s96 = sphi 0, %s82
      %s104 = sphi 0, %s106
      %s107 = sphi 0, %s104
      %s108 = sphi 0, %s107
      %s124 = sphi 0, %s108
    $region4: #{tpu_custom_call.1} parent=1 // loop_header_branch
      %15 = sbr.rel (%p13) target = $region8
    $region5: #{tpu_custom_call.1} parent=1 // loop_body
      %s17 = ssub.s32 %s12, 1
      %s18 = ssub.s32 %s12, 2
      %s25 = sadd.s32 1, %s20
      %p26 = scmp.ge.s32.totalorder %s25, 1
      %s27 = scalar_select %p26, 0, %s25
      %s28 = sadd.s32 1, %s19
      %s29 = scalar_select %p26, %s28, %s19
      %p30 = scmp.ge.s32.totalorder %s29, 2
      %s31 = scalar_select %p30, 0, %s29
      %s32 = ssub.s32 %s19, %s31
      %p33 = scmp.eq.s32.totalorder %s32, 0
      %s35 = sadd.s32 %s34, 1
      %s36 = scalar_select %p33, %s34, %s35
      %p39 = pneg %p33
      %p40 = scmp.eq.s32.totalorder %s12, 1
      %p41 = por %p39, %p40
      %p42 = scmp.ne.s32.totalorder %s34, %s37
      %p43 = scmp.eq.s32.totalorder %s12, 0
      %p44 = por %p42, %p43
      %p45 = scmp.ne.s32.totalorder %s34, %s37
      %p46 = scmp.eq.s32.totalorder %s17, 1
      %p47 = por %p45, %p46
      %p48 = scmp.ne.s32.totalorder %s37, %s38
      %p49 = scmp.eq.s32.totalorder %s17, 0
      %p50 = por %p48, %p49
      %p51 = scmp.ne.s32.totalorder %s37, %s38
      %p52 = scmp.eq.s32.totalorder %s18, 1
      %p53 = por %p51, %p52
      %p55 = scmp.ne.s32.totalorder %s38, %s54
      %p56 = scmp.eq.s32.totalorder %s18, 0
      %p57 = por %p55, %p56
      %s59 = sadd.s32 %s58, 1
      %p62 = scmp.eq.s32.totalorder %s12, 1
      %p63 = scmp.ne.s32.totalorder %s58, %s60
      %p64 = scmp.eq.s32.totalorder %s12, 0
      %p65 = por %p63, %p64
      %p66 = scmp.ne.s32.totalorder %s58, %s60
      %p67 = scmp.eq.s32.totalorder %s17, 1
      %p68 = por %p66, %p67
      %p69 = scmp.ne.s32.totalorder %s60, %s61
      %p70 = scmp.eq.s32.totalorder %s17, 0
      %p71 = por %p69, %p70
      %p72 = scmp.ne.s32.totalorder %s60, %s61
      %p73 = scmp.eq.s32.totalorder %s18, 1
      %p74 = por %p72, %p73
      %p76 = scmp.ne.s32.totalorder %s61, %s75
      %p77 = scmp.eq.s32.totalorder %s18, 0
      %p78 = por %p76, %p77
      %s80 = sadd.s32 %s79, 1
      %p83 = scmp.eq.s32.totalorder %s12, 1
      %p84 = scmp.ne.s32.totalorder %s79, %s81
      %p85 = scmp.eq.s32.totalorder %s12, 0
      %p86 = por %p84, %p85
      %p87 = scmp.ne.s32.totalorder %s79, %s81
      %p88 = scmp.eq.s32.totalorder %s17, 1
      %p89 = por %p87, %p88
      %p90 = scmp.ne.s32.totalorder %s81, %s82
      %p91 = scmp.eq.s32.totalorder %s17, 0
      %p92 = por %p90, %p91
      %p93 = scmp.ne.s32.totalorder %s81, %s82
      %p94 = scmp.eq.s32.totalorder %s18, 1
      %p95 = por %p93, %p94
      %p97 = scmp.ne.s32.totalorder %s82, %s96
      %p98 = scmp.eq.s32.totalorder %s18, 0
      %p99 = por %p97, %p98
      %s100 = ssub.s32 %s19, %s31
      %s101 = ssub.s32 %s20, %s27
      %s102 = sor.u32 %s100, %s101
      %p103 = scmp.eq.s32.totalorder %s102, 0
      %s105 = sadd.s32 %s104, 1
      %s106 = scalar_select %p103, %s104, %s105
      %p109 = pneg %p103
      %p110 = scmp.eq.s32.totalorder %s12, 1
      %p111 = por %p109, %p110
      %p112 = scmp.ne.s32.totalorder %s104, %s107
      %p113 = scmp.eq.s32.totalorder %s12, 0
      %p114 = por %p112, %p113
      %p115 = scmp.ne.s32.totalorder %s104, %s107
      %p116 = scmp.eq.s32.totalorder %s17, 1
      %p117 = por %p115, %p116
      %p118 = scmp.ne.s32.totalorder %s107, %s108
      %p119 = scmp.eq.s32.totalorder %s17, 0
      %p120 = por %p118, %p119
      %p121 = scmp.ne.s32.totalorder %s107, %s108
      %p122 = scmp.eq.s32.totalorder %s18, 1
      %p123 = por %p121, %p122
      %p125 = scmp.ne.s32.totalorder %s108, %s124
      %p126 = scmp.eq.s32.totalorder %s18, 0
      %p127 = por %p125, %p126
      %p128 = scmp.le.s32.totalorder 1, %s12
      %p129 = scmp.lt.s32.totalorder %s12, 3
      %p130 = pnand %p128, %p129
      %p131 = pneg %p130
      // Predicated region
      $region9: #{tpu_custom_call.1} parent=5 // pred_check
        _
      $region10: #{tpu_custom_call.1} parent=5 // pred_check_branch
        %133 = sbr.rel (%p130) target = $region12
      $region11: #{tpu_custom_call.1} parent=5 // pred_region
        %s134 = ssub.s32 %s12, 1
        // Predicated region
        $region13: #{tpu_custom_call.1} parent=11 // pred_check
          %p135 = pneg %p71
        $region14: #{tpu_custom_call.1} parent=11 // pred_check_branch
          %137 = sbr.rel (%p135) target = $region16
        $region15: #{tpu_custom_call.1} parent=11 // pred_region
          _
        $region16: #{tpu_custom_call.1} parent=11 // pred_fallthru
          _
        // Predicated region
        $region17: #{tpu_custom_call.1} parent=11 // pred_check
          %p138 = pneg %p92
        $region18: #{tpu_custom_call.1} parent=11 // pred_check_branch
          %140 = sbr.rel (%p138) target = $region20
        $region19: #{tpu_custom_call.1} parent=11 // pred_region
          _
        $region20: #{tpu_custom_call.1} parent=11 // pred_fallthru
          _
      $region12: #{tpu_custom_call.1} parent=5 // pred_fallthru
        _
      %p141 = scmp.lt.s32.totalorder %s12, 2
      // Predicated region
      $region21: #{tpu_custom_call.1} parent=5 // pred_check
        %p142 = pneg %p141
      $region22: #{tpu_custom_call.1} parent=5 // pred_check_branch
        %144 = sbr.rel (%p142) target = $region24
      $region23: #{tpu_custom_call.1} parent=5 // pred_region
        // Predicated region
        $region25: #{tpu_custom_call.1} parent=23 // pred_check
          %p145 = pneg %p44
        $region26: #{tpu_custom_call.1} parent=23 // pred_check_branch
          %147 = sbr.rel (%p145) target = $region28
        $region27: #{tpu_custom_call.1} parent=23 // pred_region
          %p148 = scmp.lt.s32.totalorder %s19, 1
          %s149 = scalar_select %p148, %s19, 1
          %s150 = smul.addr %s149, 43
          %s151 = smul.addr %s150, 8
          %s152 = scalar_lea.vmem %s0, %s151
        $region28: #{tpu_custom_call.1} parent=23 // pred_fallthru
          _
      $region24: #{tpu_custom_call.1} parent=5 // pred_fallthru
        _
      %p153 = scmp.le.s32.totalorder 1, %s12
      %p154 = scmp.lt.s32.totalorder %s12, 3
      %p155 = pnand %p153, %p154
      %p156 = pneg %p155
      // Predicated region
      $region29: #{tpu_custom_call.1} parent=5 // pred_check
        _
      $region30: #{tpu_custom_call.1} parent=5 // pred_check_branch
        %158 = sbr.rel (%p155) target = $region32
      $region31: #{tpu_custom_call.1} parent=5 // pred_region
        %s159 = ssub.s32 %s12, 1
        %p160 = scmp.lt.s32.totalorder %s21, 1
        %s161 = scalar_select %p160, %s21, 1
        %s162 = smul.addr %s161, 43
        %s163 = smul.addr %s162, 8
        %s164 = scalar_lea.vmem %s0, %s163
        %p165 = pneg %p50
        %p166 = pneg %p47
        %p167 = pneg %p71
        %p168 = pneg %p68
        %p169 = pneg %p92
        %p170 = pneg %p89
        %p171 = pneg %p120
        %p172 = pneg %p117
        %s173 = sand.u32 %s107, 1
        %s174 = scalar_lea.sflag [#allocation4], %s173
        %s175 = sand.u32 %s107, 1
        %s176 = smul.addr %s175, 288
        %s177 = scalar_lea.vmem [#allocation3], %s176
        %p178 = scmp.lt.s32.totalorder %s21, 1
        %s179 = scalar_select %p178, %s21, 1
        %s180 = smul.addr %s179, 43
        %s181 = smul.addr %s180, 8
        %s182 = scalar_lea.vmem %s0, %s181
        %s183 = smul.u32 36, %s22
        %s184 = smul.u32 %s22, 288
        %185 = vst [vmem:[#allocation2] sm:$0xff] 0.0
        %186 = vst [vmem:[#allocation2 + $0x8] sm:$0xff] 0.0
        %187 = vst [vmem:[#allocation2 + $0x10] sm:$0xff] 0.0
        %188 = vst [vmem:[#allocation2 + $0x18] sm:$0xff] 0.0
        %189 = vst [vmem:[#allocation2 + $0x20] sm:$0xff] 0.0
        %190 = vst [vmem:[#allocation2 + $0x28] sm:$0xff] 0.0
        %191 = vst [vmem:[#allocation2 + $0x30] sm:$0xff] 0.0
        %192 = vst [vmem:[#allocation2 + $0x38] sm:$0xff] 0.0
        %193 = vst [vmem:[#allocation2 + $0x40] sm:$0xff] 0.0
        %194 = vst [vmem:[#allocation2 + $0x48] sm:$0xff] 0.0
        %195 = vst [vmem:[#allocation2 + $0x50] sm:$0xff] 0.0
        %196 = vst [vmem:[#allocation2 + $0x58] sm:$0xff] 0.0
        %197 = vst [vmem:[#allocation2 + $0x60] sm:$0xff] 0.0
        %198 = vst [vmem:[#allocation2 + $0x68] sm:$0xff] 0.0
        %199 = vst [vmem:[#allocation2 + $0x70] sm:$0xff] 0.0
        %200 = vst [vmem:[#allocation2 + $0x78] sm:$0xff] 0.0
        %201 = vst [vmem:[#allocation2 + $0x80] sm:$0xff] 0.0
        %202 = vst [vmem:[#allocation2 + $0x88] sm:$0xff] 0.0
        %203 = vst [vmem:[#allocation2 + $0x90] sm:$0xff] 0.0
        %204 = vst [vmem:[#allocation2 + $0x98] sm:$0xff] 0.0
        %205 = vst [vmem:[#allocation2 + $0xa0] sm:$0xff] 0.0
        %206 = vst [vmem:[#allocation2 + $0xa8] sm:$0xff] 0.0
        %207 = vst [vmem:[#allocation2 + $0xb0] sm:$0xff] 0.0
        %208 = vst [vmem:[#allocation2 + $0xb8] sm:$0xff] 0.0
        %209 = vst [vmem:[#allocation2 + $0xc0] sm:$0xff] 0.0
        %210 = vst [vmem:[#allocation2 + $0xc8] sm:$0xff] 0.0
        %211 = vst [vmem:[#allocation2 + $0xd0] sm:$0xff] 0.0
        %212 = vst [vmem:[#allocation2 + $0xd8] sm:$0xff] 0.0
        %213 = vst [vmem:[#allocation2 + $0xe0] sm:$0xff] 0.0
        %214 = vst [vmem:[#allocation2 + $0xe8] sm:$0xff] 0.0
        %215 = vst [vmem:[#allocation2 + $0xf0] sm:$0xff] 0.0
        %216 = vst [vmem:[#allocation2 + $0xf8] sm:$0xff] 0.0
        %217 = vst [vmem:[#allocation2 + $0x100] sm:$0xff] 0.0
        %218 = vst [vmem:[#allocation2 + $0x108] sm:$0xff] 0.0
        %219 = vst [vmem:[#allocation2 + $0x110] sm:$0xff] 0.0
        %220 = vst [vmem:[#allocation2 + $0x118] sm:$0xff] 0.0
        %s221 = scalar_lea.vmem %s182, %s184
        %v222 = vld [vmem:[%s221] sm:$0xff]
        %v223 = vld [vmem:[%s221 + $0x8] sm:$0xff]
        %v224 = vld [vmem:[%s221 + $0x10] sm:$0xff]
        %v225 = vld [vmem:[%s221 + $0x18] sm:$0xff]
        %v226 = vld [vmem:[%s221 + $0x20] sm:$0xff]
        %v227 = vld [vmem:[%s221 + $0x28] sm:$0xff]
        %v228 = vld [vmem:[%s221 + $0x30] sm:$0xff]
        %v229 = vld [vmem:[%s221 + $0x38] sm:$0xff]
        %v230 = vld [vmem:[%s221 + $0x40] sm:$0xff]
        %v231 = vld [vmem:[%s221 + $0x48] sm:$0xff]
        %v232 = vld [vmem:[%s221 + $0x50] sm:$0xff]
        %v233 = vld [vmem:[%s221 + $0x58] sm:$0xff]
        %v234 = vld [vmem:[%s221 + $0x60] sm:$0xff]
        %v235 = vld [vmem:[%s221 + $0x68] sm:$0xff]
        %v236 = vld [vmem:[%s221 + $0x70] sm:$0xff]
        %v237 = vld [vmem:[%s221 + $0x78] sm:$0xff]
        %v238 = vld [vmem:[%s221 + $0x80] sm:$0xff]
        %v239 = vld [vmem:[%s221 + $0x88] sm:$0xff]
        %v240 = vld [vmem:[%s221 + $0x90] sm:$0xff]
        %v241 = vld [vmem:[%s221 + $0x98] sm:$0xff]
        %v242 = vld [vmem:[%s221 + $0xa0] sm:$0xff]
        %v243 = vld [vmem:[%s221 + $0xa8] sm:$0xff]
        %v244 = vld [vmem:[%s221 + $0xb0] sm:$0xff]
        %v245 = vld [vmem:[%s221 + $0xb8] sm:$0xff]
        %v246 = vld [vmem:[%s221 + $0xc0] sm:$0xff]
        %v247 = vld [vmem:[%s221 + $0xc8] sm:$0xff]
        %v248 = vld [vmem:[%s221 + $0xd0] sm:$0xff]
        %v249 = vld [vmem:[%s221 + $0xd8] sm:$0xff]
        %v250 = vld [vmem:[%s221 + $0xe0] sm:$0xff]
        %v251 = vld [vmem:[%s221 + $0xe8] sm:$0xff]
        %v252 = vld [vmem:[%s221 + $0xf0] sm:$0xff]
        %v253 = vld [vmem:[%s221 + $0xf8] sm:$0xff]
        %v254 = vld [vmem:[%s221 + $0x100] sm:$0xff]
        %v255 = vld [vmem:[%s221 + $0x108] sm:$0xff]
        %v256 = vld [vmem:[%s221 + $0x110] sm:$0xff]
        %v257 = vld [vmem:[%s221 + $0x118] sm:$0xff]
        %v258 = vld [vmem:[#allocation2] sm:$0xff]
        %v259 = vld [vmem:[#allocation2 + $0x8] sm:$0xff]
        %v260 = vld [vmem:[#allocation2 + $0x10] sm:$0xff]
        %v261 = vld [vmem:[#allocation2 + $0x18] sm:$0xff]
        %v262 = vld [vmem:[#allocation2 + $0x20] sm:$0xff]
        %v263 = vld [vmem:[#allocation2 + $0x28] sm:$0xff]
        %v264 = vld [vmem:[#allocation2 + $0x30] sm:$0xff]
        %v265 = vld [vmem:[#allocation2 + $0x38] sm:$0xff]
        %v266 = vld [vmem:[#allocation2 + $0x40] sm:$0xff]
        %v267 = vld [vmem:[#allocation2 + $0x48] sm:$0xff]
        %v268 = vld [vmem:[#allocation2 + $0x50] sm:$0xff]
        %v269 = vld [vmem:[#allocation2 + $0x58] sm:$0xff]
        %v270 = vld [vmem:[#allocation2 + $0x60] sm:$0xff]
        %v271 = vld [vmem:[#allocation2 + $0x68] sm:$0xff]
        %v272 = vld [vmem:[#allocation2 + $0x70] sm:$0xff]
        %v273 = vld [vmem:[#allocation2 + $0x78] sm:$0xff]
        %v274 = vld [vmem:[#allocation2 + $0x80] sm:$0xff]
        %v275 = vld [vmem:[#allocation2 + $0x88] sm:$0xff]
        %v276 = vld [vmem:[#allocation2 + $0x90] sm:$0xff]
        %v277 = vld [vmem:[#allocation2 + $0x98] sm:$0xff]
        %v278 = vld [vmem:[#allocation2 + $0xa0] sm:$0xff]
        %v279 = vld [vmem:[#allocation2 + $0xa8] sm:$0xff]
        %v280 = vld [vmem:[#allocation2 + $0xb0] sm:$0xff]
        %v281 = vld [vmem:[#allocation2 + $0xb8] sm:$0xff]
        %v282 = vld [vmem:[#allocation2 + $0xc0] sm:$0xff]
        %v283 = vld [vmem:[#allocation2 + $0xc8] sm:$0xff]
        %v284 = vld [vmem:[#allocation2 + $0xd0] sm:$0xff]
        %v285 = vld [vmem:[#allocation2 + $0xd8] sm:$0xff]
        %v286 = vld [vmem:[#allocation2 + $0xe0] sm:$0xff]
        %v287 = vld [vmem:[#allocation2 + $0xe8] sm:$0xff]
        %v288 = vld [vmem:[#allocation2 + $0xf0] sm:$0xff]
        %v289 = vld [vmem:[#allocation2 + $0xf8] sm:$0xff]
        %v290 = vld [vmem:[#allocation2 + $0x100] sm:$0xff]
        %v291 = vld [vmem:[#allocation2 + $0x108] sm:$0xff]
        %v292 = vld [vmem:[#allocation2 + $0x110] sm:$0xff]
        %v293 = vld [vmem:[#allocation2 + $0x118] sm:$0xff]
        %v294 = vld [vmem:[%s1] sm:$0xf]
        %vm295 = vcmask 31744
        %v297 = vsel %vm295, %v222, 0
        %v300 = vsel %vm295, %v223, 0
        %v303 = vsel %vm295, %v224, 0
        %v306 = vsel %vm295, %v225, 0
        %v309 = vsel %vm295, %v226, 0
        %v312 = vsel %vm295, %v227, 0
        %v315 = vsel %vm295, %v228, 0
        %v318 = vsel %vm295, %v229, 0
        %v321 = vsel %vm295, %v230, 0
        %v324 = vsel %vm295, %v231, 0
        %v327 = vsel %vm295, %v232, 0
        %v330 = vsel %vm295, %v233, 0
        %v333 = vsel %vm295, %v234, 0
        %v336 = vsel %vm295, %v235, 0
        %v339 = vsel %vm295, %v236, 0
        %v342 = vsel %vm295, %v237, 0
        %v345 = vsel %vm295, %v238, 0
        %v348 = vsel %vm295, %v239, 0
        %v351 = vsel %vm295, %v240, 0
        %v354 = vsel %vm295, %v241, 0
        %v357 = vsel %vm295, %v242, 0
        %v360 = vsel %vm295, %v243, 0
        %v363 = vsel %vm295, %v244, 0
        %v366 = vsel %vm295, %v245, 0
        %v369 = vsel %vm295, %v246, 0
        %v372 = vsel %vm295, %v247, 0
        %v375 = vsel %vm295, %v248, 0
        %v378 = vsel %vm295, %v249, 0
        %v381 = vsel %vm295, %v250, 0
        %v384 = vsel %vm295, %v251, 0
        %v387 = vsel %vm295, %v252, 0
        %v390 = vsel %vm295, %v253, 0
        %v393 = vsel %vm295, %v254, 0
        %v396 = vsel %vm295, %v255, 0
        %v399 = vsel %vm295, %v256, 0
        %v402 = vsel %vm295, %v257, 0
        %vm404 = vcmask 1043456
        %v406 = vsel %vm404, %v294, 0
        %408 = vmatprep.subr.mxu0 0.0
        %409 = vmatpush1.msra.mxu0 0.0
        %410 = vmatprep.subr.mxu0 0.0
        %411 = vmatpush1.msra.mxu0 0.0
        %412 = vmatprep.subr.mxu0 0.0
        %413 = vmatpush1.msra.mxu0 0.0
        %414 = vmatprep.subr.mxu0 0.0
        %415 = vmatpush1.msra.mxu0 0.0
        %416 = vmatprep.subr.mxu0 0.0
        %417 = vmatpush1.msra.mxu0 0.0
        %418 = vmatprep.subr.mxu0 0.0
        %419 = vmatpush1.msra.mxu0 0.0
        %420 = vmatprep.subr.mxu0 0.0
        %421 = vmatpush1.msra.mxu0 0.0
        %422 = vmatprep.subr.mxu0 0.0
        %423 = vmatpush1.msra.mxu0 0.0
        %424 = vmatprep.subr.mxu0 0.0
        %425 = vmatpush1.msra.mxu0 0.0
        %426 = vmatprep.subr.mxu0 0.0
        %427 = vmatpush1.msra.mxu0 0.0
        %428 = vmatprep.subr.mxu0 0.0
        %429 = vmatpush1.msra.mxu0 0.0
        %430 = vmatprep.subr.mxu0 0.0
        %431 = vmatpush1.msra.mxu0 0.0
        %432 = vmatprep.subr.mxu0 0.0
        %433 = vmatpush1.msra.mxu0 0.0
        %434 = vmatprep.subr.mxu0 0.0
        %435 = vmatpush1.msra.mxu0 0.0
        %436 = vmatprep.subr.mxu0 0.0
        %437 = vmatpush1.msra.mxu0 0.0
        %438 = vmatprep.subr.mxu0 0.0
        %439 = vmatpush1.msra.mxu0 %v406
        %440 = vmatprep.subr.mxu0 0.0
        %441 = vmatpush2.msra.mxu0 0.0
        %442 = vmatprep.subr.mxu0 0.0
        %443 = vmatpush2.msra.mxu0 0.0
        %444 = vmatprep.subr.mxu0 0.0
        %445 = vmatpush2.msra.mxu0 0.0
        %446 = vmatprep.subr.mxu0 0.0
        %447 = vmatpush2.msra.mxu0 0.0
        %448 = vmatprep.subr.mxu0 0.0
        %449 = vmatpush2.msra.mxu0 0.0
        %450 = vmatprep.subr.mxu0 0.0
        %451 = vmatpush2.msra.mxu0 0.0
        %452 = vmatprep.subr.mxu0 0.0
        %453 = vmatpush2.msra.mxu0 0.0
        %454 = vmatprep.subr.mxu0 0.0
        %455 = vmatpush2.msra.mxu0 0.0
        %456 = vmatprep.subr.mxu0 0.0
        %457 = vmatpush2.msra.mxu0 0.0
        %458 = vmatprep.subr.mxu0 0.0
        %459 = vmatpush2.msra.mxu0 0.0
        %460 = vmatprep.subr.mxu0 0.0
        %461 = vmatpush2.msra.mxu0 0.0
        %462 = vmatprep.subr.mxu0 0.0
        %463 = vmatpush2.msra.mxu0 0.0
        %464 = vmatprep.subr.mxu0 0.0
        %465 = vmatpush2.msra.mxu0 0.0
        %466 = vmatprep.subr.mxu0 0.0
        %467 = vmatpush2.msra.mxu0 0.0
        %468 = vmatprep.subr.mxu0 0.0
        %469 = vmatpush2.msra.mxu0 0.0
        %470 = vmatprep.subr.mxu0 0.0
        %471 = vmatpush2.msra.mxu0 0.0
        %472 = vmatprep.mubr.f32.mxu0 0.0
        %473 = vmatmul.mubr.f32.gmra.mxu0 %v297
        %v474 = vpop.f32.mrf.mxu0
        %v475 = vadd.f32 0.0, %v474
        %v476 = vpop.f32.mrf.mxu0
        %477 = vmatprep.mubr.f32.mxu0 0.0
        %478 = vmatmul.mubr.f32.gmra.mxu0 %v300
        %v479 = vpop.f32.mrf.mxu0
        %v480 = vadd.f32 0.0, %v479
        %v481 = vpop.f32.mrf.mxu0
        %482 = vmatprep.mubr.f32.mxu0 0.0
        %483 = vmatmul.mubr.f32.gmra.mxu0 %v303
        %v484 = vpop.f32.mrf.mxu0
        %v485 = vadd.f32 0.0, %v484
        %v486 = vpop.f32.mrf.mxu0
        %487 = vmatprep.mubr.f32.mxu0 0.0
        %488 = vmatmul.mubr.f32.gmra.mxu0 %v306
        %v489 = vpop.f32.mrf.mxu0
        %v490 = vadd.f32 0.0, %v489
        %v491 = vpop.f32.mrf.mxu0
        %492 = vmatprep.mubr.f32.mxu0 0.0
        %493 = vmatmul.mubr.f32.gmra.mxu0 %v309
        %v494 = vpop.f32.mrf.mxu0
        %v495 = vadd.f32 0.0, %v494
        %v496 = vpop.f32.mrf.mxu0
        %497 = vmatprep.mubr.f32.mxu0 0.0
        %498 = vmatmul.mubr.f32.gmra.mxu0 %v312
        %v499 = vpop.f32.mrf.mxu0
        %v500 = vadd.f32 0.0, %v499
        %v501 = vpop.f32.mrf.mxu0
        %502 = vmatprep.mubr.f32.mxu0 0.0
        %503 = vmatmul.mubr.f32.gmra.mxu0 %v315
        %v504 = vpop.f32.mrf.mxu0
        %v505 = vadd.f32 0.0, %v504
        %v506 = vpop.f32.mrf.mxu0
        %507 = vmatprep.mubr.f32.mxu0 0.0
        %508 = vmatmul.mubr.f32.gmra.mxu0 %v318
        %v509 = vpop.f32.mrf.mxu0
        %v510 = vadd.f32 0.0, %v509
        %v511 = vpop.f32.mrf.mxu0
        %512 = vmatprep.mubr.f32.mxu0 0.0
        %513 = vmatmul.mubr.f32.gmra.mxu0 %v321
        %v514 = vpop.f32.mrf.mxu0
        %v515 = vadd.f32 0.0, %v514
        %v516 = vpop.f32.mrf.mxu0
        %517 = vmatprep.mubr.f32.mxu0 0.0
        %518 = vmatmul.mubr.f32.gmra.mxu0 %v324
        %v519 = vpop.f32.mrf.mxu0
        %v520 = vadd.f32 0.0, %v519
        %v521 = vpop.f32.mrf.mxu0
        %522 = vmatprep.mubr.f32.mxu0 0.0
        %523 = vmatmul.mubr.f32.gmra.mxu0 %v327
        %v524 = vpop.f32.mrf.mxu0
        %v525 = vadd.f32 0.0, %v524
        %v526 = vpop.f32.mrf.mxu0
        %527 = vmatprep.mubr.f32.mxu0 0.0
        %528 = vmatmul.mubr.f32.gmra.mxu0 %v330
        %v529 = vpop.f32.mrf.mxu0
        %v530 = vadd.f32 0.0, %v529
        %v531 = vpop.f32.mrf.mxu0
        %532 = vmatprep.mubr.f32.mxu0 0.0
        %533 = vmatmul.mubr.f32.gmra.mxu0 %v333
        %v534 = vpop.f32.mrf.mxu0
        %v535 = vadd.f32 0.0, %v534
        %v536 = vpop.f32.mrf.mxu0
        %537 = vmatprep.mubr.f32.mxu0 0.0
        %538 = vmatmul.mubr.f32.gmra.mxu0 %v336
        %v539 = vpop.f32.mrf.mxu0
        %v540 = vadd.f32 0.0, %v539
        %v541 = vpop.f32.mrf.mxu0
        %542 = vmatprep.mubr.f32.mxu0 0.0
        %543 = vmatmul.mubr.f32.gmra.mxu0 %v339
        %v544 = vpop.f32.mrf.mxu0
        %v545 = vadd.f32 0.0, %v544
        %v546 = vpop.f32.mrf.mxu0
        %547 = vmatprep.mubr.f32.mxu0 0.0
        %548 = vmatmul.mubr.f32.gmra.mxu0 %v342
        %v549 = vpop.f32.mrf.mxu0
        %v550 = vadd.f32 0.0, %v549
        %v551 = vpop.f32.mrf.mxu0
        %552 = vmatprep.mubr.f32.mxu0 0.0
        %553 = vmatmul.mubr.f32.gmra.mxu0 %v345
        %v554 = vpop.f32.mrf.mxu0
        %v555 = vadd.f32 0.0, %v554
        %v556 = vpop.f32.mrf.mxu0
        %557 = vmatprep.mubr.f32.mxu0 0.0
        %558 = vmatmul.mubr.f32.gmra.mxu0 %v348
        %v559 = vpop.f32.mrf.mxu0
        %v560 = vadd.f32 0.0, %v559
        %v561 = vpop.f32.mrf.mxu0
        %562 = vmatprep.mubr.f32.mxu0 0.0
        %563 = vmatmul.mubr.f32.gmra.mxu0 %v351
        %v564 = vpop.f32.mrf.mxu0
        %v565 = vadd.f32 0.0, %v564
        %v566 = vpop.f32.mrf.mxu0
        %567 = vmatprep.mubr.f32.mxu0 0.0
        %568 = vmatmul.mubr.f32.gmra.mxu0 %v354
        %v569 = vpop.f32.mrf.mxu0
        %v570 = vadd.f32 0.0, %v569
        %v571 = vpop.f32.mrf.mxu0
        %572 = vmatprep.mubr.f32.mxu0 0.0
        %573 = vmatmul.mubr.f32.gmra.mxu0 %v357
        %v574 = vpop.f32.mrf.mxu0
        %v575 = vadd.f32 0.0, %v574
        %v576 = vpop.f32.mrf.mxu0
        %577 = vmatprep.mubr.f32.mxu0 0.0
        %578 = vmatmul.mubr.f32.gmra.mxu0 %v360
        %v579 = vpop.f32.mrf.mxu0
        %v580 = vadd.f32 0.0, %v579
        %v581 = vpop.f32.mrf.mxu0
        %582 = vmatprep.mubr.f32.mxu0 0.0
        %583 = vmatmul.mubr.f32.gmra.mxu0 %v363
        %v584 = vpop.f32.mrf.mxu0
        %v585 = vadd.f32 0.0, %v584
        %v586 = vpop.f32.mrf.mxu0
        %587 = vmatprep.mubr.f32.mxu0 0.0
        %588 = vmatmul.mubr.f32.gmra.mxu0 %v366
        %v589 = vpop.f32.mrf.mxu0
        %v590 = vadd.f32 0.0, %v589
        %v591 = vpop.f32.mrf.mxu0
        %592 = vmatprep.mubr.f32.mxu0 0.0
        %593 = vmatmul.mubr.f32.gmra.mxu0 %v369
        %v594 = vpop.f32.mrf.mxu0
        %v595 = vadd.f32 0.0, %v594
        %v596 = vpop.f32.mrf.mxu0
        %597 = vmatprep.mubr.f32.mxu0 0.0
        %598 = vmatmul.mubr.f32.gmra.mxu0 %v372
        %v599 = vpop.f32.mrf.mxu0
        %v600 = vadd.f32 0.0, %v599
        %v601 = vpop.f32.mrf.mxu0
        %602 = vmatprep.mubr.f32.mxu0 0.0
        %603 = vmatmul.mubr.f32.gmra.mxu0 %v375
        %v604 = vpop.f32.mrf.mxu0
        %v605 = vadd.f32 0.0, %v604
        %v606 = vpop.f32.mrf.mxu0
        %607 = vmatprep.mubr.f32.mxu0 0.0
        %608 = vmatmul.mubr.f32.gmra.mxu0 %v378
        %v609 = vpop.f32.mrf.mxu0
        %v610 = vadd.f32 0.0, %v609
        %v611 = vpop.f32.mrf.mxu0
        %612 = vmatprep.mubr.f32.mxu0 0.0
        %613 = vmatmul.mubr.f32.gmra.mxu0 %v381
        %v614 = vpop.f32.mrf.mxu0
        %v615 = vadd.f32 0.0, %v614
        %v616 = vpop.f32.mrf.mxu0
        %617 = vmatprep.mubr.f32.mxu0 0.0
        %618 = vmatmul.mubr.f32.gmra.mxu0 %v384
        %v619 = vpop.f32.mrf.mxu0
        %v620 = vadd.f32 0.0, %v619
        %v621 = vpop.f32.mrf.mxu0
        %622 = vmatprep.mubr.f32.mxu0 0.0
        %623 = vmatmul.mubr.f32.gmra.mxu0 %v387
        %v624 = vpop.f32.mrf.mxu0
        %v625 = vadd.f32 0.0, %v624
        %v626 = vpop.f32.mrf.mxu0
        %627 = vmatprep.mubr.f32.mxu0 0.0
        %628 = vmatmul.mubr.f32.gmra.mxu0 %v390
        %v629 = vpop.f32.mrf.mxu0
        %v630 = vadd.f32 0.0, %v629
        %v631 = vpop.f32.mrf.mxu0
        %632 = vmatprep.mubr.f32.mxu0 0.0
        %633 = vmatmul.mubr.f32.gmra.mxu0 %v393
        %v634 = vpop.f32.mrf.mxu0
        %v635 = vadd.f32 0.0, %v634
        %v636 = vpop.f32.mrf.mxu0
        %637 = vmatprep.mubr.f32.mxu0 0.0
        %638 = vmatmul.mubr.f32.gmra.mxu0 %v396
        %v639 = vpop.f32.mrf.mxu0
        %v640 = vadd.f32 0.0, %v639
        %v641 = vpop.f32.mrf.mxu0
        %642 = vmatprep.mubr.f32.mxu0 0.0
        %643 = vmatmul.mubr.f32.gmra.mxu0 %v399
        %v644 = vpop.f32.mrf.mxu0
        %v645 = vadd.f32 0.0, %v644
        %v646 = vpop.f32.mrf.mxu0
        %647 = vmatprep.mubr.f32.mxu0 0.0
        %648 = vmatmul.mubr.f32.gmra.mxu0 %v402
        %v649 = vpop.f32.mrf.mxu0
        %v650 = vadd.f32 0.0, %v649
        %v651 = vpop.f32.mrf.mxu0
        %652 = vdwg.mxu0
        %v653 = vadd.f32 %v258, %v475
        %v654 = vadd.f32 %v259, %v480
        %v655 = vadd.f32 %v260, %v485
        %v656 = vadd.f32 %v261, %v490
        %v657 = vadd.f32 %v262, %v495
        %v658 = vadd.f32 %v263, %v500
        %v659 = vadd.f32 %v264, %v505
        %v660 = vadd.f32 %v265, %v510
        %v661 = vadd.f32 %v266, %v515
        %v662 = vadd.f32 %v267, %v520
        %v663 = vadd.f32 %v268, %v525
        %v664 = vadd.f32 %v269, %v530
        %v665 = vadd.f32 %v270, %v535
        %v666 = vadd.f32 %v271, %v540
        %v667 = vadd.f32 %v272, %v545
        %v668 = vadd.f32 %v273, %v550
        %v669 = vadd.f32 %v274, %v555
        %v670 = vadd.f32 %v275, %v560
        %v671 = vadd.f32 %v276, %v565
        %v672 = vadd.f32 %v277, %v570
        %v673 = vadd.f32 %v278, %v575
        %v674 = vadd.f32 %v279, %v580
        %v675 = vadd.f32 %v280, %v585
        %v676 = vadd.f32 %v281, %v590
        %v677 = vadd.f32 %v282, %v595
        %v678 = vadd.f32 %v283, %v600
        %v679 = vadd.f32 %v284, %v605
        %v680 = vadd.f32 %v285, %v610
        %v681 = vadd.f32 %v286, %v615
        %v682 = vadd.f32 %v287, %v620
        %v683 = vadd.f32 %v288, %v625
        %v684 = vadd.f32 %v289, %v630
        %v685 = vadd.f32 %v290, %v635
        %v686 = vadd.f32 %v291, %v640
        %v687 = vadd.f32 %v292, %v645
        %v688 = vadd.f32 %v293, %v650
        %689 = vst [vmem:[#allocation2] sm:$0xff] %v653
        %690 = vst [vmem:[#allocation2 + $0x8] sm:$0xff] %v654
        %691 = vst [vmem:[#allocation2 + $0x10] sm:$0xff] %v655
        %692 = vst [vmem:[#allocation2 + $0x18] sm:$0xff] %v656
        %693 = vst [vmem:[#allocation2 + $0x20] sm:$0xff] %v657
        %694 = vst [vmem:[#allocation2 + $0x28] sm:$0xff] %v658
        %695 = vst [vmem:[#allocation2 + $0x30] sm:$0xff] %v659
        %696 = vst [vmem:[#allocation2 + $0x38] sm:$0xff] %v660
        %697 = vst [vmem:[#allocation2 + $0x40] sm:$0xff] %v661
        %698 = vst [vmem:[#allocation2 + $0x48] sm:$0xff] %v662
        %699 = vst [vmem:[#allocation2 + $0x50] sm:$0xff] %v663
        %700 = vst [vmem:[#allocation2 + $0x58] sm:$0xff] %v664
        %701 = vst [vmem:[#allocation2 + $0x60] sm:$0xff] %v665
        %702 = vst [vmem:[#allocation2 + $0x68] sm:$0xff] %v666
        %703 = vst [vmem:[#allocation2 + $0x70] sm:$0xff] %v667
        %704 = vst [vmem:[#allocation2 + $0x78] sm:$0xff] %v668
        %705 = vst [vmem:[#allocation2 + $0x80] sm:$0xff] %v669
        %706 = vst [vmem:[#allocation2 + $0x88] sm:$0xff] %v670
        %707 = vst [vmem:[#allocation2 + $0x90] sm:$0xff] %v671
        %708 = vst [vmem:[#allocation2 + $0x98] sm:$0xff] %v672
        %709 = vst [vmem:[#allocation2 + $0xa0] sm:$0xff] %v673
        %710 = vst [vmem:[#allocation2 + $0xa8] sm:$0xff] %v674
        %711 = vst [vmem:[#allocation2 + $0xb0] sm:$0xff] %v675
        %712 = vst [vmem:[#allocation2 + $0xb8] sm:$0xff] %v676
        %713 = vst [vmem:[#allocation2 + $0xc0] sm:$0xff] %v677
        %714 = vst [vmem:[#allocation2 + $0xc8] sm:$0xff] %v678
        %715 = vst [vmem:[#allocation2 + $0xd0] sm:$0xff] %v679
        %716 = vst [vmem:[#allocation2 + $0xd8] sm:$0xff] %v680
        %717 = vst [vmem:[#allocation2 + $0xe0] sm:$0xff] %v681
        %718 = vst [vmem:[#allocation2 + $0xe8] sm:$0xff] %v682
        %719 = vst [vmem:[#allocation2 + $0xf0] sm:$0xff] %v683
        %720 = vst [vmem:[#allocation2 + $0xf8] sm:$0xff] %v684
        %721 = vst [vmem:[#allocation2 + $0x100] sm:$0xff] %v685
        %722 = vst [vmem:[#allocation2 + $0x108] sm:$0xff] %v686
        %723 = vst [vmem:[#allocation2 + $0x110] sm:$0xff] %v687
        %724 = vst [vmem:[#allocation2 + $0x118] sm:$0xff] %v688
        %s725 = sadd.s32 %s184, 1
        %s726 = scalar_lea.vmem %s182, %s725
        %v727 = vld [vmem:[%s726] sm:$0xff]
        %v728 = vld [vmem:[%s726 + $0x8] sm:$0xff]
        %v729 = vld [vmem:[%s726 + $0x10] sm:$0xff]
        %v730 = vld [vmem:[%s726 + $0x18] sm:$0xff]
        %v731 = vld [vmem:[%s726 + $0x20] sm:$0xff]
        %v732 = vld [vmem:[%s726 + $0x28] sm:$0xff]
        %v733 = vld [vmem:[%s726 + $0x30] sm:$0xff]
        %v734 = vld [vmem:[%s726 + $0x38] sm:$0xff]
        %v735 = vld [vmem:[%s726 + $0x40] sm:$0xff]
        %v736 = vld [vmem:[%s726 + $0x48] sm:$0xff]
        %v737 = vld [vmem:[%s726 + $0x50] sm:$0xff]
        %v738 = vld [vmem:[%s726 + $0x58] sm:$0xff]
        %v739 = vld [vmem:[%s726 + $0x60] sm:$0xff]
        %v740 = vld [vmem:[%s726 + $0x68] sm:$0xff]
        %v741 = vld [vmem:[%s726 + $0x70] sm:$0xff]
        %v742 = vld [vmem:[%s726 + $0x78] sm:$0xff]
        %v743 = vld [vmem:[%s726 + $0x80] sm:$0xff]
        %v744 = vld [vmem:[%s726 + $0x88] sm:$0xff]
        %v745 = vld [vmem:[%s726 + $0x90] sm:$0xff]
        %v746 = vld [vmem:[%s726 + $0x98] sm:$0xff]
        %v747 = vld [vmem:[%s726 + $0xa0] sm:$0xff]
        %v748 = vld [vmem:[%s726 + $0xa8] sm:$0xff]
        %v749 = vld [vmem:[%s726 + $0xb0] sm:$0xff]
        %v750 = vld [vmem:[%s726 + $0xb8] sm:$0xff]
        %v751 = vld [vmem:[%s726 + $0xc0] sm:$0xff]
        %v752 = vld [vmem:[%s726 + $0xc8] sm:$0xff]
        %v753 = vld [vmem:[%s726 + $0xd0] sm:$0xff]
        %v754 = vld [vmem:[%s726 + $0xd8] sm:$0xff]
        %v755 = vld [vmem:[%s726 + $0xe0] sm:$0xff]
        %v756 = vld [vmem:[%s726 + $0xe8] sm:$0xff]
        %v757 = vld [vmem:[%s726 + $0xf0] sm:$0xff]
        %v758 = vld [vmem:[%s726 + $0xf8] sm:$0xff]
        %v759 = vld [vmem:[%s726 + $0x100] sm:$0xff]
        %v760 = vld [vmem:[%s726 + $0x108] sm:$0xff]
        %v761 = vld [vmem:[%s726 + $0x110] sm:$0xff]
        %v762 = vld [vmem:[%s726 + $0x118] sm:$0xff]
        %v763 = vld [vmem:[#allocation2] sm:$0xff]
        %v764 = vld [vmem:[#allocation2 + $0x8] sm:$0xff]
        %v765 = vld [vmem:[#allocation2 + $0x10] sm:$0xff]
        %v766 = vld [vmem:[#allocation2 + $0x18] sm:$0xff]
        %v767 = vld [vmem:[#allocation2 + $0x20] sm:$0xff]
        %v768 = vld [vmem:[#allocation2 + $0x28] sm:$0xff]
        %v769 = vld [vmem:[#allocation2 + $0x30] sm:$0xff]
        %v770 = vld [vmem:[#allocation2 + $0x38] sm:$0xff]
        %v771 = vld [vmem:[#allocation2 + $0x40] sm:$0xff]
        %v772 = vld [vmem:[#allocation2 + $0x48] sm:$0xff]
        %v773 = vld [vmem:[#allocation2 + $0x50] sm:$0xff]
        %v774 = vld [vmem:[#allocation2 + $0x58] sm:$0xff]
        %v775 = vld [vmem:[#allocation2 + $0x60] sm:$0xff]
        %v776 = vld [vmem:[#allocation2 + $0x68] sm:$0xff]
        %v777 = vld [vmem:[#allocation2 + $0x70] sm:$0xff]
        %v778 = vld [vmem:[#allocation2 + $0x78] sm:$0xff]
        %v779 = vld [vmem:[#allocation2 + $0x80] sm:$0xff]
        %v780 = vld [vmem:[#allocation2 + $0x88] sm:$0xff]
        %v781 = vld [vmem:[#allocation2 + $0x90] sm:$0xff]
        %v782 = vld [vmem:[#allocation2 + $0x98] sm:$0xff]
        %v783 = vld [vmem:[#allocation2 + $0xa0] sm:$0xff]
        %v784 = vld [vmem:[#allocation2 + $0xa8] sm:$0xff]
        %v785 = vld [vmem:[#allocation2 + $0xb0] sm:$0xff]
        %v786 = vld [vmem:[#allocation2 + $0xb8] sm:$0xff]
        %v787 = vld [vmem:[#allocation2 + $0xc0] sm:$0xff]
        %v788 = vld [vmem:[#allocation2 + $0xc8] sm:$0xff]
        %v789 = vld [vmem:[#allocation2 + $0xd0] sm:$0xff]
        %v790 = vld [vmem:[#allocation2 + $0xd8] sm:$0xff]
        %v791 = vld [vmem:[#allocation2 + $0xe0] sm:$0xff]
        %v792 = vld [vmem:[#allocation2 + $0xe8] sm:$0xff]
        %v793 = vld [vmem:[#allocation2 + $0xf0] sm:$0xff]
        %v794 = vld [vmem:[#allocation2 + $0xf8] sm:$0xff]
        %v795 = vld [vmem:[#allocation2 + $0x100] sm:$0xff]
        %v796 = vld [vmem:[#allocation2 + $0x108] sm:$0xff]
        %v797 = vld [vmem:[#allocation2 + $0x110] sm:$0xff]
        %v798 = vld [vmem:[#allocation2 + $0x118] sm:$0xff]
        %s799 = scalar_lea.vmem %s1, 4
        %v800 = vld [vmem:[%s799] sm:$0xf]
        %v802 = vsel %vm295, %v727, 0
        %v805 = vsel %vm295, %v728, 0
        %v808 = vsel %vm295, %v729, 0
        %v811 = vsel %vm295, %v730, 0
        %v814 = vsel %vm295, %v731, 0
        %v817 = vsel %vm295, %v732, 0
        %v820 = vsel %vm295, %v733, 0
        %v823 = vsel %vm295, %v734, 0
        %v826 = vsel %vm295, %v735, 0
        %v829 = vsel %vm295, %v736, 0
        %v832 = vsel %vm295, %v737, 0
        %v835 = vsel %vm295, %v738, 0
        %v838 = vsel %vm295, %v739, 0
        %v841 = vsel %vm295, %v740, 0
        %v844 = vsel %vm295, %v741, 0
        %v847 = vsel %vm295, %v742, 0
        %v850 = vsel %vm295, %v743, 0
        %v853 = vsel %vm295, %v744, 0
        %v856 = vsel %vm295, %v745, 0
        %v859 = vsel %vm295, %v746, 0
        %v862 = vsel %vm295, %v747, 0
        %v865 = vsel %vm295, %v748, 0
        %v868 = vsel %vm295, %v749, 0
        %v871 = vsel %vm295, %v750, 0
        %v874 = vsel %vm295, %v751, 0
        %v877 = vsel %vm295, %v752, 0
        %v880 = vsel %vm295, %v753, 0
        %v883 = vsel %vm295, %v754, 0
        %v886 = vsel %vm295, %v755, 0
        %v889 = vsel %vm295, %v756, 0
        %v892 = vsel %vm295, %v757, 0
        %v895 = vsel %vm295, %v758, 0
        %v898 = vsel %vm295, %v759, 0
        %v901 = vsel %vm295, %v760, 0
        %v904 = vsel %vm295, %v761, 0
        %v907 = vsel %vm295, %v762, 0
        %v910 = vsel %vm404, %v800, 0
        %912 = vmatprep.subr.mxu0 0.0
        %913 = vmatpush1.msra.mxu0 0.0
        %914 = vmatprep.subr.mxu0 0.0
        %915 = vmatpush1.msra.mxu0 0.0
        %916 = vmatprep.subr.mxu0 0.0
        %917 = vmatpush1.msra.mxu0 0.0
        %918 = vmatprep.subr.mxu0 0.0
        %919 = vmatpush1.msra.mxu0 0.0
        %920 = vmatprep.subr.mxu0 0.0
        %921 = vmatpush1.msra.mxu0 0.0
        %922 = vmatprep.subr.mxu0 0.0
        %923 = vmatpush1.msra.mxu0 0.0
        %924 = vmatprep.subr.mxu0 0.0
        %925 = vmatpush1.msra.mxu0 0.0
        %926 = vmatprep.subr.mxu0 0.0
        %927 = vmatpush1.msra.mxu0 0.0
        %928 = vmatprep.subr.mxu0 0.0
        %929 = vmatpush1.msra.mxu0 0.0
        %930 = vmatprep.subr.mxu0 0.0
        %931 = vmatpush1.msra.mxu0 0.0
        %932 = vmatprep.subr.mxu0 0.0
        %933 = vmatpush1.msra.mxu0 0.0
        %934 = vmatprep.subr.mxu0 0.0
        %935 = vmatpush1.msra.mxu0 0.0
        %936 = vmatprep.subr.mxu0 0.0
        %937 = vmatpush1.msra.mxu0 0.0
        %938 = vmatprep.subr.mxu0 0.0
        %939 = vmatpush1.msra.mxu0 0.0
        %940 = vmatprep.subr.mxu0 0.0
        %941 = vmatpush1.msra.mxu0 0.0
        %942 = vmatprep.subr.mxu0 0.0
        %943 = vmatpush1.msra.mxu0 %v910
        %944 = vmatprep.subr.mxu0 0.0
        %945 = vmatpush2.msra.mxu0 0.0
        %946 = vmatprep.subr.mxu0 0.0
        %947 = vmatpush2.msra.mxu0 0.0
        %948 = vmatprep.subr.mxu0 0.0
        %949 = vmatpush2.msra.mxu0 0.0
        %950 = vmatprep.subr.mxu0 0.0
        %951 = vmatpush2.msra.mxu0 0.0
        %952 = vmatprep.subr.mxu0 0.0
        %953 = vmatpush2.msra.mxu0 0.0
        %954 = vmatprep.subr.mxu0 0.0
        %955 = vmatpush2.msra.mxu0 0.0
        %956 = vmatprep.subr.mxu0 0.0
        %957 = vmatpush2.msra.mxu0 0.0
        %958 = vmatprep.subr.mxu0 0.0
        %959 = vmatpush2.msra.mxu0 0.0
        %960 = vmatprep.subr.mxu0 0.0
        %961 = vmatpush2.msra.mxu0 0.0
        %962 = vmatprep.subr.mxu0 0.0
        %963 = vmatpush2.msra.mxu0 0.0
        %964 = vmatprep.subr.mxu0 0.0
        %965 = vmatpush2.msra.mxu0 0.0
        %966 = vmatprep.subr.mxu0 0.0
        %967 = vmatpush2.msra.mxu0 0.0
        %968 = vmatprep.subr.mxu0 0.0
        %969 = vmatpush2.msra.mxu0 0.0
        %970 = vmatprep.subr.mxu0 0.0
        %971 = vmatpush2.msra.mxu0 0.0
        %972 = vmatprep.subr.mxu0 0.0
        %973 = vmatpush2.msra.mxu0 0.0
        %974 = vmatprep.subr.mxu0 0.0
        %975 = vmatpush2.msra.mxu0 0.0
        %976 = vmatprep.mubr.f32.mxu0 0.0
        %977 = vmatmul.mubr.f32.gmra.mxu0 %v802
        %v978 = vpop.f32.mrf.mxu0
        %v979 = vadd.f32 0.0, %v978
        %v980 = vpop.f32.mrf.mxu0
        %981 = vmatprep.mubr.f32.mxu0 0.0
        %982 = vmatmul.mubr.f32.gmra.mxu0 %v805
        %v983 = vpop.f32.mrf.mxu0
        %v984 = vadd.f32 0.0, %v983
        %v985 = vpop.f32.mrf.mxu0
        %986 = vmatprep.mubr.f32.mxu0 0.0
        %987 = vmatmul.mubr.f32.gmra.mxu0 %v808
        %v988 = vpop.f32.mrf.mxu0
        %v989 = vadd.f32 0.0, %v988
        %v990 = vpop.f32.mrf.mxu0
        %991 = vmatprep.mubr.f32.mxu0 0.0
        %992 = vmatmul.mubr.f32.gmra.mxu0 %v811
        %v993 = vpop.f32.mrf.mxu0
        %v994 = vadd.f32 0.0, %v993
        %v995 = vpop.f32.mrf.mxu0
        %996 = vmatprep.mubr.f32.mxu0 0.0
        %997 = vmatmul.mubr.f32.gmra.mxu0 %v814
        %v998 = vpop.f32.mrf.mxu0
        %v999 = vadd.f32 0.0, %v998
        %v1000 = vpop.f32.mrf.mxu0
        %1001 = vmatprep.mubr.f32.mxu0 0.0
        %1002 = vmatmul.mubr.f32.gmra.mxu0 %v817
        %v1003 = vpop.f32.mrf.mxu0
        %v1004 = vadd.f32 0.0, %v1003
        %v1005 = vpop.f32.mrf.mxu0
        %1006 = vmatprep.mubr.f32.mxu0 0.0
        %1007 = vmatmul.mubr.f32.gmra.mxu0 %v820
        %v1008 = vpop.f32.mrf.mxu0
        %v1009 = vadd.f32 0.0, %v1008
        %v1010 = vpop.f32.mrf.mxu0
        %1011 = vmatprep.mubr.f32.mxu0 0.0
        %1012 = vmatmul.mubr.f32.gmra.mxu0 %v823
        %v1013 = vpop.f32.mrf.mxu0
        %v1014 = vadd.f32 0.0, %v1013
        %v1015 = vpop.f32.mrf.mxu0
        %1016 = vmatprep.mubr.f32.mxu0 0.0
        %1017 = vmatmul.mubr.f32.gmra.mxu0 %v826
        %v1018 = vpop.f32.mrf.mxu0
        %v1019 = vadd.f32 0.0, %v1018
        %v1020 = vpop.f32.mrf.mxu0
        %1021 = vmatprep.mubr.f32.mxu0 0.0
        %1022 = vmatmul.mubr.f32.gmra.mxu0 %v829
        %v1023 = vpop.f32.mrf.mxu0
        %v1024 = vadd.f32 0.0, %v1023
        %v1025 = vpop.f32.mrf.mxu0
        %1026 = vmatprep.mubr.f32.mxu0 0.0
        %1027 = vmatmul.mubr.f32.gmra.mxu0 %v832
        %v1028 = vpop.f32.mrf.mxu0
        %v1029 = vadd.f32 0.0, %v1028
        %v1030 = vpop.f32.mrf.mxu0
        %1031 = vmatprep.mubr.f32.mxu0 0.0
        %1032 = vmatmul.mubr.f32.gmra.mxu0 %v835
        %v1033 = vpop.f32.mrf.mxu0
        %v1034 = vadd.f32 0.0, %v1033
        %v1035 = vpop.f32.mrf.mxu0
        %1036 = vmatprep.mubr.f32.mxu0 0.0
        %1037 = vmatmul.mubr.f32.gmra.mxu0 %v838
        %v1038 = vpop.f32.mrf.mxu0
        %v1039 = vadd.f32 0.0, %v1038
        %v1040 = vpop.f32.mrf.mxu0
        %1041 = vmatprep.mubr.f32.mxu0 0.0
        %1042 = vmatmul.mubr.f32.gmra.mxu0 %v841
        %v1043 = vpop.f32.mrf.mxu0
        %v1044 = vadd.f32 0.0, %v1043
        %v1045 = vpop.f32.mrf.mxu0
        %1046 = vmatprep.mubr.f32.mxu0 0.0
        %1047 = vmatmul.mubr.f32.gmra.mxu0 %v844
        %v1048 = vpop.f32.mrf.mxu0
        %v1049 = vadd.f32 0.0, %v1048
        %v1050 = vpop.f32.mrf.mxu0
        %1051 = vmatprep.mubr.f32.mxu0 0.0
        %1052 = vmatmul.mubr.f32.gmra.mxu0 %v847
        %v1053 = vpop.f32.mrf.mxu0
        %v1054 = vadd.f32 0.0, %v1053
        %v1055 = vpop.f32.mrf.mxu0
        %1056 = vmatprep.mubr.f32.mxu0 0.0
        %1057 = vmatmul.mubr.f32.gmra.mxu0 %v850
        %v1058 = vpop.f32.mrf.mxu0
        %v1059 = vadd.f32 0.0, %v1058
        %v1060 = vpop.f32.mrf.mxu0
        %1061 = vmatprep.mubr.f32.mxu0 0.0
        %1062 = vmatmul.mubr.f32.gmra.mxu0 %v853
        %v1063 = vpop.f32.mrf.mxu0
        %v1064 = vadd.f32 0.0, %v1063
        %v1065 = vpop.f32.mrf.mxu0
        %1066 = vmatprep.mubr.f32.mxu0 0.0
        %1067 = vmatmul.mubr.f32.gmra.mxu0 %v856
        %v1068 = vpop.f32.mrf.mxu0
        %v1069 = vadd.f32 0.0, %v1068
        %v1070 = vpop.f32.mrf.mxu0
        %1071 = vmatprep.mubr.f32.mxu0 0.0
        %1072 = vmatmul.mubr.f32.gmra.mxu0 %v859
        %v1073 = vpop.f32.mrf.mxu0
        %v1074 = vadd.f32 0.0, %v1073
        %v1075 = vpop.f32.mrf.mxu0
        %1076 = vmatprep.mubr.f32.mxu0 0.0
        %1077 = vmatmul.mubr.f32.gmra.mxu0 %v862
        %v1078 = vpop.f32.mrf.mxu0
        %v1079 = vadd.f32 0.0, %v1078
        %v1080 = vpop.f32.mrf.mxu0
        %1081 = vmatprep.mubr.f32.mxu0 0.0
        %1082 = vmatmul.mubr.f32.gmra.mxu0 %v865
        %v1083 = vpop.f32.mrf.mxu0
        %v1084 = vadd.f32 0.0, %v1083
        %v1085 = vpop.f32.mrf.mxu0
        %1086 = vmatprep.mubr.f32.mxu0 0.0
        %1087 = vmatmul.mubr.f32.gmra.mxu0 %v868
        %v1088 = vpop.f32.mrf.mxu0
        %v1089 = vadd.f32 0.0, %v1088
        %v1090 = vpop.f32.mrf.mxu0
        %1091 = vmatprep.mubr.f32.mxu0 0.0
        %1092 = vmatmul.mubr.f32.gmra.mxu0 %v871
        %v1093 = vpop.f32.mrf.mxu0
        %v1094 = vadd.f32 0.0, %v1093
        %v1095 = vpop.f32.mrf.mxu0
        %1096 = vmatprep.mubr.f32.mxu0 0.0
        %1097 = vmatmul.mubr.f32.gmra.mxu0 %v874
        %v1098 = vpop.f32.mrf.mxu0
        %v1099 = vadd.f32 0.0, %v1098
        %v1100 = vpop.f32.mrf.mxu0
        %1101 = vmatprep.mubr.f32.mxu0 0.0
        %1102 = vmatmul.mubr.f32.gmra.mxu0 %v877
        %v1103 = vpop.f32.mrf.mxu0
        %v1104 = vadd.f32 0.0, %v1103
        %v1105 = vpop.f32.mrf.mxu0
        %1106 = vmatprep.mubr.f32.mxu0 0.0
        %1107 = vmatmul.mubr.f32.gmra.mxu0 %v880
        %v1108 = vpop.f32.mrf.mxu0
        %v1109 = vadd.f32 0.0, %v1108
        %v1110 = vpop.f32.mrf.mxu0
        %1111 = vmatprep.mubr.f32.mxu0 0.0
        %1112 = vmatmul.mubr.f32.gmra.mxu0 %v883
        %v1113 = vpop.f32.mrf.mxu0
        %v1114 = vadd.f32 0.0, %v1113
        %v1115 = vpop.f32.mrf.mxu0
        %1116 = vmatprep.mubr.f32.mxu0 0.0
        %1117 = vmatmul.mubr.f32.gmra.mxu0 %v886
        %v1118 = vpop.f32.mrf.mxu0
        %v1119 = vadd.f32 0.0, %v1118
        %v1120 = vpop.f32.mrf.mxu0
        %1121 = vmatprep.mubr.f32.mxu0 0.0
        %1122 = vmatmul.mubr.f32.gmra.mxu0 %v889
        %v1123 = vpop.f32.mrf.mxu0
        %v1124 = vadd.f32 0.0, %v1123
        %v1125 = vpop.f32.mrf.mxu0
        %1126 = vmatprep.mubr.f32.mxu0 0.0
        %1127 = vmatmul.mubr.f32.gmra.mxu0 %v892
        %v1128 = vpop.f32.mrf.mxu0
        %v1129 = vadd.f32 0.0, %v1128
        %v1130 = vpop.f32.mrf.mxu0
        %1131 = vmatprep.mubr.f32.mxu0 0.0
        %1132 = vmatmul.mubr.f32.gmra.mxu0 %v895
        %v1133 = vpop.f32.mrf.mxu0
        %v1134 = vadd.f32 0.0, %v1133
        %v1135 = vpop.f32.mrf.mxu0
        %1136 = vmatprep.mubr.f32.mxu0 0.0
        %1137 = vmatmul.mubr.f32.gmra.mxu0 %v898
        %v1138 = vpop.f32.mrf.mxu0
        %v1139 = vadd.f32 0.0, %v1138
        %v1140 = vpop.f32.mrf.mxu0
        %1141 = vmatprep.mubr.f32.mxu0 0.0
        %1142 = vmatmul.mubr.f32.gmra.mxu0 %v901
        %v1143 = vpop.f32.mrf.mxu0
        %v1144 = vadd.f32 0.0, %v1143
        %v1145 = vpop.f32.mrf.mxu0
        %1146 = vmatprep.mubr.f32.mxu0 0.0
        %1147 = vmatmul.mubr.f32.gmra.mxu0 %v904
        %v1148 = vpop.f32.mrf.mxu0
        %v1149 = vadd.f32 0.0, %v1148
        %v1150 = vpop.f32.mrf.mxu0
        %1151 = vmatprep.mubr.f32.mxu0 0.0
        %1152 = vmatmul.mubr.f32.gmra.mxu0 %v907
        %v1153 = vpop.f32.mrf.mxu0
        %v1154 = vadd.f32 0.0, %v1153
        %v1155 = vpop.f32.mrf.mxu0
        %1156 = vdwg.mxu0
        %v1157 = vadd.f32 %v763, %v979
        %v1158 = vadd.f32 %v764, %v984
        %v1159 = vadd.f32 %v765, %v989
        %v1160 = vadd.f32 %v766, %v994
        %v1161 = vadd.f32 %v767, %v999
        %v1162 = vadd.f32 %v768, %v1004
        %v1163 = vadd.f32 %v769, %v1009
        %v1164 = vadd.f32 %v770, %v1014
        %v1165 = vadd.f32 %v771, %v1019
        %v1166 = vadd.f32 %v772, %v1024
        %v1167 = vadd.f32 %v773, %v1029
        %v1168 = vadd.f32 %v774, %v1034
        %v1169 = vadd.f32 %v775, %v1039
        %v1170 = vadd.f32 %v776, %v1044
        %v1171 = vadd.f32 %v777, %v1049
        %v1172 = vadd.f32 %v778, %v1054
        %v1173 = vadd.f32 %v779, %v1059
        %v1174 = vadd.f32 %v780, %v1064
        %v1175 = vadd.f32 %v781, %v1069
        %v1176 = vadd.f32 %v782, %v1074
        %v1177 = vadd.f32 %v783, %v1079
        %v1178 = vadd.f32 %v784, %v1084
        %v1179 = vadd.f32 %v785, %v1089
        %v1180 = vadd.f32 %v786, %v1094
        %v1181 = vadd.f32 %v787, %v1099
        %v1182 = vadd.f32 %v788, %v1104
        %v1183 = vadd.f32 %v789, %v1109
        %v1184 = vadd.f32 %v790, %v1114
        %v1185 = vadd.f32 %v791, %v1119
        %v1186 = vadd.f32 %v792, %v1124
        %v1187 = vadd.f32 %v793, %v1129
        %v1188 = vadd.f32 %v794, %v1134
        %v1189 = vadd.f32 %v795, %v1139
        %v1190 = vadd.f32 %v796, %v1144
        %v1191 = vadd.f32 %v797, %v1149
        %v1192 = vadd.f32 %v798, %v1154
        %1193 = vst [vmem:[#allocation2] sm:$0xff] %v1157
        %1194 = vst [vmem:[#allocation2 + $0x8] sm:$0xff] %v1158
        %1195 = vst [vmem:[#allocation2 + $0x10] sm:$0xff] %v1159
        %1196 = vst [vmem:[#allocation2 + $0x18] sm:$0xff] %v1160
        %1197 = vst [vmem:[#allocation2 + $0x20] sm:$0xff] %v1161
        %1198 = vst [vmem:[#allocation2 + $0x28] sm:$0xff] %v1162
        %1199 = vst [vmem:[#allocation2 + $0x30] sm:$0xff] %v1163
        %1200 = vst [vmem:[#allocation2 + $0x38] sm:$0xff] %v1164
        %1201 = vst [vmem:[#allocation2 + $0x40] sm:$0xff] %v1165
        %1202 = vst [vmem:[#allocation2 + $0x48] sm:$0xff] %v1166
        %1203 = vst [vmem:[#allocation2 + $0x50] sm:$0xff] %v1167
        %1204 = vst [vmem:[#allocation2 + $0x58] sm:$0xff] %v1168
        %1205 = vst [vmem:[#allocation2 + $0x60] sm:$0xff] %v1169
        %1206 = vst [vmem:[#allocation2 + $0x68] sm:$0xff] %v1170
        %1207 = vst [vmem:[#allocation2 + $0x70] sm:$0xff] %v1171
        %1208 = vst [vmem:[#allocation2 + $0x78] sm:$0xff] %v1172
        %1209 = vst [vmem:[#allocation2 + $0x80] sm:$0xff] %v1173
        %1210 = vst [vmem:[#allocation2 + $0x88] sm:$0xff] %v1174
        %1211 = vst [vmem:[#allocation2 + $0x90] sm:$0xff] %v1175
        %1212 = vst [vmem:[#allocation2 + $0x98] sm:$0xff] %v1176
        %1213 = vst [vmem:[#allocation2 + $0xa0] sm:$0xff] %v1177
        %1214 = vst [vmem:[#allocation2 + $0xa8] sm:$0xff] %v1178
        %1215 = vst [vmem:[#allocation2 + $0xb0] sm:$0xff] %v1179
        %1216 = vst [vmem:[#allocation2 + $0xb8] sm:$0xff] %v1180
        %1217 = vst [vmem:[#allocation2 + $0xc0] sm:$0xff] %v1181
        %1218 = vst [vmem:[#allocation2 + $0xc8] sm:$0xff] %v1182
        %1219 = vst [vmem:[#allocation2 + $0xd0] sm:$0xff] %v1183
        %1220 = vst [vmem:[#allocation2 + $0xd8] sm:$0xff] %v1184
        %1221 = vst [vmem:[#allocation2 + $0xe0] sm:$0xff] %v1185
        %1222 = vst [vmem:[#allocation2 + $0xe8] sm:$0xff] %v1186
        %1223 = vst [vmem:[#allocation2 + $0xf0] sm:$0xff] %v1187
        %1224 = vst [vmem:[#allocation2 + $0xf8] sm:$0xff] %v1188
        %1225 = vst [vmem:[#allocation2 + $0x100] sm:$0xff] %v1189
        %1226 = vst [vmem:[#allocation2 + $0x108] sm:$0xff] %v1190
        %1227 = vst [vmem:[#allocation2 + $0x110] sm:$0xff] %v1191
        %1228 = vst [vmem:[#allocation2 + $0x118] sm:$0xff] %v1192
        %s1229 = sadd.s32 %s184, 2
        %s1230 = scalar_lea.vmem %s182, %s1229
        %v1231 = vld [vmem:[%s1230] sm:$0xff]
        %v1232 = vld [vmem:[%s1230 + $0x8] sm:$0xff]
        %v1233 = vld [vmem:[%s1230 + $0x10] sm:$0xff]
        %v1234 = vld [vmem:[%s1230 + $0x18] sm:$0xff]
        %v1235 = vld [vmem:[%s1230 + $0x20] sm:$0xff]
        %v1236 = vld [vmem:[%s1230 + $0x28] sm:$0xff]
        %v1237 = vld [vmem:[%s1230 + $0x30] sm:$0xff]
        %v1238 = vld [vmem:[%s1230 + $0x38] sm:$0xff]
        %v1239 = vld [vmem:[%s1230 + $0x40] sm:$0xff]
        %v1240 = vld [vmem:[%s1230 + $0x48] sm:$0xff]
        %v1241 = vld [vmem:[%s1230 + $0x50] sm:$0xff]
        %v1242 = vld [vmem:[%s1230 + $0x58] sm:$0xff]
        %v1243 = vld [vmem:[%s1230 + $0x60] sm:$0xff]
        %v1244 = vld [vmem:[%s1230 + $0x68] sm:$0xff]
        %v1245 = vld [vmem:[%s1230 + $0x70] sm:$0xff]
        %v1246 = vld [vmem:[%s1230 + $0x78] sm:$0xff]
        %v1247 = vld [vmem:[%s1230 + $0x80] sm:$0xff]
        %v1248 = vld [vmem:[%s1230 + $0x88] sm:$0xff]
        %v1249 = vld [vmem:[%s1230 + $0x90] sm:$0xff]
        %v1250 = vld [vmem:[%s1230 + $0x98] sm:$0xff]
        %v1251 = vld [vmem:[%s1230 + $0xa0] sm:$0xff]
        %v1252 = vld [vmem:[%s1230 + $0xa8] sm:$0xff]
        %v1253 = vld [vmem:[%s1230 + $0xb0] sm:$0xff]
        %v1254 = vld [vmem:[%s1230 + $0xb8] sm:$0xff]
        %v1255 = vld [vmem:[%s1230 + $0xc0] sm:$0xff]
        %v1256 = vld [vmem:[%s1230 + $0xc8] sm:$0xff]
        %v1257 = vld [vmem:[%s1230 + $0xd0] sm:$0xff]
        %v1258 = vld [vmem:[%s1230 + $0xd8] sm:$0xff]
        %v1259 = vld [vmem:[%s1230 + $0xe0] sm:$0xff]
        %v1260 = vld [vmem:[%s1230 + $0xe8] sm:$0xff]
        %v1261 = vld [vmem:[%s1230 + $0xf0] sm:$0xff]
        %v1262 = vld [vmem:[%s1230 + $0xf8] sm:$0xff]
        %v1263 = vld [vmem:[%s1230 + $0x100] sm:$0xff]
        %v1264 = vld [vmem:[%s1230 + $0x108] sm:$0xff]
        %v1265 = vld [vmem:[%s1230 + $0x110] sm:$0xff]
        %v1266 = vld [vmem:[%s1230 + $0x118] sm:$0xff]
        %v1267 = vld [vmem:[#allocation2] sm:$0xff]
        %v1268 = vld [vmem:[#allocation2 + $0x8] sm:$0xff]
        %v1269 = vld [vmem:[#allocation2 + $0x10] sm:$0xff]
        %v1270 = vld [vmem:[#allocation2 + $0x18] sm:$0xff]
        %v1271 = vld [vmem:[#allocation2 + $0x20] sm:$0xff]
        %v1272 = vld [vmem:[#allocation2 + $0x28] sm:$0xff]
        %v1273 = vld [vmem:[#allocation2 + $0x30] sm:$0xff]
        %v1274 = vld [vmem:[#allocation2 + $0x38] sm:$0xff]
        %v1275 = vld [vmem:[#allocation2 + $0x40] sm:$0xff]
        %v1276 = vld [vmem:[#allocation2 + $0x48] sm:$0xff]
        %v1277 = vld [vmem:[#allocation2 + $0x50] sm:$0xff]
        %v1278 = vld [vmem:[#allocation2 + $0x58] sm:$0xff]
        %v1279 = vld [vmem:[#allocation2 + $0x60] sm:$0xff]
        %v1280 = vld [vmem:[#allocation2 + $0x68] sm:$0xff]
        %v1281 = vld [vmem:[#allocation2 + $0x70] sm:$0xff]
        %v1282 = vld [vmem:[#allocation2 + $0x78] sm:$0xff]
        %v1283 = vld [vmem:[#allocation2 + $0x80] sm:$0xff]
        %v1284 = vld [vmem:[#allocation2 + $0x88] sm:$0xff]
        %v1285 = vld [vmem:[#allocation2 + $0x90] sm:$0xff]
        %v1286 = vld [vmem:[#allocation2 + $0x98] sm:$0xff]
        %v1287 = vld [vmem:[#allocation2 + $0xa0] sm:$0xff]
        %v1288 = vld [vmem:[#allocation2 + $0xa8] sm:$0xff]
        %v1289 = vld [vmem:[#allocation2 + $0xb0] sm:$0xff]
        %v1290 = vld [vmem:[#allocation2 + $0xb8] sm:$0xff]
        %v1291 = vld [vmem:[#allocation2 + $0xc0] sm:$0xff]
        %v1292 = vld [vmem:[#allocation2 + $0xc8] sm:$0xff]
        %v1293 = vld [vmem:[#allocation2 + $0xd0] sm:$0xff]
        %v1294 = vld [vmem:[#allocation2 + $0xd8] sm:$0xff]
        %v1295 = vld [vmem:[#allocation2 + $0xe0] sm:$0xff]
        %v1296 = vld [vmem:[#allocation2 + $0xe8] sm:$0xff]
        %v1297 = vld [vmem:[#allocation2 + $0xf0] sm:$0xff]
        %v1298 = vld [vmem:[#allocation2 + $0xf8] sm:$0xff]
        %v1299 = vld [vmem:[#allocation2 + $0x100] sm:$0xff]
        %v1300 = vld [vmem:[#allocation2 + $0x108] sm:$0xff]
        %v1301 = vld [vmem:[#allocation2 + $0x110] sm:$0xff]
        %v1302 = vld [vmem:[#allocation2 + $0x118] sm:$0xff]
        %s1303 = scalar_lea.vmem %s1, 8
        %v1304 = vld [vmem:[%s1303] sm:$0xf]
        %v1306 = vsel %vm295, %v1231, 0
        %v1309 = vsel %vm295, %v1232, 0
        %v1312 = vsel %vm295, %v1233, 0
        %v1315 = vsel %vm295, %v1234, 0
        %v1318 = vsel %vm295, %v1235, 0
        %v1321 = vsel %vm295, %v1236, 0
        %v1324 = vsel %vm295, %v1237, 0
        %v1327 = vsel %vm295, %v1238, 0
        %v1330 = vsel %vm295, %v1239, 0
        %v1333 = vsel %vm295, %v1240, 0
        %v1336 = vsel %vm295, %v1241, 0
        %v1339 = vsel %vm295, %v1242, 0
        %v1342 = vsel %vm295, %v1243, 0
        %v1345 = vsel %vm295, %v1244, 0
        %v1348 = vsel %vm295, %v1245, 0
        %v1351 = vsel %vm295, %v1246, 0
        %v1354 = vsel %vm295, %v1247, 0
        %v1357 = vsel %vm295, %v1248, 0
        %v1360 = vsel %vm295, %v1249, 0
        %v1363 = vsel %vm295, %v1250, 0
        %v1366 = vsel %vm295, %v1251, 0
        %v1369 = vsel %vm295, %v1252, 0
        %v1372 = vsel %vm295, %v1253, 0
        %v1375 = vsel %vm295, %v1254, 0
        %v1378 = vsel %vm295, %v1255, 0
        %v1381 = vsel %vm295, %v1256, 0
        %v1384 = vsel %vm295, %v1257, 0
        %v1387 = vsel %vm295, %v1258, 0
        %v1390 = vsel %vm295, %v1259, 0
        %v1393 = vsel %vm295, %v1260, 0
        %v1396 = vsel %vm295, %v1261, 0
        %v1399 = vsel %vm295, %v1262, 0
        %v1402 = vsel %vm295, %v1263, 0
        %v1405 = vsel %vm295, %v1264, 0
        %v1408 = vsel %vm295, %v1265, 0
        %v1411 = vsel %vm295, %v1266, 0
        %v1414 = vsel %vm404, %v1304, 0
        %1416 = vmatprep.subr.mxu0 0.0
        %1417 = vmatpush1.msra.mxu0 0.0
        %1418 = vmatprep.subr.mxu0 0.0
        %1419 = vmatpush1.msra.mxu0 0.0
        %1420 = vmatprep.subr.mxu0 0.0
        %1421 = vmatpush1.msra.mxu0 0.0
        %1422 = vmatprep.subr.mxu0 0.0
        %1423 = vmatpush1.msra.mxu0 0.0
        %1424 = vmatprep.subr.mxu0 0.0
        %1425 = vmatpush1.msra.mxu0 0.0
        %1426 = vmatprep.subr.mxu0 0.0
        %1427 = vmatpush1.msra.mxu0 0.0
        %1428 = vmatprep.subr.mxu0 0.0
        %1429 = vmatpush1.msra.mxu0 0.0
        %1430 = vmatprep.subr.mxu0 0.0
        %1431 = vmatpush1.msra.mxu0 0.0
        %1432 = vmatprep.subr.mxu0 0.0
        %1433 = vmatpush1.msra.mxu0 0.0
        %1434 = vmatprep.subr.mxu0 0.0
        %1435 = vmatpush1.msra.mxu0 0.0
        %1436 = vmatprep.subr.mxu0 0.0
        %1437 = vmatpush1.msra.mxu0 0.0
        %1438 = vmatprep.subr.mxu0 0.0
        %1439 = vmatpush1.msra.mxu0 0.0
        %1440 = vmatprep.subr.mxu0 0.0
        %1441 = vmatpush1.msra.mxu0 0.0
        %1442 = vmatprep.subr.mxu0 0.0
        %1443 = vmatpush1.msra.mxu0 0.0
        %1444 = vmatprep.subr.mxu0 0.0
        %1445 = vmatpush1.msra.mxu0 0.0
        %1446 = vmatprep.subr.mxu0 0.0
        %1447 = vmatpush1.msra.mxu0 %v1414
        %1448 = vmatprep.subr.mxu0 0.0
        %1449 = vmatpush2.msra.mxu0 0.0
        %1450 = vmatprep.subr.mxu0 0.0
        %1451 = vmatpush2.msra.mxu0 0.0
        %1452 = vmatprep.subr.mxu0 0.0
        %1453 = vmatpush2.msra.mxu0 0.0
        %1454 = vmatprep.subr.mxu0 0.0
        %1455 = vmatpush2.msra.mxu0 0.0
        %1456 = vmatprep.subr.mxu0 0.0
        %1457 = vmatpush2.msra.mxu0 0.0
        %1458 = vmatprep.subr.mxu0 0.0
        %1459 = vmatpush2.msra.mxu0 0.0
        %1460 = vmatprep.subr.mxu0 0.0
        %1461 = vmatpush2.msra.mxu0 0.0
        %1462 = vmatprep.subr.mxu0 0.0
        %1463 = vmatpush2.msra.mxu0 0.0
        %1464 = vmatprep.subr.mxu0 0.0
        %1465 = vmatpush2.msra.mxu0 0.0
        %1466 = vmatprep.subr.mxu0 0.0
        %1467 = vmatpush2.msra.mxu0 0.0
        %1468 = vmatprep.subr.mxu0 0.0
        %1469 = vmatpush2.msra.mxu0 0.0
        %1470 = vmatprep.subr.mxu0 0.0
        %1471 = vmatpush2.msra.mxu0 0.0
        %1472 = vmatprep.subr.mxu0 0.0
        %1473 = vmatpush2.msra.mxu0 0.0
        %1474 = vmatprep.subr.mxu0 0.0
        %1475 = vmatpush2.msra.mxu0 0.0
        %1476 = vmatprep.subr.mxu0 0.0
        %1477 = vmatpush2.msra.mxu0 0.0
        %1478 = vmatprep.subr.mxu0 0.0
        %1479 = vmatpush2.msra.mxu0 0.0
        %1480 = vmatprep.mubr.f32.mxu0 0.0
        %1481 = vmatmul.mubr.f32.gmra.mxu0 %v1306
        %v1482 = vpop.f32.mrf.mxu0
        %v1483 = vadd.f32 0.0, %v1482
        %v1484 = vpop.f32.mrf.mxu0
        %1485 = vmatprep.mubr.f32.mxu0 0.0
        %1486 = vmatmul.mubr.f32.gmra.mxu0 %v1309
        %v1487 = vpop.f32.mrf.mxu0
        %v1488 = vadd.f32 0.0, %v1487
        %v1489 = vpop.f32.mrf.mxu0
        %1490 = vmatprep.mubr.f32.mxu0 0.0
        %1491 = vmatmul.mubr.f32.gmra.mxu0 %v1312
        %v1492 = vpop.f32.mrf.mxu0
        %v1493 = vadd.f32 0.0, %v1492
        %v1494 = vpop.f32.mrf.mxu0
        %1495 = vmatprep.mubr.f32.mxu0 0.0
        %1496 = vmatmul.mubr.f32.gmra.mxu0 %v1315
        %v1497 = vpop.f32.mrf.mxu0
        %v1498 = vadd.f32 0.0, %v1497
        %v1499 = vpop.f32.mrf.mxu0
        %1500 = vmatprep.mubr.f32.mxu0 0.0
        %1501 = vmatmul.mubr.f32.gmra.mxu0 %v1318
        %v1502 = vpop.f32.mrf.mxu0
        %v1503 = vadd.f32 0.0, %v1502
        %v1504 = vpop.f32.mrf.mxu0
        %1505 = vmatprep.mubr.f32.mxu0 0.0
        %1506 = vmatmul.mubr.f32.gmra.mxu0 %v1321
        %v1507 = vpop.f32.mrf.mxu0
        %v1508 = vadd.f32 0.0, %v1507
        %v1509 = vpop.f32.mrf.mxu0
        %1510 = vmatprep.mubr.f32.mxu0 0.0
        %1511 = vmatmul.mubr.f32.gmra.mxu0 %v1324
        %v1512 = vpop.f32.mrf.mxu0
        %v1513 = vadd.f32 0.0, %v1512
        %v1514 = vpop.f32.mrf.mxu0
        %1515 = vmatprep.mubr.f32.mxu0 0.0
        %1516 = vmatmul.mubr.f32.gmra.mxu0 %v1327
        %v1517 = vpop.f32.mrf.mxu0
        %v1518 = vadd.f32 0.0, %v1517
        %v1519 = vpop.f32.mrf.mxu0
        %1520 = vmatprep.mubr.f32.mxu0 0.0
        %1521 = vmatmul.mubr.f32.gmra.mxu0 %v1330
        %v1522 = vpop.f32.mrf.mxu0
        %v1523 = vadd.f32 0.0, %v1522
        %v1524 = vpop.f32.mrf.mxu0
        %1525 = vmatprep.mubr.f32.mxu0 0.0
        %1526 = vmatmul.mubr.f32.gmra.mxu0 %v1333
        %v1527 = vpop.f32.mrf.mxu0
        %v1528 = vadd.f32 0.0, %v1527
        %v1529 = vpop.f32.mrf.mxu0
        %1530 = vmatprep.mubr.f32.mxu0 0.0
        %1531 = vmatmul.mubr.f32.gmra.mxu0 %v1336
        %v1532 = vpop.f32.mrf.mxu0
        %v1533 = vadd.f32 0.0, %v1532
        %v1534 = vpop.f32.mrf.mxu0
        %1535 = vmatprep.mubr.f32.mxu0 0.0
        %1536 = vmatmul.mubr.f32.gmra.mxu0 %v1339
        %v1537 = vpop.f32.mrf.mxu0
        %v1538 = vadd.f32 0.0, %v1537
        %v1539 = vpop.f32.mrf.mxu0
        %1540 = vmatprep.mubr.f32.mxu0 0.0
        %1541 = vmatmul.mubr.f32.gmra.mxu0 %v1342
        %v1542 = vpop.f32.mrf.mxu0
        %v1543 = vadd.f32 0.0, %v1542
        %v1544 = vpop.f32.mrf.mxu0
        %1545 = vmatprep.mubr.f32.mxu0 0.0
        %1546 = vmatmul.mubr.f32.gmra.mxu0 %v1345
        %v1547 = vpop.f32.mrf.mxu0
        %v1548 = vadd.f32 0.0, %v1547
        %v1549 = vpop.f32.mrf.mxu0
        %1550 = vmatprep.mubr.f32.mxu0 0.0
        %1551 = vmatmul.mubr.f32.gmra.mxu0 %v1348
        %v1552 = vpop.f32.mrf.mxu0
        %v1553 = vadd.f32 0.0, %v1552
        %v1554 = vpop.f32.mrf.mxu0
        %1555 = vmatprep.mubr.f32.mxu0 0.0
        %1556 = vmatmul.mubr.f32.gmra.mxu0 %v1351
        %v1557 = vpop.f32.mrf.mxu0
        %v1558 = vadd.f32 0.0, %v1557
        %v1559 = vpop.f32.mrf.mxu0
        %1560 = vmatprep.mubr.f32.mxu0 0.0
        %1561 = vmatmul.mubr.f32.gmra.mxu0 %v1354
        %v1562 = vpop.f32.mrf.mxu0
        %v1563 = vadd.f32 0.0, %v1562
        %v1564 = vpop.f32.mrf.mxu0
        %1565 = vmatprep.mubr.f32.mxu0 0.0
        %1566 = vmatmul.mubr.f32.gmra.mxu0 %v1357
        %v1567 = vpop.f32.mrf.mxu0
        %v1568 = vadd.f32 0.0, %v1567
        %v1569 = vpop.f32.mrf.mxu0
        %1570 = vmatprep.mubr.f32.mxu0 0.0
        %1571 = vmatmul.mubr.f32.gmra.mxu0 %v1360
        %v1572 = vpop.f32.mrf.mxu0
        %v1573 = vadd.f32 0.0, %v1572
        %v1574 = vpop.f32.mrf.mxu0
        %1575 = vmatprep.mubr.f32.mxu0 0.0
        %1576 = vmatmul.mubr.f32.gmra.mxu0 %v1363
        %v1577 = vpop.f32.mrf.mxu0
        %v1578 = vadd.f32 0.0, %v1577
        %v1579 = vpop.f32.mrf.mxu0
        %1580 = vmatprep.mubr.f32.mxu0 0.0
        %1581 = vmatmul.mubr.f32.gmra.mxu0 %v1366
        %v1582 = vpop.f32.mrf.mxu0
        %v1583 = vadd.f32 0.0, %v1582
        %v1584 = vpop.f32.mrf.mxu0
        %1585 = vmatprep.mubr.f32.mxu0 0.0
        %1586 = vmatmul.mubr.f32.gmra.mxu0 %v1369
        %v1587 = vpop.f32.mrf.mxu0
        %v1588 = vadd.f32 0.0, %v1587
        %v1589 = vpop.f32.mrf.mxu0
        %1590 = vmatprep.mubr.f32.mxu0 0.0
        %1591 = vmatmul.mubr.f32.gmra.mxu0 %v1372
        %v1592 = vpop.f32.mrf.mxu0
        %v1593 = vadd.f32 0.0, %v1592
        %v1594 = vpop.f32.mrf.mxu0
        %1595 = vmatprep.mubr.f32.mxu0 0.0
        %1596 = vmatmul.mubr.f32.gmra.mxu0 %v1375
        %v1597 = vpop.f32.mrf.mxu0
        %v1598 = vadd.f32 0.0, %v1597
        %v1599 = vpop.f32.mrf.mxu0
        %1600 = vmatprep.mubr.f32.mxu0 0.0
        %1601 = vmatmul.mubr.f32.gmra.mxu0 %v1378
        %v1602 = vpop.f32.mrf.mxu0
        %v1603 = vadd.f32 0.0, %v1602
        %v1604 = vpop.f32.mrf.mxu0
        %1605 = vmatprep.mubr.f32.mxu0 0.0
        %1606 = vmatmul.mubr.f32.gmra.mxu0 %v1381
        %v1607 = vpop.f32.mrf.mxu0
        %v1608 = vadd.f32 0.0, %v1607
        %v1609 = vpop.f32.mrf.mxu0
        %1610 = vmatprep.mubr.f32.mxu0 0.0
        %1611 = vmatmul.mubr.f32.gmra.mxu0 %v1384
        %v1612 = vpop.f32.mrf.mxu0
        %v1613 = vadd.f32 0.0, %v1612
        %v1614 = vpop.f32.mrf.mxu0
        %1615 = vmatprep.mubr.f32.mxu0 0.0
        %1616 = vmatmul.mubr.f32.gmra.mxu0 %v1387
        %v1617 = vpop.f32.mrf.mxu0
        %v1618 = vadd.f32 0.0, %v1617
        %v1619 = vpop.f32.mrf.mxu0
        %1620 = vmatprep.mubr.f32.mxu0 0.0
        %1621 = vmatmul.mubr.f32.gmra.mxu0 %v1390
        %v1622 = vpop.f32.mrf.mxu0
        %v1623 = vadd.f32 0.0, %v1622
        %v1624 = vpop.f32.mrf.mxu0
        %1625 = vmatprep.mubr.f32.mxu0 0.0
        %1626 = vmatmul.mubr.f32.gmra.mxu0 %v1393
        %v1627 = vpop.f32.mrf.mxu0
        %v1628 = vadd.f32 0.0, %v1627
        %v1629 = vpop.f32.mrf.mxu0
        %1630 = vmatprep.mubr.f32.mxu0 0.0
        %1631 = vmatmul.mubr.f32.gmra.mxu0 %v1396
        %v1632 = vpop.f32.mrf.mxu0
        %v1633 = vadd.f32 0.0, %v1632
        %v1634 = vpop.f32.mrf.mxu0
        %1635 = vmatprep.mubr.f32.mxu0 0.0
        %1636 = vmatmul.mubr.f32.gmra.mxu0 %v1399
        %v1637 = vpop.f32.mrf.mxu0
        %v1638 = vadd.f32 0.0, %v1637
        %v1639 = vpop.f32.mrf.mxu0
        %1640 = vmatprep.mubr.f32.mxu0 0.0
        %1641 = vmatmul.mubr.f32.gmra.mxu0 %v1402
        %v1642 = vpop.f32.mrf.mxu0
        %v1643 = vadd.f32 0.0, %v1642
        %v1644 = vpop.f32.mrf.mxu0
        %1645 = vmatprep.mubr.f32.mxu0 0.0
        %1646 = vmatmul.mubr.f32.gmra.mxu0 %v1405
        %v1647 = vpop.f32.mrf.mxu0
        %v1648 = vadd.f32 0.0, %v1647
        %v1649 = vpop.f32.mrf.mxu0
        %1650 = vmatprep.mubr.f32.mxu0 0.0
        %1651 = vmatmul.mubr.f32.gmra.mxu0 %v1408
        %v1652 = vpop.f32.mrf.mxu0
        %v1653 = vadd.f32 0.0, %v1652
        %v1654 = vpop.f32.mrf.mxu0
        %1655 = vmatprep.mubr.f32.mxu0 0.0
        %1656 = vmatmul.mubr.f32.gmra.mxu0 %v1411
        %v1657 = vpop.f32.mrf.mxu0
        %v1658 = vadd.f32 0.0, %v1657
        %v1659 = vpop.f32.mrf.mxu0
        %1660 = vdwg.mxu0
        %v1661 = vadd.f32 %v1267, %v1483
        %v1662 = vadd.f32 %v1268, %v1488
        %v1663 = vadd.f32 %v1269, %v1493
        %v1664 = vadd.f32 %v1270, %v1498
        %v1665 = vadd.f32 %v1271, %v1503
        %v1666 = vadd.f32 %v1272, %v1508
        %v1667 = vadd.f32 %v1273, %v1513
        %v1668 = vadd.f32 %v1274, %v1518
        %v1669 = vadd.f32 %v1275, %v1523
        %v1670 = vadd.f32 %v1276, %v1528
        %v1671 = vadd.f32 %v1277, %v1533
        %v1672 = vadd.f32 %v1278, %v1538
        %v1673 = vadd.f32 %v1279, %v1543
        %v1674 = vadd.f32 %v1280, %v1548
        %v1675 = vadd.f32 %v1281, %v1553
        %v1676 = vadd.f32 %v1282, %v1558
        %v1677 = vadd.f32 %v1283, %v1563
        %v1678 = vadd.f32 %v1284, %v1568
        %v1679 = vadd.f32 %v1285, %v1573
        %v1680 = vadd.f32 %v1286, %v1578
        %v1681 = vadd.f32 %v1287, %v1583
        %v1682 = vadd.f32 %v1288, %v1588
        %v1683 = vadd.f32 %v1289, %v1593
        %v1684 = vadd.f32 %v1290, %v1598
        %v1685 = vadd.f32 %v1291, %v1603
        %v1686 = vadd.f32 %v1292, %v1608
        %v1687 = vadd.f32 %v1293, %v1613
        %v1688 = vadd.f32 %v1294, %v1618
        %v1689 = vadd.f32 %v1295, %v1623
        %v1690 = vadd.f32 %v1296, %v1628
        %v1691 = vadd.f32 %v1297, %v1633
        %v1692 = vadd.f32 %v1298, %v1638
        %v1693 = vadd.f32 %v1299, %v1643
        %v1694 = vadd.f32 %v1300, %v1648
        %v1695 = vadd.f32 %v1301, %v1653
        %v1696 = vadd.f32 %v1302, %v1658
        %1697 = vst [vmem:[#allocation2] sm:$0xff] %v1661
        %1698 = vst [vmem:[#allocation2 + $0x8] sm:$0xff] %v1662
        %1699 = vst [vmem:[#allocation2 + $0x10] sm:$0xff] %v1663
        %1700 = vst [vmem:[#allocation2 + $0x18] sm:$0xff] %v1664
        %1701 = vst [vmem:[#allocation2 + $0x20] sm:$0xff] %v1665
        %1702 = vst [vmem:[#allocation2 + $0x28] sm:$0xff] %v1666
        %1703 = vst [vmem:[#allocation2 + $0x30] sm:$0xff] %v1667
        %1704 = vst [vmem:[#allocation2 + $0x38] sm:$0xff] %v1668
        %1705 = vst [vmem:[#allocation2 + $0x40] sm:$0xff] %v1669
        %1706 = vst [vmem:[#allocation2 + $0x48] sm:$0xff] %v1670
        %1707 = vst [vmem:[#allocation2 + $0x50] sm:$0xff] %v1671
        %1708 = vst [vmem:[#allocation2 + $0x58] sm:$0xff] %v1672
        %1709 = vst [vmem:[#allocation2 + $0x60] sm:$0xff] %v1673
        %1710 = vst [vmem:[#allocation2 + $0x68] sm:$0xff] %v1674
        %1711 = vst [vmem:[#allocation2 + $0x70] sm:$0xff] %v1675
        %1712 = vst [vmem:[#allocation2 + $0x78] sm:$0xff] %v1676
        %1713 = vst [vmem:[#allocation2 + $0x80] sm:$0xff] %v1677
        %1714 = vst [vmem:[#allocation2 + $0x88] sm:$0xff] %v1678
        %1715 = vst [vmem:[#allocation2 + $0x90] sm:$0xff] %v1679
        %1716 = vst [vmem:[#allocation2 + $0x98] sm:$0xff] %v1680
        %1717 = vst [vmem:[#allocation2 + $0xa0] sm:$0xff] %v1681
        %1718 = vst [vmem:[#allocation2 + $0xa8] sm:$0xff] %v1682
        %1719 = vst [vmem:[#allocation2 + $0xb0] sm:$0xff] %v1683
        %1720 = vst [vmem:[#allocation2 + $0xb8] sm:$0xff] %v1684
        %1721 = vst [vmem:[#allocation2 + $0xc0] sm:$0xff] %v1685
        %1722 = vst [vmem:[#allocation2 + $0xc8] sm:$0xff] %v1686
        %1723 = vst [vmem:[#allocation2 + $0xd0] sm:$0xff] %v1687
        %1724 = vst [vmem:[#allocation2 + $0xd8] sm:$0xff] %v1688
        %1725 = vst [vmem:[#allocation2 + $0xe0] sm:$0xff] %v1689
        %1726 = vst [vmem:[#allocation2 + $0xe8] sm:$0xff] %v1690
        %1727 = vst [vmem:[#allocation2 + $0xf0] sm:$0xff] %v1691
        %1728 = vst [vmem:[#allocation2 + $0xf8] sm:$0xff] %v1692
        %1729 = vst [vmem:[#allocation2 + $0x100] sm:$0xff] %v1693
        %1730 = vst [vmem:[#allocation2 + $0x108] sm:$0xff] %v1694
        %1731 = vst [vmem:[#allocation2 + $0x110] sm:$0xff] %v1695
        %1732 = vst [vmem:[#allocation2 + $0x118] sm:$0xff] %v1696
        %s1733 = sadd.s32 %s184, 18
        %s1734 = scalar_lea.vmem %s182, %s1733
        %v1735 = vld [vmem:[%s1734] sm:$0xff]
        %v1736 = vld [vmem:[%s1734 + $0x8] sm:$0xff]
        %v1737 = vld [vmem:[%s1734 + $0x10] sm:$0xff]
        %v1738 = vld [vmem:[%s1734 + $0x18] sm:$0xff]
        %v1739 = vld [vmem:[%s1734 + $0x20] sm:$0xff]
        %v1740 = vld [vmem:[%s1734 + $0x28] sm:$0xff]
        %v1741 = vld [vmem:[%s1734 + $0x30] sm:$0xff]
        %v1742 = vld [vmem:[%s1734 + $0x38] sm:$0xff]
        %v1743 = vld [vmem:[%s1734 + $0x40] sm:$0xff]
        %v1744 = vld [vmem:[%s1734 + $0x48] sm:$0xff]
        %v1745 = vld [vmem:[%s1734 + $0x50] sm:$0xff]
        %v1746 = vld [vmem:[%s1734 + $0x58] sm:$0xff]
        %v1747 = vld [vmem:[%s1734 + $0x60] sm:$0xff]
        %v1748 = vld [vmem:[%s1734 + $0x68] sm:$0xff]
        %v1749 = vld [vmem:[%s1734 + $0x70] sm:$0xff]
        %v1750 = vld [vmem:[%s1734 + $0x78] sm:$0xff]
        %v1751 = vld [vmem:[%s1734 + $0x80] sm:$0xff]
        %v1752 = vld [vmem:[%s1734 + $0x88] sm:$0xff]
        %v1753 = vld [vmem:[%s1734 + $0x90] sm:$0xff]
        %v1754 = vld [vmem:[%s1734 + $0x98] sm:$0xff]
        %v1755 = vld [vmem:[%s1734 + $0xa0] sm:$0xff]
        %v1756 = vld [vmem:[%s1734 + $0xa8] sm:$0xff]
        %v1757 = vld [vmem:[%s1734 + $0xb0] sm:$0xff]
        %v1758 = vld [vmem:[%s1734 + $0xb8] sm:$0xff]
        %v1759 = vld [vmem:[%s1734 + $0xc0] sm:$0xff]
        %v1760 = vld [vmem:[%s1734 + $0xc8] sm:$0xff]
        %v1761 = vld [vmem:[%s1734 + $0xd0] sm:$0xff]
        %v1762 = vld [vmem:[%s1734 + $0xd8] sm:$0xff]
        %v1763 = vld [vmem:[%s1734 + $0xe0] sm:$0xff]
        %v1764 = vld [vmem:[%s1734 + $0xe8] sm:$0xff]
        %v1765 = vld [vmem:[%s1734 + $0xf0] sm:$0xff]
        %v1766 = vld [vmem:[%s1734 + $0xf8] sm:$0xff]
        %v1767 = vld [vmem:[%s1734 + $0x100] sm:$0xff]
        %v1768 = vld [vmem:[%s1734 + $0x108] sm:$0xff]
        %v1769 = vld [vmem:[%s1734 + $0x110] sm:$0xff]
        %v1770 = vld [vmem:[%s1734 + $0x118] sm:$0xff]
        %v1771 = vld [vmem:[#allocation2] sm:$0xff]
        %v1772 = vld [vmem:[#allocation2 + $0x8] sm:$0xff]
        %v1773 = vld [vmem:[#allocation2 + $0x10] sm:$0xff]
        %v1774 = vld [vmem:[#allocation2 + $0x18] sm:$0xff]
        %v1775 = vld [vmem:[#allocation2 + $0x20] sm:$0xff]
        %v1776 = vld [vmem:[#allocation2 + $0x28] sm:$0xff]
        %v1777 = vld [vmem:[#allocation2 + $0x30] sm:$0xff]
        %v1778 = vld [vmem:[#allocation2 + $0x38] sm:$0xff]
        %v1779 = vld [vmem:[#allocation2 + $0x40] sm:$0xff]
        %v1780 = vld [vmem:[#allocation2 + $0x48] sm:$0xff]
        %v1781 = vld [vmem:[#allocation2 + $0x50] sm:$0xff]
        %v1782 = vld [vmem:[#allocation2 + $0x58] sm:$0xff]
        %v1783 = vld [vmem:[#allocation2 + $0x60] sm:$0xff]
        %v1784 = vld [vmem:[#allocation2 + $0x68] sm:$0xff]
        %v1785 = vld [vmem:[#allocation2 + $0x70] sm:$0xff]
        %v1786 = vld [vmem:[#allocation2 + $0x78] sm:$0xff]
        %v1787 = vld [vmem:[#allocation2 + $0x80] sm:$0xff]
        %v1788 = vld [vmem:[#allocation2 + $0x88] sm:$0xff]
        %v1789 = vld [vmem:[#allocation2 + $0x90] sm:$0xff]
        %v1790 = vld [vmem:[#allocation2 + $0x98] sm:$0xff]
        %v1791 = vld [vmem:[#allocation2 + $0xa0] sm:$0xff]
        %v1792 = vld [vmem:[#allocation2 + $0xa8] sm:$0xff]
        %v1793 = vld [vmem:[#allocation2 + $0xb0] sm:$0xff]
        %v1794 = vld [vmem:[#allocation2 + $0xb8] sm:$0xff]
        %v1795 = vld [vmem:[#allocation2 + $0xc0] sm:$0xff]
        %v1796 = vld [vmem:[#allocation2 + $0xc8] sm:$0xff]
        %v1797 = vld [vmem:[#allocation2 + $0xd0] sm:$0xff]
        %v1798 = vld [vmem:[#allocation2 + $0xd8] sm:$0xff]
        %v1799 = vld [vmem:[#allocation2 + $0xe0] sm:$0xff]
        %v1800 = vld [vmem:[#allocation2 + $0xe8] sm:$0xff]
        %v1801 = vld [vmem:[#allocation2 + $0xf0] sm:$0xff]
        %v1802 = vld [vmem:[#allocation2 + $0xf8] sm:$0xff]
        %v1803 = vld [vmem:[#allocation2 + $0x100] sm:$0xff]
        %v1804 = vld [vmem:[#allocation2 + $0x108] sm:$0xff]
        %v1805 = vld [vmem:[#allocation2 + $0x110] sm:$0xff]
        %v1806 = vld [vmem:[#allocation2 + $0x118] sm:$0xff]
        %s1807 = scalar_lea.vmem %s1, 12
        %v1808 = vld [vmem:[%s1807] sm:$0xf]
        %v1810 = vsel %vm295, %v1735, 0
        %v1813 = vsel %vm295, %v1736, 0
        %v1816 = vsel %vm295, %v1737, 0
        %v1819 = vsel %vm295, %v1738, 0
        %v1822 = vsel %vm295, %v1739, 0
        %v1825 = vsel %vm295, %v1740, 0
        %v1828 = vsel %vm295, %v1741, 0
        %v1831 = vsel %vm295, %v1742, 0
        %v1834 = vsel %vm295, %v1743, 0
        %v1837 = vsel %vm295, %v1744, 0
        %v1840 = vsel %vm295, %v1745, 0
        %v1843 = vsel %vm295, %v1746, 0
        %v1846 = vsel %vm295, %v1747, 0
        %v1849 = vsel %vm295, %v1748, 0
        %v1852 = vsel %vm295, %v1749, 0
        %v1855 = vsel %vm295, %v1750, 0
        %v1858 = vsel %vm295, %v1751, 0
        %v1861 = vsel %vm295, %v1752, 0
        %v1864 = vsel %vm295, %v1753, 0
        %v1867 = vsel %vm295, %v1754, 0
        %v1870 = vsel %vm295, %v1755, 0
        %v1873 = vsel %vm295, %v1756, 0
        %v1876 = vsel %vm295, %v1757, 0
        %v1879 = vsel %vm295, %v1758, 0
        %v1882 = vsel %vm295, %v1759, 0
        %v1885 = vsel %vm295, %v1760, 0
        %v1888 = vsel %vm295, %v1761, 0
        %v1891 = vsel %vm295, %v1762, 0
        %v1894 = vsel %vm295, %v1763, 0
        %v1897 = vsel %vm295, %v1764, 0
        %v1900 = vsel %vm295, %v1765, 0
        %v1903 = vsel %vm295, %v1766, 0
        %v1906 = vsel %vm295, %v1767, 0
        %v1909 = vsel %vm295, %v1768, 0
        %v1912 = vsel %vm295, %v1769, 0
        %v1915 = vsel %vm295, %v1770, 0
        %v1918 = vsel %vm404, %v1808, 0
        %1920 = vmatprep.subr.mxu0 0.0
        %1921 = vmatpush1.msra.mxu0 0.0
        %1922 = vmatprep.subr.mxu0 0.0
        %1923 = vmatpush1.msra.mxu0 0.0
        %1924 = vmatprep.subr.mxu0 0.0
        %1925 = vmatpush1.msra.mxu0 0.0
        %1926 = vmatprep.subr.mxu0 0.0
        %1927 = vmatpush1.msra.mxu0 0.0
        %1928 = vmatprep.subr.mxu0 0.0
        %1929 = vmatpush1.msra.mxu0 0.0
        %1930 = vmatprep.subr.mxu0 0.0
        %1931 = vmatpush1.msra.mxu0 0.0
        %1932 = vmatprep.subr.mxu0 0.0
        %1933 = vmatpush1.msra.mxu0 0.0
        %1934 = vmatprep.subr.mxu0 0.0
        %1935 = vmatpush1.msra.mxu0 0.0
        %1936 = vmatprep.subr.mxu0 0.0
        %1937 = vmatpush1.msra.mxu0 0.0
        %1938 = vmatprep.subr.mxu0 0.0
        %1939 = vmatpush1.msra.mxu0 0.0
        %1940 = vmatprep.subr.mxu0 0.0
        %1941 = vmatpush1.msra.mxu0 0.0
        %1942 = vmatprep.subr.mxu0 0.0
        %1943 = vmatpush1.msra.mxu0 0.0
        %1944 = vmatprep.subr.mxu0 0.0
        %1945 = vmatpush1.msra.mxu0 0.0
        %1946 = vmatprep.subr.mxu0 0.0
        %1947 = vmatpush1.msra.mxu0 0.0
        %1948 = vmatprep.subr.mxu0 0.0
        %1949 = vmatpush1.msra.mxu0 0.0
        %1950 = vmatprep.subr.mxu0 0.0
        %1951 = vmatpush1.msra.mxu0 %v1918
        %1952 = vmatprep.subr.mxu0 0.0
        %1953 = vmatpush2.msra.mxu0 0.0
        %1954 = vmatprep.subr.mxu0 0.0
        %1955 = vmatpush2.msra.mxu0 0.0
        %1956 = vmatprep.subr.mxu0 0.0
        %1957 = vmatpush2.msra.mxu0 0.0
        %1958 = vmatprep.subr.mxu0 0.0
        %1959 = vmatpush2.msra.mxu0 0.0
        %1960 = vmatprep.subr.mxu0 0.0
        %1961 = vmatpush2.msra.mxu0 0.0
        %1962 = vmatprep.subr.mxu0 0.0
        %1963 = vmatpush2.msra.mxu0 0.0
        %1964 = vmatprep.subr.mxu0 0.0
        %1965 = vmatpush2.msra.mxu0 0.0
        %1966 = vmatprep.subr.mxu0 0.0
        %1967 = vmatpush2.msra.mxu0 0.0
        %1968 = vmatprep.subr.mxu0 0.0
        %1969 = vmatpush2.msra.mxu0 0.0
        %1970 = vmatprep.subr.mxu0 0.0
        %1971 = vmatpush2.msra.mxu0 0.0
        %1972 = vmatprep.subr.mxu0 0.0
        %1973 = vmatpush2.msra.mxu0 0.0
        %1974 = vmatprep.subr.mxu0 0.0
        %1975 = vmatpush2.msra.mxu0 0.0
        %1976 = vmatprep.subr.mxu0 0.0
        %1977 = vmatpush2.msra.mxu0 0.0
        %1978 = vmatprep.subr.mxu0 0.0
        %1979 = vmatpush2.msra.mxu0 0.0
        %1980 = vmatprep.subr.mxu0 0.0
        %1981 = vmatpush2.msra.mxu0 0.0
        %1982 = vmatprep.subr.mxu0 0.0
        %1983 = vmatpush2.msra.mxu0 0.0
        %1984 = vmatprep.mubr.f32.mxu0 0.0
        %1985 = vmatmul.mubr.f32.gmra.mxu0 %v1810
        %v1986 = vpop.f32.mrf.mxu0
        %v1987 = vadd.f32 0.0, %v1986
        %v1988 = vpop.f32.mrf.mxu0
        %1989 = vmatprep.mubr.f32.mxu0 0.0
        %1990 = vmatmul.mubr.f32.gmra.mxu0 %v1813
        %v1991 = vpop.f32.mrf.mxu0
        %v1992 = vadd.f32 0.0, %v1991
        %v1993 = vpop.f32.mrf.mxu0
        %1994 = vmatprep.mubr.f32.mxu0 0.0
        %1995 = vmatmul.mubr.f32.gmra.mxu0 %v1816
        %v1996 = vpop.f32.mrf.mxu0
        %v1997 = vadd.f32 0.0, %v1996
        %v1998 = vpop.f32.mrf.mxu0
        %1999 = vmatprep.mubr.f32.mxu0 0.0
        %2000 = vmatmul.mubr.f32.gmra.mxu0 %v1819
        %v2001 = vpop.f32.mrf.mxu0
        %v2002 = vadd.f32 0.0, %v2001
        %v2003 = vpop.f32.mrf.mxu0
        %2004 = vmatprep.mubr.f32.mxu0 0.0
        %2005 = vmatmul.mubr.f32.gmra.mxu0 %v1822
        %v2006 = vpop.f32.mrf.mxu0
        %v2007 = vadd.f32 0.0, %v2006
        %v2008 = vpop.f32.mrf.mxu0
        %2009 = vmatprep.mubr.f32.mxu0 0.0
        %2010 = vmatmul.mubr.f32.gmra.mxu0 %v1825
        %v2011 = vpop.f32.mrf.mxu0
        %v2012 = vadd.f32 0.0, %v2011
        %v2013 = vpop.f32.mrf.mxu0
        %2014 = vmatprep.mubr.f32.mxu0 0.0
        %2015 = vmatmul.mubr.f32.gmra.mxu0 %v1828
        %v2016 = vpop.f32.mrf.mxu0
        %v2017 = vadd.f32 0.0, %v2016
        %v2018 = vpop.f32.mrf.mxu0
        %2019 = vmatprep.mubr.f32.mxu0 0.0
        %2020 = vmatmul.mubr.f32.gmra.mxu0 %v1831
        %v2021 = vpop.f32.mrf.mxu0
        %v2022 = vadd.f32 0.0, %v2021
        %v2023 = vpop.f32.mrf.mxu0
        %2024 = vmatprep.mubr.f32.mxu0 0.0
        %2025 = vmatmul.mubr.f32.gmra.mxu0 %v1834
        %v2026 = vpop.f32.mrf.mxu0
        %v2027 = vadd.f32 0.0, %v2026
        %v2028 = vpop.f32.mrf.mxu0
        %2029 = vmatprep.mubr.f32.mxu0 0.0
        %2030 = vmatmul.mubr.f32.gmra.mxu0 %v1837
        %v2031 = vpop.f32.mrf.mxu0
        %v2032 = vadd.f32 0.0, %v2031
        %v2033 = vpop.f32.mrf.mxu0
        %2034 = vmatprep.mubr.f32.mxu0 0.0
        %2035 = vmatmul.mubr.f32.gmra.mxu0 %v1840
        %v2036 = vpop.f32.mrf.mxu0
        %v2037 = vadd.f32 0.0, %v2036
        %v2038 = vpop.f32.mrf.mxu0
        %2039 = vmatprep.mubr.f32.mxu0 0.0
        %2040 = vmatmul.mubr.f32.gmra.mxu0 %v1843
        %v2041 = vpop.f32.mrf.mxu0
        %v2042 = vadd.f32 0.0, %v2041
        %v2043 = vpop.f32.mrf.mxu0
        %2044 = vmatprep.mubr.f32.mxu0 0.0
        %2045 = vmatmul.mubr.f32.gmra.mxu0 %v1846
        %v2046 = vpop.f32.mrf.mxu0
        %v2047 = vadd.f32 0.0, %v2046
        %v2048 = vpop.f32.mrf.mxu0
        %2049 = vmatprep.mubr.f32.mxu0 0.0
        %2050 = vmatmul.mubr.f32.gmra.mxu0 %v1849
        %v2051 = vpop.f32.mrf.mxu0
        %v2052 = vadd.f32 0.0, %v2051
        %v2053 = vpop.f32.mrf.mxu0
        %2054 = vmatprep.mubr.f32.mxu0 0.0
        %2055 = vmatmul.mubr.f32.gmra.mxu0 %v1852
        %v2056 = vpop.f32.mrf.mxu0
        %v2057 = vadd.f32 0.0, %v2056
        %v2058 = vpop.f32.mrf.mxu0
        %2059 = vmatprep.mubr.f32.mxu0 0.0
        %2060 = vmatmul.mubr.f32.gmra.mxu0 %v1855
        %v2061 = vpop.f32.mrf.mxu0
        %v2062 = vadd.f32 0.0, %v2061
        %v2063 = vpop.f32.mrf.mxu0
        %2064 = vmatprep.mubr.f32.mxu0 0.0
        %2065 = vmatmul.mubr.f32.gmra.mxu0 %v1858
        %v2066 = vpop.f32.mrf.mxu0
        %v2067 = vadd.f32 0.0, %v2066
        %v2068 = vpop.f32.mrf.mxu0
        %2069 = vmatprep.mubr.f32.mxu0 0.0
        %2070 = vmatmul.mubr.f32.gmra.mxu0 %v1861
        %v2071 = vpop.f32.mrf.mxu0
        %v2072 = vadd.f32 0.0, %v2071
        %v2073 = vpop.f32.mrf.mxu0
        %2074 = vmatprep.mubr.f32.mxu0 0.0
        %2075 = vmatmul.mubr.f32.gmra.mxu0 %v1864
        %v2076 = vpop.f32.mrf.mxu0
        %v2077 = vadd.f32 0.0, %v2076
        %v2078 = vpop.f32.mrf.mxu0
        %2079 = vmatprep.mubr.f32.mxu0 0.0
        %2080 = vmatmul.mubr.f32.gmra.mxu0 %v1867
        %v2081 = vpop.f32.mrf.mxu0
        %v2082 = vadd.f32 0.0, %v2081
        %v2083 = vpop.f32.mrf.mxu0
        %2084 = vmatprep.mubr.f32.mxu0 0.0
        %2085 = vmatmul.mubr.f32.gmra.mxu0 %v1870
        %v2086 = vpop.f32.mrf.mxu0
        %v2087 = vadd.f32 0.0, %v2086
        %v2088 = vpop.f32.mrf.mxu0
        %2089 = vmatprep.mubr.f32.mxu0 0.0
        %2090 = vmatmul.mubr.f32.gmra.mxu0 %v1873
        %v2091 = vpop.f32.mrf.mxu0
        %v2092 = vadd.f32 0.0, %v2091
        %v2093 = vpop.f32.mrf.mxu0
        %2094 = vmatprep.mubr.f32.mxu0 0.0
        %2095 = vmatmul.mubr.f32.gmra.mxu0 %v1876
        %v2096 = vpop.f32.mrf.mxu0
        %v2097 = vadd.f32 0.0, %v2096
        %v2098 = vpop.f32.mrf.mxu0
        %2099 = vmatprep.mubr.f32.mxu0 0.0
        %2100 = vmatmul.mubr.f32.gmra.mxu0 %v1879
        %v2101 = vpop.f32.mrf.mxu0
        %v2102 = vadd.f32 0.0, %v2101
        %v2103 = vpop.f32.mrf.mxu0
        %2104 = vmatprep.mubr.f32.mxu0 0.0
        %2105 = vmatmul.mubr.f32.gmra.mxu0 %v1882
        %v2106 = vpop.f32.mrf.mxu0
        %v2107 = vadd.f32 0.0, %v2106
        %v2108 = vpop.f32.mrf.mxu0
        %2109 = vmatprep.mubr.f32.mxu0 0.0
        %2110 = vmatmul.mubr.f32.gmra.mxu0 %v1885
        %v2111 = vpop.f32.mrf.mxu0
        %v2112 = vadd.f32 0.0, %v2111
        %v2113 = vpop.f32.mrf.mxu0
        %2114 = vmatprep.mubr.f32.mxu0 0.0
        %2115 = vmatmul.mubr.f32.gmra.mxu0 %v1888
        %v2116 = vpop.f32.mrf.mxu0
        %v2117 = vadd.f32 0.0, %v2116
        %v2118 = vpop.f32.mrf.mxu0
        %2119 = vmatprep.mubr.f32.mxu0 0.0
        %2120 = vmatmul.mubr.f32.gmra.mxu0 %v1891
        %v2121 = vpop.f32.mrf.mxu0
        %v2122 = vadd.f32 0.0, %v2121
        %v2123 = vpop.f32.mrf.mxu0
        %2124 = vmatprep.mubr.f32.mxu0 0.0
        %2125 = vmatmul.mubr.f32.gmra.mxu0 %v1894
        %v2126 = vpop.f32.mrf.mxu0
        %v2127 = vadd.f32 0.0, %v2126
        %v2128 = vpop.f32.mrf.mxu0
        %2129 = vmatprep.mubr.f32.mxu0 0.0
        %2130 = vmatmul.mubr.f32.gmra.mxu0 %v1897
        %v2131 = vpop.f32.mrf.mxu0
        %v2132 = vadd.f32 0.0, %v2131
        %v2133 = vpop.f32.mrf.mxu0
        %2134 = vmatprep.mubr.f32.mxu0 0.0
        %2135 = vmatmul.mubr.f32.gmra.mxu0 %v1900
        %v2136 = vpop.f32.mrf.mxu0
        %v2137 = vadd.f32 0.0, %v2136
        %v2138 = vpop.f32.mrf.mxu0
        %2139 = vmatprep.mubr.f32.mxu0 0.0
        %2140 = vmatmul.mubr.f32.gmra.mxu0 %v1903
        %v2141 = vpop.f32.mrf.mxu0
        %v2142 = vadd.f32 0.0, %v2141
        %v2143 = vpop.f32.mrf.mxu0
        %2144 = vmatprep.mubr.f32.mxu0 0.0
        %2145 = vmatmul.mubr.f32.gmra.mxu0 %v1906
        %v2146 = vpop.f32.mrf.mxu0
        %v2147 = vadd.f32 0.0, %v2146
        %v2148 = vpop.f32.mrf.mxu0
        %2149 = vmatprep.mubr.f32.mxu0 0.0
        %2150 = vmatmul.mubr.f32.gmra.mxu0 %v1909
        %v2151 = vpop.f32.mrf.mxu0
        %v2152 = vadd.f32 0.0, %v2151
        %v2153 = vpop.f32.mrf.mxu0
        %2154 = vmatprep.mubr.f32.mxu0 0.0
        %2155 = vmatmul.mubr.f32.gmra.mxu0 %v1912
        %v2156 = vpop.f32.mrf.mxu0
        %v2157 = vadd.f32 0.0, %v2156
        %v2158 = vpop.f32.mrf.mxu0
        %2159 = vmatprep.mubr.f32.mxu0 0.0
        %2160 = vmatmul.mubr.f32.gmra.mxu0 %v1915
        %v2161 = vpop.f32.mrf.mxu0
        %v2162 = vadd.f32 0.0, %v2161
        %v2163 = vpop.f32.mrf.mxu0
        %2164 = vdwg.mxu0
        %v2165 = vadd.f32 %v1771, %v1987
        %v2166 = vadd.f32 %v1772, %v1992
        %v2167 = vadd.f32 %v1773, %v1997
        %v2168 = vadd.f32 %v1774, %v2002
        %v2169 = vadd.f32 %v1775, %v2007
        %v2170 = vadd.f32 %v1776, %v2012
        %v2171 = vadd.f32 %v1777, %v2017
        %v2172 = vadd.f32 %v1778, %v2022
        %v2173 = vadd.f32 %v1779, %v2027
        %v2174 = vadd.f32 %v1780, %v2032
        %v2175 = vadd.f32 %v1781, %v2037
        %v2176 = vadd.f32 %v1782, %v2042
        %v2177 = vadd.f32 %v1783, %v2047
        %v2178 = vadd.f32 %v1784, %v2052
        %v2179 = vadd.f32 %v1785, %v2057
        %v2180 = vadd.f32 %v1786, %v2062
        %v2181 = vadd.f32 %v1787, %v2067
        %v2182 = vadd.f32 %v1788, %v2072
        %v2183 = vadd.f32 %v1789, %v2077
        %v2184 = vadd.f32 %v1790, %v2082
        %v2185 = vadd.f32 %v1791, %v2087
        %v2186 = vadd.f32 %v1792, %v2092
        %v2187 = vadd.f32 %v1793, %v2097
        %v2188 = vadd.f32 %v1794, %v2102
        %v2189 = vadd.f32 %v1795, %v2107
        %v2190 = vadd.f32 %v1796, %v2112
        %v2191 = vadd.f32 %v1797, %v2117
        %v2192 = vadd.f32 %v1798, %v2122
        %v2193 = vadd.f32 %v1799, %v2127
        %v2194 = vadd.f32 %v1800, %v2132
        %v2195 = vadd.f32 %v1801, %v2137
        %v2196 = vadd.f32 %v1802, %v2142
        %v2197 = vadd.f32 %v1803, %v2147
        %v2198 = vadd.f32 %v1804, %v2152
        %v2199 = vadd.f32 %v1805, %v2157
        %v2200 = vadd.f32 %v1806, %v2162
        %2201 = vst [vmem:[#allocation2] sm:$0xff] %v2165
        %2202 = vst [vmem:[#allocation2 + $0x8] sm:$0xff] %v2166
        %2203 = vst [vmem:[#allocation2 + $0x10] sm:$0xff] %v2167
        %2204 = vst [vmem:[#allocation2 + $0x18] sm:$0xff] %v2168
        %2205 = vst [vmem:[#allocation2 + $0x20] sm:$0xff] %v2169
        %2206 = vst [vmem:[#allocation2 + $0x28] sm:$0xff] %v2170
        %2207 = vst [vmem:[#allocation2 + $0x30] sm:$0xff] %v2171
        %2208 = vst [vmem:[#allocation2 + $0x38] sm:$0xff] %v2172
        %2209 = vst [vmem:[#allocation2 + $0x40] sm:$0xff] %v2173
        %2210 = vst [vmem:[#allocation2 + $0x48] sm:$0xff] %v2174
        %2211 = vst [vmem:[#allocation2 + $0x50] sm:$0xff] %v2175
        %2212 = vst [vmem:[#allocation2 + $0x58] sm:$0xff] %v2176
        %2213 = vst [vmem:[#allocation2 + $0x60] sm:$0xff] %v2177
        %2214 = vst [vmem:[#allocation2 + $0x68] sm:$0xff] %v2178
        %2215 = vst [vmem:[#allocation2 + $0x70] sm:$0xff] %v2179
        %2216 = vst [vmem:[#allocation2 + $0x78] sm:$0xff] %v2180
        %2217 = vst [vmem:[#allocation2 + $0x80] sm:$0xff] %v2181
        %2218 = vst [vmem:[#allocation2 + $0x88] sm:$0xff] %v2182
        %2219 = vst [vmem:[#allocation2 + $0x90] sm:$0xff] %v2183
        %2220 = vst [vmem:[#allocation2 + $0x98] sm:$0xff] %v2184
        %2221 = vst [vmem:[#allocation2 + $0xa0] sm:$0xff] %v2185
        %2222 = vst [vmem:[#allocation2 + $0xa8] sm:$0xff] %v2186
        %2223 = vst [vmem:[#allocation2 + $0xb0] sm:$0xff] %v2187
        %2224 = vst [vmem:[#allocation2 + $0xb8] sm:$0xff] %v2188
        %2225 = vst [vmem:[#allocation2 + $0xc0] sm:$0xff] %v2189
        %2226 = vst [vmem:[#allocation2 + $0xc8] sm:$0xff] %v2190
        %2227 = vst [vmem:[#allocation2 + $0xd0] sm:$0xff] %v2191
        %2228 = vst [vmem:[#allocation2 + $0xd8] sm:$0xff] %v2192
        %2229 = vst [vmem:[#allocation2 + $0xe0] sm:$0xff] %v2193
        %2230 = vst [vmem:[#allocation2 + $0xe8] sm:$0xff] %v2194
        %2231 = vst [vmem:[#allocation2 + $0xf0] sm:$0xff] %v2195
        %2232 = vst [vmem:[#allocation2 + $0xf8] sm:$0xff] %v2196
        %2233 = vst [vmem:[#allocation2 + $0x100] sm:$0xff] %v2197
        %2234 = vst [vmem:[#allocation2 + $0x108] sm:$0xff] %v2198
        %2235 = vst [vmem:[#allocation2 + $0x110] sm:$0xff] %v2199
        %2236 = vst [vmem:[#allocation2 + $0x118] sm:$0xff] %v2200
        %s2237 = sadd.s32 %s184, 19
        %s2238 = scalar_lea.vmem %s182, %s2237
        %v2239 = vld [vmem:[%s2238] sm:$0xff]
        %v2240 = vld [vmem:[%s2238 + $0x8] sm:$0xff]
        %v2241 = vld [vmem:[%s2238 + $0x10] sm:$0xff]
        %v2242 = vld [vmem:[%s2238 + $0x18] sm:$0xff]
        %v2243 = vld [vmem:[%s2238 + $0x20] sm:$0xff]
        %v2244 = vld [vmem:[%s2238 + $0x28] sm:$0xff]
        %v2245 = vld [vmem:[%s2238 + $0x30] sm:$0xff]
        %v2246 = vld [vmem:[%s2238 + $0x38] sm:$0xff]
        %v2247 = vld [vmem:[%s2238 + $0x40] sm:$0xff]
        %v2248 = vld [vmem:[%s2238 + $0x48] sm:$0xff]
        %v2249 = vld [vmem:[%s2238 + $0x50] sm:$0xff]
        %v2250 = vld [vmem:[%s2238 + $0x58] sm:$0xff]
        %v2251 = vld [vmem:[%s2238 + $0x60] sm:$0xff]
        %v2252 = vld [vmem:[%s2238 + $0x68] sm:$0xff]
        %v2253 = vld [vmem:[%s2238 + $0x70] sm:$0xff]
        %v2254 = vld [vmem:[%s2238 + $0x78] sm:$0xff]
        %v2255 = vld [vmem:[%s2238 + $0x80] sm:$0xff]
        %v2256 = vld [vmem:[%s2238 + $0x88] sm:$0xff]
        %v2257 = vld [vmem:[%s2238 + $0x90] sm:$0xff]
        %v2258 = vld [vmem:[%s2238 + $0x98] sm:$0xff]
        %v2259 = vld [vmem:[%s2238 + $0xa0] sm:$0xff]
        %v2260 = vld [vmem:[%s2238 + $0xa8] sm:$0xff]
        %v2261 = vld [vmem:[%s2238 + $0xb0] sm:$0xff]
        %v2262 = vld [vmem:[%s2238 + $0xb8] sm:$0xff]
        %v2263 = vld [vmem:[%s2238 + $0xc0] sm:$0xff]
        %v2264 = vld [vmem:[%s2238 + $0xc8] sm:$0xff]
        %v2265 = vld [vmem:[%s2238 + $0xd0] sm:$0xff]
        %v2266 = vld [vmem:[%s2238 + $0xd8] sm:$0xff]
        %v2267 = vld [vmem:[%s2238 + $0xe0] sm:$0xff]
        %v2268 = vld [vmem:[%s2238 + $0xe8] sm:$0xff]
        %v2269 = vld [vmem:[%s2238 + $0xf0] sm:$0xff]
        %v2270 = vld [vmem:[%s2238 + $0xf8] sm:$0xff]
        %v2271 = vld [vmem:[%s2238 + $0x100] sm:$0xff]
        %v2272 = vld [vmem:[%s2238 + $0x108] sm:$0xff]
        %v2273 = vld [vmem:[%s2238 + $0x110] sm:$0xff]
        %v2274 = vld [vmem:[%s2238 + $0x118] sm:$0xff]
        %v2275 = vld [vmem:[#allocation2] sm:$0xff]
        %v2276 = vld [vmem:[#allocation2 + $0x8] sm:$0xff]
        %v2277 = vld [vmem:[#allocation2 + $0x10] sm:$0xff]
        %v2278 = vld [vmem:[#allocation2 + $0x18] sm:$0xff]
        %v2279 = vld [vmem:[#allocation2 + $0x20] sm:$0xff]
        %v2280 = vld [vmem:[#allocation2 + $0x28] sm:$0xff]
        %v2281 = vld [vmem:[#allocation2 + $0x30] sm:$0xff]
        %v2282 = vld [vmem:[#allocation2 + $0x38] sm:$0xff]
        %v2283 = vld [vmem:[#allocation2 + $0x40] sm:$0xff]
        %v2284 = vld [vmem:[#allocation2 + $0x48] sm:$0xff]
        %v2285 = vld [vmem:[#allocation2 + $0x50] sm:$0xff]
        %v2286 = vld [vmem:[#allocation2 + $0x58] sm:$0xff]
        %v2287 = vld [vmem:[#allocation2 + $0x60] sm:$0xff]
        %v2288 = vld [vmem:[#allocation2 + $0x68] sm:$0xff]
        %v2289 = vld [vmem:[#allocation2 + $0x70] sm:$0xff]
        %v2290 = vld [vmem:[#allocation2 + $0x78] sm:$0xff]
        %v2291 = vld [vmem:[#allocation2 + $0x80] sm:$0xff]
        %v2292 = vld [vmem:[#allocation2 + $0x88] sm:$0xff]
        %v2293 = vld [vmem:[#allocation2 + $0x90] sm:$0xff]
        %v2294 = vld [vmem:[#allocation2 + $0x98] sm:$0xff]
        %v2295 = vld [vmem:[#allocation2 + $0xa0] sm:$0xff]
        %v2296 = vld [vmem:[#allocation2 + $0xa8] sm:$0xff]
        %v2297 = vld [vmem:[#allocation2 + $0xb0] sm:$0xff]
        %v2298 = vld [vmem:[#allocation2 + $0xb8] sm:$0xff]
        %v2299 = vld [vmem:[#allocation2 + $0xc0] sm:$0xff]
        %v2300 = vld [vmem:[#allocation2 + $0xc8] sm:$0xff]
        %v2301 = vld [vmem:[#allocation2 + $0xd0] sm:$0xff]
        %v2302 = vld [vmem:[#allocation2 + $0xd8] sm:$0xff]
        %v2303 = vld [vmem:[#allocation2 + $0xe0] sm:$0xff]
        %v2304 = vld [vmem:[#allocation2 + $0xe8] sm:$0xff]
        %v2305 = vld [vmem:[#allocation2 + $0xf0] sm:$0xff]
        %v2306 = vld [vmem:[#allocation2 + $0xf8] sm:$0xff]
        %v2307 = vld [vmem:[#allocation2 + $0x100] sm:$0xff]
        %v2308 = vld [vmem:[#allocation2 + $0x108] sm:$0xff]
        %v2309 = vld [vmem:[#allocation2 + $0x110] sm:$0xff]
        %v2310 = vld [vmem:[#allocation2 + $0x118] sm:$0xff]
        %s2311 = scalar_lea.vmem %s1, 16
        %v2312 = vld [vmem:[%s2311] sm:$0xf]
        %v2314 = vsel %vm295, %v2239, 0
        %v2317 = vsel %vm295, %v2240, 0
        %v2320 = vsel %vm295, %v2241, 0
        %v2323 = vsel %vm295, %v2242, 0
        %v2326 = vsel %vm295, %v2243, 0
        %v2329 = vsel %vm295, %v2244, 0
        %v2332 = vsel %vm295, %v2245, 0
        %v2335 = vsel %vm295, %v2246, 0
        %v2338 = vsel %vm295, %v2247, 0
        %v2341 = vsel %vm295, %v2248, 0
        %v2344 = vsel %vm295, %v2249, 0
        %v2347 = vsel %vm295, %v2250, 0
        %v2350 = vsel %vm295, %v2251, 0
        %v2353 = vsel %vm295, %v2252, 0
        %v2356 = vsel %vm295, %v2253, 0
        %v2359 = vsel %vm295, %v2254, 0
        %v2362 = vsel %vm295, %v2255, 0
        %v2365 = vsel %vm295, %v2256, 0
        %v2368 = vsel %vm295, %v2257, 0
        %v2371 = vsel %vm295, %v2258, 0
        %v2374 = vsel %vm295, %v2259, 0
        %v2377 = vsel %vm295, %v2260, 0
        %v2380 = vsel %vm295, %v2261, 0
        %v2383 = vsel %vm295, %v2262, 0
        %v2386 = vsel %vm295, %v2263, 0
        %v2389 = vsel %vm295, %v2264, 0
        %v2392 = vsel %vm295, %v2265, 0
        %v2395 = vsel %vm295, %v2266, 0
        %v2398 = vsel %vm295, %v2267, 0
        %v2401 = vsel %vm295, %v2268, 0
        %v2404 = vsel %vm295, %v2269, 0
        %v2407 = vsel %vm295, %v2270, 0
        %v2410 = vsel %vm295, %v2271, 0
        %v2413 = vsel %vm295, %v2272, 0
        %v2416 = vsel %vm295, %v2273, 0
        %v2419 = vsel %vm295, %v2274, 0
        %v2422 = vsel %vm404, %v2312, 0
        %2424 = vmatprep.subr.mxu0 0.0
        %2425 = vmatpush1.msra.mxu0 0.0
        %2426 = vmatprep.subr.mxu0 0.0
        %2427 = vmatpush1.msra.mxu0 0.0
        %2428 = vmatprep.subr.mxu0 0.0
        %2429 = vmatpush1.msra.mxu0 0.0
        %2430 = vmatprep.subr.mxu0 0.0
        %2431 = vmatpush1.msra.mxu0 0.0
        %2432 = vmatprep.subr.mxu0 0.0
        %2433 = vmatpush1.msra.mxu0 0.0
        %2434 = vmatprep.subr.mxu0 0.0
        %2435 = vmatpush1.msra.mxu0 0.0
        %2436 = vmatprep.subr.mxu0 0.0
        %2437 = vmatpush1.msra.mxu0 0.0
        %2438 = vmatprep.subr.mxu0 0.0
        %2439 = vmatpush1.msra.mxu0 0.0
        %2440 = vmatprep.subr.mxu0 0.0
        %2441 = vmatpush1.msra.mxu0 0.0
        %2442 = vmatprep.subr.mxu0 0.0
        %2443 = vmatpush1.msra.mxu0 0.0
        %2444 = vmatprep.subr.mxu0 0.0
        %2445 = vmatpush1.msra.mxu0 0.0
        %2446 = vmatprep.subr.mxu0 0.0
        %2447 = vmatpush1.msra.mxu0 0.0
        %2448 = vmatprep.subr.mxu0 0.0
        %2449 = vmatpush1.msra.mxu0 0.0
        %2450 = vmatprep.subr.mxu0 0.0
        %2451 = vmatpush1.msra.mxu0 0.0
        %2452 = vmatprep.subr.mxu0 0.0
        %2453 = vmatpush1.msra.mxu0 0.0
        %2454 = vmatprep.subr.mxu0 0.0
        %2455 = vmatpush1.msra.mxu0 %v2422
        %2456 = vmatprep.subr.mxu0 0.0
        %2457 = vmatpush2.msra.mxu0 0.0
        %2458 = vmatprep.subr.mxu0 0.0
        %2459 = vmatpush2.msra.mxu0 0.0
        %2460 = vmatprep.subr.mxu0 0.0
        %2461 = vmatpush2.msra.mxu0 0.0
        %2462 = vmatprep.subr.mxu0 0.0
        %2463 = vmatpush2.msra.mxu0 0.0
        %2464 = vmatprep.subr.mxu0 0.0
        %2465 = vmatpush2.msra.mxu0 0.0
        %2466 = vmatprep.subr.mxu0 0.0
        %2467 = vmatpush2.msra.mxu0 0.0
        %2468 = vmatprep.subr.mxu0 0.0
        %2469 = vmatpush2.msra.mxu0 0.0
        %2470 = vmatprep.subr.mxu0 0.0
        %2471 = vmatpush2.msra.mxu0 0.0
        %2472 = vmatprep.subr.mxu0 0.0
        %2473 = vmatpush2.msra.mxu0 0.0
        %2474 = vmatprep.subr.mxu0 0.0
        %2475 = vmatpush2.msra.mxu0 0.0
        %2476 = vmatprep.subr.mxu0 0.0
        %2477 = vmatpush2.msra.mxu0 0.0
        %2478 = vmatprep.subr.mxu0 0.0
        %2479 = vmatpush2.msra.mxu0 0.0
        %2480 = vmatprep.subr.mxu0 0.0
        %2481 = vmatpush2.msra.mxu0 0.0
        %2482 = vmatprep.subr.mxu0 0.0
        %2483 = vmatpush2.msra.mxu0 0.0
        %2484 = vmatprep.subr.mxu0 0.0
        %2485 = vmatpush2.msra.mxu0 0.0
        %2486 = vmatprep.subr.mxu0 0.0
        %2487 = vmatpush2.msra.mxu0 0.0
        %2488 = vmatprep.mubr.f32.mxu0 0.0
        %2489 = vmatmul.mubr.f32.gmra.mxu0 %v2314
        %v2490 = vpop.f32.mrf.mxu0
        %v2491 = vadd.f32 0.0, %v2490
        %v2492 = vpop.f32.mrf.mxu0
        %2493 = vmatprep.mubr.f32.mxu0 0.0
        %2494 = vmatmul.mubr.f32.gmra.mxu0 %v2317
        %v2495 = vpop.f32.mrf.mxu0
        %v2496 = vadd.f32 0.0, %v2495
        %v2497 = vpop.f32.mrf.mxu0
        %2498 = vmatprep.mubr.f32.mxu0 0.0
        %2499 = vmatmul.mubr.f32.gmra.mxu0 %v2320
        %v2500 = vpop.f32.mrf.mxu0
        %v2501 = vadd.f32 0.0, %v2500
        %v2502 = vpop.f32.mrf.mxu0
        %2503 = vmatprep.mubr.f32.mxu0 0.0
        %2504 = vmatmul.mubr.f32.gmra.mxu0 %v2323
        %v2505 = vpop.f32.mrf.mxu0
        %v2506 = vadd.f32 0.0, %v2505
        %v2507 = vpop.f32.mrf.mxu0
        %2508 = vmatprep.mubr.f32.mxu0 0.0
        %2509 = vmatmul.mubr.f32.gmra.mxu0 %v2326
        %v2510 = vpop.f32.mrf.mxu0
        %v2511 = vadd.f32 0.0, %v2510
        %v2512 = vpop.f32.mrf.mxu0
        %2513 = vmatprep.mubr.f32.mxu0 0.0
        %2514 = vmatmul.mubr.f32.gmra.mxu0 %v2329
        %v2515 = vpop.f32.mrf.mxu0
        %v2516 = vadd.f32 0.0, %v2515
        %v2517 = vpop.f32.mrf.mxu0
        %2518 = vmatprep.mubr.f32.mxu0 0.0
        %2519 = vmatmul.mubr.f32.gmra.mxu0 %v2332
        %v2520 = vpop.f32.mrf.mxu0
        %v2521 = vadd.f32 0.0, %v2520
        %v2522 = vpop.f32.mrf.mxu0
        %2523 = vmatprep.mubr.f32.mxu0 0.0
        %2524 = vmatmul.mubr.f32.gmra.mxu0 %v2335
        %v2525 = vpop.f32.mrf.mxu0
        %v2526 = vadd.f32 0.0, %v2525
        %v2527 = vpop.f32.mrf.mxu0
        %2528 = vmatprep.mubr.f32.mxu0 0.0
        %2529 = vmatmul.mubr.f32.gmra.mxu0 %v2338
        %v2530 = vpop.f32.mrf.mxu0
        %v2531 = vadd.f32 0.0, %v2530
        %v2532 = vpop.f32.mrf.mxu0
        %2533 = vmatprep.mubr.f32.mxu0 0.0
        %2534 = vmatmul.mubr.f32.gmra.mxu0 %v2341
        %v2535 = vpop.f32.mrf.mxu0
        %v2536 = vadd.f32 0.0, %v2535
        %v2537 = vpop.f32.mrf.mxu0
        %2538 = vmatprep.mubr.f32.mxu0 0.0
        %2539 = vmatmul.mubr.f32.gmra.mxu0 %v2344
        %v2540 = vpop.f32.mrf.mxu0
        %v2541 = vadd.f32 0.0, %v2540
        %v2542 = vpop.f32.mrf.mxu0
        %2543 = vmatprep.mubr.f32.mxu0 0.0
        %2544 = vmatmul.mubr.f32.gmra.mxu0 %v2347
        %v2545 = vpop.f32.mrf.mxu0
        %v2546 = vadd.f32 0.0, %v2545
        %v2547 = vpop.f32.mrf.mxu0
        %2548 = vmatprep.mubr.f32.mxu0 0.0
        %2549 = vmatmul.mubr.f32.gmra.mxu0 %v2350
        %v2550 = vpop.f32.mrf.mxu0
        %v2551 = vadd.f32 0.0, %v2550
        %v2552 = vpop.f32.mrf.mxu0
        %2553 = vmatprep.mubr.f32.mxu0 0.0
        %2554 = vmatmul.mubr.f32.gmra.mxu0 %v2353
        %v2555 = vpop.f32.mrf.mxu0
        %v2556 = vadd.f32 0.0, %v2555
        %v2557 = vpop.f32.mrf.mxu0
        %2558 = vmatprep.mubr.f32.mxu0 0.0
        %2559 = vmatmul.mubr.f32.gmra.mxu0 %v2356
        %v2560 = vpop.f32.mrf.mxu0
        %v2561 = vadd.f32 0.0, %v2560
        %v2562 = vpop.f32.mrf.mxu0
        %2563 = vmatprep.mubr.f32.mxu0 0.0
        %2564 = vmatmul.mubr.f32.gmra.mxu0 %v2359
        %v2565 = vpop.f32.mrf.mxu0
        %v2566 = vadd.f32 0.0, %v2565
        %v2567 = vpop.f32.mrf.mxu0
        %2568 = vmatprep.mubr.f32.mxu0 0.0
        %2569 = vmatmul.mubr.f32.gmra.mxu0 %v2362
        %v2570 = vpop.f32.mrf.mxu0
        %v2571 = vadd.f32 0.0, %v2570
        %v2572 = vpop.f32.mrf.mxu0
        %2573 = vmatprep.mubr.f32.mxu0 0.0
        %2574 = vmatmul.mubr.f32.gmra.mxu0 %v2365
        %v2575 = vpop.f32.mrf.mxu0
        %v2576 = vadd.f32 0.0, %v2575
        %v2577 = vpop.f32.mrf.mxu0
        %2578 = vmatprep.mubr.f32.mxu0 0.0
        %2579 = vmatmul.mubr.f32.gmra.mxu0 %v2368
        %v2580 = vpop.f32.mrf.mxu0
        %v2581 = vadd.f32 0.0, %v2580
        %v2582 = vpop.f32.mrf.mxu0
        %2583 = vmatprep.mubr.f32.mxu0 0.0
        %2584 = vmatmul.mubr.f32.gmra.mxu0 %v2371
        %v2585 = vpop.f32.mrf.mxu0
        %v2586 = vadd.f32 0.0, %v2585
        %v2587 = vpop.f32.mrf.mxu0
        %2588 = vmatprep.mubr.f32.mxu0 0.0
        %2589 = vmatmul.mubr.f32.gmra.mxu0 %v2374
        %v2590 = vpop.f32.mrf.mxu0
        %v2591 = vadd.f32 0.0, %v2590
        %v2592 = vpop.f32.mrf.mxu0
        %2593 = vmatprep.mubr.f32.mxu0 0.0
        %2594 = vmatmul.mubr.f32.gmra.mxu0 %v2377
        %v2595 = vpop.f32.mrf.mxu0
        %v2596 = vadd.f32 0.0, %v2595
        %v2597 = vpop.f32.mrf.mxu0
        %2598 = vmatprep.mubr.f32.mxu0 0.0
        %2599 = vmatmul.mubr.f32.gmra.mxu0 %v2380
        %v2600 = vpop.f32.mrf.mxu0
        %v2601 = vadd.f32 0.0, %v2600
        %v2602 = vpop.f32.mrf.mxu0
        %2603 = vmatprep.mubr.f32.mxu0 0.0
        %2604 = vmatmul.mubr.f32.gmra.mxu0 %v2383
        %v2605 = vpop.f32.mrf.mxu0
        %v2606 = vadd.f32 0.0, %v2605
        %v2607 = vpop.f32.mrf.mxu0
        %2608 = vmatprep.mubr.f32.mxu0 0.0
        %2609 = vmatmul.mubr.f32.gmra.mxu0 %v2386
        %v2610 = vpop.f32.mrf.mxu0
        %v2611 = vadd.f32 0.0, %v2610
        %v2612 = vpop.f32.mrf.mxu0
        %2613 = vmatprep.mubr.f32.mxu0 0.0
        %2614 = vmatmul.mubr.f32.gmra.mxu0 %v2389
        %v2615 = vpop.f32.mrf.mxu0
        %v2616 = vadd.f32 0.0, %v2615
        %v2617 = vpop.f32.mrf.mxu0
        %2618 = vmatprep.mubr.f32.mxu0 0.0
        %2619 = vmatmul.mubr.f32.gmra.mxu0 %v2392
        %v2620 = vpop.f32.mrf.mxu0
        %v2621 = vadd.f32 0.0, %v2620
        %v2622 = vpop.f32.mrf.mxu0
        %2623 = vmatprep.mubr.f32.mxu0 0.0
        %2624 = vmatmul.mubr.f32.gmra.mxu0 %v2395
        %v2625 = vpop.f32.mrf.mxu0
        %v2626 = vadd.f32 0.0, %v2625
        %v2627 = vpop.f32.mrf.mxu0
        %2628 = vmatprep.mubr.f32.mxu0 0.0
        %2629 = vmatmul.mubr.f32.gmra.mxu0 %v2398
        %v2630 = vpop.f32.mrf.mxu0
        %v2631 = vadd.f32 0.0, %v2630
        %v2632 = vpop.f32.mrf.mxu0
        %2633 = vmatprep.mubr.f32.mxu0 0.0
        %2634 = vmatmul.mubr.f32.gmra.mxu0 %v2401
        %v2635 = vpop.f32.mrf.mxu0
        %v2636 = vadd.f32 0.0, %v2635
        %v2637 = vpop.f32.mrf.mxu0
        %2638 = vmatprep.mubr.f32.mxu0 0.0
        %2639 = vmatmul.mubr.f32.gmra.mxu0 %v2404
        %v2640 = vpop.f32.mrf.mxu0
        %v2641 = vadd.f32 0.0, %v2640
        %v2642 = vpop.f32.mrf.mxu0
        %2643 = vmatprep.mubr.f32.mxu0 0.0
        %2644 = vmatmul.mubr.f32.gmra.mxu0 %v2407
        %v2645 = vpop.f32.mrf.mxu0
        %v2646 = vadd.f32 0.0, %v2645
        %v2647 = vpop.f32.mrf.mxu0
        %2648 = vmatprep.mubr.f32.mxu0 0.0
        %2649 = vmatmul.mubr.f32.gmra.mxu0 %v2410
        %v2650 = vpop.f32.mrf.mxu0
        %v2651 = vadd.f32 0.0, %v2650
        %v2652 = vpop.f32.mrf.mxu0
        %2653 = vmatprep.mubr.f32.mxu0 0.0
        %2654 = vmatmul.mubr.f32.gmra.mxu0 %v2413
        %v2655 = vpop.f32.mrf.mxu0
        %v2656 = vadd.f32 0.0, %v2655
        %v2657 = vpop.f32.mrf.mxu0
        %2658 = vmatprep.mubr.f32.mxu0 0.0
        %2659 = vmatmul.mubr.f32.gmra.mxu0 %v2416
        %v2660 = vpop.f32.mrf.mxu0
        %v2661 = vadd.f32 0.0, %v2660
        %v2662 = vpop.f32.mrf.mxu0
        %2663 = vmatprep.mubr.f32.mxu0 0.0
        %2664 = vmatmul.mubr.f32.gmra.mxu0 %v2419
        %v2665 = vpop.f32.mrf.mxu0
        %v2666 = vadd.f32 0.0, %v2665
        %v2667 = vpop.f32.mrf.mxu0
        %2668 = vdwg.mxu0
        %v2669 = vadd.f32 %v2275, %v2491
        %v2670 = vadd.f32 %v2276, %v2496
        %v2671 = vadd.f32 %v2277, %v2501
        %v2672 = vadd.f32 %v2278, %v2506
        %v2673 = vadd.f32 %v2279, %v2511
        %v2674 = vadd.f32 %v2280, %v2516
        %v2675 = vadd.f32 %v2281, %v2521
        %v2676 = vadd.f32 %v2282, %v2526
        %v2677 = vadd.f32 %v2283, %v2531
        %v2678 = vadd.f32 %v2284, %v2536
        %v2679 = vadd.f32 %v2285, %v2541
        %v2680 = vadd.f32 %v2286, %v2546
        %v2681 = vadd.f32 %v2287, %v2551
        %v2682 = vadd.f32 %v2288, %v2556
        %v2683 = vadd.f32 %v2289, %v2561
        %v2684 = vadd.f32 %v2290, %v2566
        %v2685 = vadd.f32 %v2291, %v2571
        %v2686 = vadd.f32 %v2292, %v2576
        %v2687 = vadd.f32 %v2293, %v2581
        %v2688 = vadd.f32 %v2294, %v2586
        %v2689 = vadd.f32 %v2295, %v2591
        %v2690 = vadd.f32 %v2296, %v2596
        %v2691 = vadd.f32 %v2297, %v2601
        %v2692 = vadd.f32 %v2298, %v2606
        %v2693 = vadd.f32 %v2299, %v2611
        %v2694 = vadd.f32 %v2300, %v2616
        %v2695 = vadd.f32 %v2301, %v2621
        %v2696 = vadd.f32 %v2302, %v2626
        %v2697 = vadd.f32 %v2303, %v2631
        %v2698 = vadd.f32 %v2304, %v2636
        %v2699 = vadd.f32 %v2305, %v2641
        %v2700 = vadd.f32 %v2306, %v2646
        %v2701 = vadd.f32 %v2307, %v2651
        %v2702 = vadd.f32 %v2308, %v2656
        %v2703 = vadd.f32 %v2309, %v2661
        %v2704 = vadd.f32 %v2310, %v2666
        %2705 = vst [vmem:[#allocation2] sm:$0xff] %v2669
        %2706 = vst [vmem:[#allocation2 + $0x8] sm:$0xff] %v2670
        %2707 = vst [vmem:[#allocation2 + $0x10] sm:$0xff] %v2671
        %2708 = vst [vmem:[#allocation2 + $0x18] sm:$0xff] %v2672
        %2709 = vst [vmem:[#allocation2 + $0x20] sm:$0xff] %v2673
        %2710 = vst [vmem:[#allocation2 + $0x28] sm:$0xff] %v2674
        %2711 = vst [vmem:[#allocation2 + $0x30] sm:$0xff] %v2675
        %2712 = vst [vmem:[#allocation2 + $0x38] sm:$0xff] %v2676
        %2713 = vst [vmem:[#allocation2 + $0x40] sm:$0xff] %v2677
        %2714 = vst [vmem:[#allocation2 + $0x48] sm:$0xff] %v2678
        %2715 = vst [vmem:[#allocation2 + $0x50] sm:$0xff] %v2679
        %2716 = vst [vmem:[#allocation2 + $0x58] sm:$0xff] %v2680
        %2717 = vst [vmem:[#allocation2 + $0x60] sm:$0xff] %v2681
        %2718 = vst [vmem:[#allocation2 + $0x68] sm:$0xff] %v2682
        %2719 = vst [vmem:[#allocation2 + $0x70] sm:$0xff] %v2683
        %2720 = vst [vmem:[#allocation2 + $0x78] sm:$0xff] %v2684
        %2721 = vst [vmem:[#allocation2 + $0x80] sm:$0xff] %v2685
        %2722 = vst [vmem:[#allocation2 + $0x88] sm:$0xff] %v2686
        %2723 = vst [vmem:[#allocation2 + $0x90] sm:$0xff] %v2687
        %2724 = vst [vmem:[#allocation2 + $0x98] sm:$0xff] %v2688
        %2725 = vst [vmem:[#allocation2 + $0xa0] sm:$0xff] %v2689
        %2726 = vst [vmem:[#allocation2 + $0xa8] sm:$0xff] %v2690
        %2727 = vst [vmem:[#allocation2 + $0xb0] sm:$0xff] %v2691
        %2728 = vst [vmem:[#allocation2 + $0xb8] sm:$0xff] %v2692
        %2729 = vst [vmem:[#allocation2 + $0xc0] sm:$0xff] %v2693
        %2730 = vst [vmem:[#allocation2 + $0xc8] sm:$0xff] %v2694
        %2731 = vst [vmem:[#allocation2 + $0xd0] sm:$0xff] %v2695
        %2732 = vst [vmem:[#allocation2 + $0xd8] sm:$0xff] %v2696
        %2733 = vst [vmem:[#allocation2 + $0xe0] sm:$0xff] %v2697
        %2734 = vst [vmem:[#allocation2 + $0xe8] sm:$0xff] %v2698
        %2735 = vst [vmem:[#allocation2 + $0xf0] sm:$0xff] %v2699
        %2736 = vst [vmem:[#allocation2 + $0xf8] sm:$0xff] %v2700
        %2737 = vst [vmem:[#allocation2 + $0x100] sm:$0xff] %v2701
        %2738 = vst [vmem:[#allocation2 + $0x108] sm:$0xff] %v2702
        %2739 = vst [vmem:[#allocation2 + $0x110] sm:$0xff] %v2703
        %2740 = vst [vmem:[#allocation2 + $0x118] sm:$0xff] %v2704
        %s2741 = sadd.s32 %s184, 20
        %s2742 = scalar_lea.vmem %s182, %s2741
        %v2743 = vld [vmem:[%s2742] sm:$0xff]
        %v2744 = vld [vmem:[%s2742 + $0x8] sm:$0xff]
        %v2745 = vld [vmem:[%s2742 + $0x10] sm:$0xff]
        %v2746 = vld [vmem:[%s2742 + $0x18] sm:$0xff]
        %v2747 = vld [vmem:[%s2742 + $0x20] sm:$0xff]
        %v2748 = vld [vmem:[%s2742 + $0x28] sm:$0xff]
        %v2749 = vld [vmem:[%s2742 + $0x30] sm:$0xff]
        %v2750 = vld [vmem:[%s2742 + $0x38] sm:$0xff]
        %v2751 = vld [vmem:[%s2742 + $0x40] sm:$0xff]
        %v2752 = vld [vmem:[%s2742 + $0x48] sm:$0xff]
        %v2753 = vld [vmem:[%s2742 + $0x50] sm:$0xff]
        %v2754 = vld [vmem:[%s2742 + $0x58] sm:$0xff]
        %v2755 = vld [vmem:[%s2742 + $0x60] sm:$0xff]
        %v2756 = vld [vmem:[%s2742 + $0x68] sm:$0xff]
        %v2757 = vld [vmem:[%s2742 + $0x70] sm:$0xff]
        %v2758 = vld [vmem:[%s2742 + $0x78] sm:$0xff]
        %v2759 = vld [vmem:[%s2742 + $0x80] sm:$0xff]
        %v2760 = vld [vmem:[%s2742 + $0x88] sm:$0xff]
        %v2761 = vld [vmem:[%s2742 + $0x90] sm:$0xff]
        %v2762 = vld [vmem:[%s2742 + $0x98] sm:$0xff]
        %v2763 = vld [vmem:[%s2742 + $0xa0] sm:$0xff]
        %v2764 = vld [vmem:[%s2742 + $0xa8] sm:$0xff]
        %v2765 = vld [vmem:[%s2742 + $0xb0] sm:$0xff]
        %v2766 = vld [vmem:[%s2742 + $0xb8] sm:$0xff]
        %v2767 = vld [vmem:[%s2742 + $0xc0] sm:$0xff]
        %v2768 = vld [vmem:[%s2742 + $0xc8] sm:$0xff]
        %v2769 = vld [vmem:[%s2742 + $0xd0] sm:$0xff]
        %v2770 = vld [vmem:[%s2742 + $0xd8] sm:$0xff]
        %v2771 = vld [vmem:[%s2742 + $0xe0] sm:$0xff]
        %v2772 = vld [vmem:[%s2742 + $0xe8] sm:$0xff]
        %v2773 = vld [vmem:[%s2742 + $0xf0] sm:$0xff]
        %v2774 = vld [vmem:[%s2742 + $0xf8] sm:$0xff]
        %v2775 = vld [vmem:[%s2742 + $0x100] sm:$0xff]
        %v2776 = vld [vmem:[%s2742 + $0x108] sm:$0xff]
        %v2777 = vld [vmem:[%s2742 + $0x110] sm:$0xff]
        %v2778 = vld [vmem:[%s2742 + $0x118] sm:$0xff]
        %v2779 = vld [vmem:[#allocation2] sm:$0xff]
        %v2780 = vld [vmem:[#allocation2 + $0x8] sm:$0xff]
        %v2781 = vld [vmem:[#allocation2 + $0x10] sm:$0xff]
        %v2782 = vld [vmem:[#allocation2 + $0x18] sm:$0xff]
        %v2783 = vld [vmem:[#allocation2 + $0x20] sm:$0xff]
        %v2784 = vld [vmem:[#allocation2 + $0x28] sm:$0xff]
        %v2785 = vld [vmem:[#allocation2 + $0x30] sm:$0xff]
        %v2786 = vld [vmem:[#allocation2 + $0x38] sm:$0xff]
        %v2787 = vld [vmem:[#allocation2 + $0x40] sm:$0xff]
        %v2788 = vld [vmem:[#allocation2 + $0x48] sm:$0xff]
        %v2789 = vld [vmem:[#allocation2 + $0x50] sm:$0xff]
        %v2790 = vld [vmem:[#allocation2 + $0x58] sm:$0xff]
        %v2791 = vld [vmem:[#allocation2 + $0x60] sm:$0xff]
        %v2792 = vld [vmem:[#allocation2 + $0x68] sm:$0xff]
        %v2793 = vld [vmem:[#allocation2 + $0x70] sm:$0xff]
        %v2794 = vld [vmem:[#allocation2 + $0x78] sm:$0xff]
        %v2795 = vld [vmem:[#allocation2 + $0x80] sm:$0xff]
        %v2796 = vld [vmem:[#allocation2 + $0x88] sm:$0xff]
        %v2797 = vld [vmem:[#allocation2 + $0x90] sm:$0xff]
        %v2798 = vld [vmem:[#allocation2 + $0x98] sm:$0xff]
        %v2799 = vld [vmem:[#allocation2 + $0xa0] sm:$0xff]
        %v2800 = vld [vmem:[#allocation2 + $0xa8] sm:$0xff]
        %v2801 = vld [vmem:[#allocation2 + $0xb0] sm:$0xff]
        %v2802 = vld [vmem:[#allocation2 + $0xb8] sm:$0xff]
        %v2803 = vld [vmem:[#allocation2 + $0xc0] sm:$0xff]
        %v2804 = vld [vmem:[#allocation2 + $0xc8] sm:$0xff]
        %v2805 = vld [vmem:[#allocation2 + $0xd0] sm:$0xff]
        %v2806 = vld [vmem:[#allocation2 + $0xd8] sm:$0xff]
        %v2807 = vld [vmem:[#allocation2 + $0xe0] sm:$0xff]
        %v2808 = vld [vmem:[#allocation2 + $0xe8] sm:$0xff]
        %v2809 = vld [vmem:[#allocation2 + $0xf0] sm:$0xff]
        %v2810 = vld [vmem:[#allocation2 + $0xf8] sm:$0xff]
        %v2811 = vld [vmem:[#allocation2 + $0x100] sm:$0xff]
        %v2812 = vld [vmem:[#allocation2 + $0x108] sm:$0xff]
        %v2813 = vld [vmem:[#allocation2 + $0x110] sm:$0xff]
        %v2814 = vld [vmem:[#allocation2 + $0x118] sm:$0xff]
        %s2815 = scalar_lea.vmem %s1, 20
        %v2816 = vld [vmem:[%s2815] sm:$0xf]
        %v2818 = vsel %vm295, %v2743, 0
        %v2821 = vsel %vm295, %v2744, 0
        %v2824 = vsel %vm295, %v2745, 0
        %v2827 = vsel %vm295, %v2746, 0
        %v2830 = vsel %vm295, %v2747, 0
        %v2833 = vsel %vm295, %v2748, 0
        %v2836 = vsel %vm295, %v2749, 0
        %v2839 = vsel %vm295, %v2750, 0
        %v2842 = vsel %vm295, %v2751, 0
        %v2845 = vsel %vm295, %v2752, 0
        %v2848 = vsel %vm295, %v2753, 0
        %v2851 = vsel %vm295, %v2754, 0
        %v2854 = vsel %vm295, %v2755, 0
        %v2857 = vsel %vm295, %v2756, 0
        %v2860 = vsel %vm295, %v2757, 0
        %v2863 = vsel %vm295, %v2758, 0
        %v2866 = vsel %vm295, %v2759, 0
        %v2869 = vsel %vm295, %v2760, 0
        %v2872 = vsel %vm295, %v2761, 0
        %v2875 = vsel %vm295, %v2762, 0
        %v2878 = vsel %vm295, %v2763, 0
        %v2881 = vsel %vm295, %v2764, 0
        %v2884 = vsel %vm295, %v2765, 0
        %v2887 = vsel %vm295, %v2766, 0
        %v2890 = vsel %vm295, %v2767, 0
        %v2893 = vsel %vm295, %v2768, 0
        %v2896 = vsel %vm295, %v2769, 0
        %v2899 = vsel %vm295, %v2770, 0
        %v2902 = vsel %vm295, %v2771, 0
        %v2905 = vsel %vm295, %v2772, 0
        %v2908 = vsel %vm295, %v2773, 0
        %v2911 = vsel %vm295, %v2774, 0
        %v2914 = vsel %vm295, %v2775, 0
        %v2917 = vsel %vm295, %v2776, 0
        %v2920 = vsel %vm295, %v2777, 0
        %v2923 = vsel %vm295, %v2778, 0
        %v2926 = vsel %vm404, %v2816, 0
        %2928 = vmatprep.subr.mxu0 0.0
        %2929 = vmatpush1.msra.mxu0 0.0
        %2930 = vmatprep.subr.mxu0 0.0
        %2931 = vmatpush1.msra.mxu0 0.0
        %2932 = vmatprep.subr.mxu0 0.0
        %2933 = vmatpush1.msra.mxu0 0.0
        %2934 = vmatprep.subr.mxu0 0.0
        %2935 = vmatpush1.msra.mxu0 0.0
        %2936 = vmatprep.subr.mxu0 0.0
        %2937 = vmatpush1.msra.mxu0 0.0
        %2938 = vmatprep.subr.mxu0 0.0
        %2939 = vmatpush1.msra.mxu0 0.0
        %2940 = vmatprep.subr.mxu0 0.0
        %2941 = vmatpush1.msra.mxu0 0.0
        %2942 = vmatprep.subr.mxu0 0.0
        %2943 = vmatpush1.msra.mxu0 0.0
        %2944 = vmatprep.subr.mxu0 0.0
        %2945 = vmatpush1.msra.mxu0 0.0
        %2946 = vmatprep.subr.mxu0 0.0
        %2947 = vmatpush1.msra.mxu0 0.0
        %2948 = vmatprep.subr.mxu0 0.0
        %2949 = vmatpush1.msra.mxu0 0.0
        %2950 = vmatprep.subr.mxu0 0.0
        %2951 = vmatpush1.msra.mxu0 0.0
        %2952 = vmatprep.subr.mxu0 0.0
        %2953 = vmatpush1.msra.mxu0 0.0
        %2954 = vmatprep.subr.mxu0 0.0
        %2955 = vmatpush1.msra.mxu0 0.0
        %2956 = vmatprep.subr.mxu0 0.0
        %2957 = vmatpush1.msra.mxu0 0.0
        %2958 = vmatprep.subr.mxu0 0.0
        %2959 = vmatpush1.msra.mxu0 %v2926
        %2960 = vmatprep.subr.mxu0 0.0
        %2961 = vmatpush2.msra.mxu0 0.0
        %2962 = vmatprep.subr.mxu0 0.0
        %2963 = vmatpush2.msra.mxu0 0.0
        %2964 = vmatprep.subr.mxu0 0.0
        %2965 = vmatpush2.msra.mxu0 0.0
        %2966 = vmatprep.subr.mxu0 0.0
        %2967 = vmatpush2.msra.mxu0 0.0
        %2968 = vmatprep.subr.mxu0 0.0
        %2969 = vmatpush2.msra.mxu0 0.0
        %2970 = vmatprep.subr.mxu0 0.0
        %2971 = vmatpush2.msra.mxu0 0.0
        %2972 = vmatprep.subr.mxu0 0.0
        %2973 = vmatpush2.msra.mxu0 0.0
        %2974 = vmatprep.subr.mxu0 0.0
        %2975 = vmatpush2.msra.mxu0 0.0
        %2976 = vmatprep.subr.mxu0 0.0
        %2977 = vmatpush2.msra.mxu0 0.0
        %2978 = vmatprep.subr.mxu0 0.0
        %2979 = vmatpush2.msra.mxu0 0.0
        %2980 = vmatprep.subr.mxu0 0.0
        %2981 = vmatpush2.msra.mxu0 0.0
        %2982 = vmatprep.subr.mxu0 0.0
        %2983 = vmatpush2.msra.mxu0 0.0
        %2984 = vmatprep.subr.mxu0 0.0
        %2985 = vmatpush2.msra.mxu0 0.0
        %2986 = vmatprep.subr.mxu0 0.0
        %2987 = vmatpush2.msra.mxu0 0.0
        %2988 = vmatprep.subr.mxu0 0.0
        %2989 = vmatpush2.msra.mxu0 0.0
        %2990 = vmatprep.subr.mxu0 0.0
        %2991 = vmatpush2.msra.mxu0 0.0
        %2992 = vmatprep.mubr.f32.mxu0 0.0
        %2993 = vmatmul.mubr.f32.gmra.mxu0 %v2818
        %v2994 = vpop.f32.mrf.mxu0
        %v2995 = vadd.f32 0.0, %v2994
        %v2996 = vpop.f32.mrf.mxu0
        %2997 = vmatprep.mubr.f32.mxu0 0.0
        %2998 = vmatmul.mubr.f32.gmra.mxu0 %v2821
        %v2999 = vpop.f32.mrf.mxu0
        %v3000 = vadd.f32 0.0, %v2999
        %v3001 = vpop.f32.mrf.mxu0
        %3002 = vmatprep.mubr.f32.mxu0 0.0
        %3003 = vmatmul.mubr.f32.gmra.mxu0 %v2824
        %v3004 = vpop.f32.mrf.mxu0
        %v3005 = vadd.f32 0.0, %v3004
        %v3006 = vpop.f32.mrf.mxu0
        %3007 = vmatprep.mubr.f32.mxu0 0.0
        %3008 = vmatmul.mubr.f32.gmra.mxu0 %v2827
        %v3009 = vpop.f32.mrf.mxu0
        %v3010 = vadd.f32 0.0, %v3009
        %v3011 = vpop.f32.mrf.mxu0
        %3012 = vmatprep.mubr.f32.mxu0 0.0
        %3013 = vmatmul.mubr.f32.gmra.mxu0 %v2830
        %v3014 = vpop.f32.mrf.mxu0
        %v3015 = vadd.f32 0.0, %v3014
        %v3016 = vpop.f32.mrf.mxu0
        %3017 = vmatprep.mubr.f32.mxu0 0.0
        %3018 = vmatmul.mubr.f32.gmra.mxu0 %v2833
        %v3019 = vpop.f32.mrf.mxu0
        %v3020 = vadd.f32 0.0, %v3019
        %v3021 = vpop.f32.mrf.mxu0
        %3022 = vmatprep.mubr.f32.mxu0 0.0
        %3023 = vmatmul.mubr.f32.gmra.mxu0 %v2836
        %v3024 = vpop.f32.mrf.mxu0
        %v3025 = vadd.f32 0.0, %v3024
        %v3026 = vpop.f32.mrf.mxu0
        %3027 = vmatprep.mubr.f32.mxu0 0.0
        %3028 = vmatmul.mubr.f32.gmra.mxu0 %v2839
        %v3029 = vpop.f32.mrf.mxu0
        %v3030 = vadd.f32 0.0, %v3029
        %v3031 = vpop.f32.mrf.mxu0
        %3032 = vmatprep.mubr.f32.mxu0 0.0
        %3033 = vmatmul.mubr.f32.gmra.mxu0 %v2842
        %v3034 = vpop.f32.mrf.mxu0
        %v3035 = vadd.f32 0.0, %v3034
        %v3036 = vpop.f32.mrf.mxu0
        %3037 = vmatprep.mubr.f32.mxu0 0.0
        %3038 = vmatmul.mubr.f32.gmra.mxu0 %v2845
        %v3039 = vpop.f32.mrf.mxu0
        %v3040 = vadd.f32 0.0, %v3039
        %v3041 = vpop.f32.mrf.mxu0
        %3042 = vmatprep.mubr.f32.mxu0 0.0
        %3043 = vmatmul.mubr.f32.gmra.mxu0 %v2848
        %v3044 = vpop.f32.mrf.mxu0
        %v3045 = vadd.f32 0.0, %v3044
        %v3046 = vpop.f32.mrf.mxu0
        %3047 = vmatprep.mubr.f32.mxu0 0.0
        %3048 = vmatmul.mubr.f32.gmra.mxu0 %v2851
        %v3049 = vpop.f32.mrf.mxu0
        %v3050 = vadd.f32 0.0, %v3049
        %v3051 = vpop.f32.mrf.mxu0
        %3052 = vmatprep.mubr.f32.mxu0 0.0
        %3053 = vmatmul.mubr.f32.gmra.mxu0 %v2854
        %v3054 = vpop.f32.mrf.mxu0
        %v3055 = vadd.f32 0.0, %v3054
        %v3056 = vpop.f32.mrf.mxu0
        %3057 = vmatprep.mubr.f32.mxu0 0.0
        %3058 = vmatmul.mubr.f32.gmra.mxu0 %v2857
        %v3059 = vpop.f32.mrf.mxu0
        %v3060 = vadd.f32 0.0, %v3059
        %v3061 = vpop.f32.mrf.mxu0
        %3062 = vmatprep.mubr.f32.mxu0 0.0
        %3063 = vmatmul.mubr.f32.gmra.mxu0 %v2860
        %v3064 = vpop.f32.mrf.mxu0
        %v3065 = vadd.f32 0.0, %v3064
        %v3066 = vpop.f32.mrf.mxu0
        %3067 = vmatprep.mubr.f32.mxu0 0.0
        %3068 = vmatmul.mubr.f32.gmra.mxu0 %v2863
        %v3069 = vpop.f32.mrf.mxu0
        %v3070 = vadd.f32 0.0, %v3069
        %v3071 = vpop.f32.mrf.mxu0
        %3072 = vmatprep.mubr.f32.mxu0 0.0
        %3073 = vmatmul.mubr.f32.gmra.mxu0 %v2866
        %v3074 = vpop.f32.mrf.mxu0
        %v3075 = vadd.f32 0.0, %v3074
        %v3076 = vpop.f32.mrf.mxu0
        %3077 = vmatprep.mubr.f32.mxu0 0.0
        %3078 = vmatmul.mubr.f32.gmra.mxu0 %v2869
        %v3079 = vpop.f32.mrf.mxu0
        %v3080 = vadd.f32 0.0, %v3079
        %v3081 = vpop.f32.mrf.mxu0
        %3082 = vmatprep.mubr.f32.mxu0 0.0
        %3083 = vmatmul.mubr.f32.gmra.mxu0 %v2872
        %v3084 = vpop.f32.mrf.mxu0
        %v3085 = vadd.f32 0.0, %v3084
        %v3086 = vpop.f32.mrf.mxu0
        %3087 = vmatprep.mubr.f32.mxu0 0.0
        %3088 = vmatmul.mubr.f32.gmra.mxu0 %v2875
        %v3089 = vpop.f32.mrf.mxu0
        %v3090 = vadd.f32 0.0, %v3089
        %v3091 = vpop.f32.mrf.mxu0
        %3092 = vmatprep.mubr.f32.mxu0 0.0
        %3093 = vmatmul.mubr.f32.gmra.mxu0 %v2878
        %v3094 = vpop.f32.mrf.mxu0
        %v3095 = vadd.f32 0.0, %v3094
        %v3096 = vpop.f32.mrf.mxu0
        %3097 = vmatprep.mubr.f32.mxu0 0.0
        %3098 = vmatmul.mubr.f32.gmra.mxu0 %v2881
        %v3099 = vpop.f32.mrf.mxu0
        %v3100 = vadd.f32 0.0, %v3099
        %v3101 = vpop.f32.mrf.mxu0
        %3102 = vmatprep.mubr.f32.mxu0 0.0
        %3103 = vmatmul.mubr.f32.gmra.mxu0 %v2884
        %v3104 = vpop.f32.mrf.mxu0
        %v3105 = vadd.f32 0.0, %v3104
        %v3106 = vpop.f32.mrf.mxu0
        %3107 = vmatprep.mubr.f32.mxu0 0.0
        %3108 = vmatmul.mubr.f32.gmra.mxu0 %v2887
        %v3109 = vpop.f32.mrf.mxu0
        %v3110 = vadd.f32 0.0, %v3109
        %v3111 = vpop.f32.mrf.mxu0
        %3112 = vmatprep.mubr.f32.mxu0 0.0
        %3113 = vmatmul.mubr.f32.gmra.mxu0 %v2890
        %v3114 = vpop.f32.mrf.mxu0
        %v3115 = vadd.f32 0.0, %v3114
        %v3116 = vpop.f32.mrf.mxu0
        %3117 = vmatprep.mubr.f32.mxu0 0.0
        %3118 = vmatmul.mubr.f32.gmra.mxu0 %v2893
        %v3119 = vpop.f32.mrf.mxu0
        %v3120 = vadd.f32 0.0, %v3119
        %v3121 = vpop.f32.mrf.mxu0
        %3122 = vmatprep.mubr.f32.mxu0 0.0
        %3123 = vmatmul.mubr.f32.gmra.mxu0 %v2896
        %v3124 = vpop.f32.mrf.mxu0
        %v3125 = vadd.f32 0.0, %v3124
        %v3126 = vpop.f32.mrf.mxu0
        %3127 = vmatprep.mubr.f32.mxu0 0.0
        %3128 = vmatmul.mubr.f32.gmra.mxu0 %v2899
        %v3129 = vpop.f32.mrf.mxu0
        %v3130 = vadd.f32 0.0, %v3129
        %v3131 = vpop.f32.mrf.mxu0
        %3132 = vmatprep.mubr.f32.mxu0 0.0
        %3133 = vmatmul.mubr.f32.gmra.mxu0 %v2902
        %v3134 = vpop.f32.mrf.mxu0
        %v3135 = vadd.f32 0.0, %v3134
        %v3136 = vpop.f32.mrf.mxu0
        %3137 = vmatprep.mubr.f32.mxu0 0.0
        %3138 = vmatmul.mubr.f32.gmra.mxu0 %v2905
        %v3139 = vpop.f32.mrf.mxu0
        %v3140 = vadd.f32 0.0, %v3139
        %v3141 = vpop.f32.mrf.mxu0
        %3142 = vmatprep.mubr.f32.mxu0 0.0
        %3143 = vmatmul.mubr.f32.gmra.mxu0 %v2908
        %v3144 = vpop.f32.mrf.mxu0
        %v3145 = vadd.f32 0.0, %v3144
        %v3146 = vpop.f32.mrf.mxu0
        %3147 = vmatprep.mubr.f32.mxu0 0.0
        %3148 = vmatmul.mubr.f32.gmra.mxu0 %v2911
        %v3149 = vpop.f32.mrf.mxu0
        %v3150 = vadd.f32 0.0, %v3149
        %v3151 = vpop.f32.mrf.mxu0
        %3152 = vmatprep.mubr.f32.mxu0 0.0
        %3153 = vmatmul.mubr.f32.gmra.mxu0 %v2914
        %v3154 = vpop.f32.mrf.mxu0
        %v3155 = vadd.f32 0.0, %v3154
        %v3156 = vpop.f32.mrf.mxu0
        %3157 = vmatprep.mubr.f32.mxu0 0.0
        %3158 = vmatmul.mubr.f32.gmra.mxu0 %v2917
        %v3159 = vpop.f32.mrf.mxu0
        %v3160 = vadd.f32 0.0, %v3159
        %v3161 = vpop.f32.mrf.mxu0
        %3162 = vmatprep.mubr.f32.mxu0 0.0
        %3163 = vmatmul.mubr.f32.gmra.mxu0 %v2920
        %v3164 = vpop.f32.mrf.mxu0
        %v3165 = vadd.f32 0.0, %v3164
        %v3166 = vpop.f32.mrf.mxu0
        %3167 = vmatprep.mubr.f32.mxu0 0.0
        %3168 = vmatmul.mubr.f32.gmra.mxu0 %v2923
        %v3169 = vpop.f32.mrf.mxu0
        %v3170 = vadd.f32 0.0, %v3169
        %v3171 = vpop.f32.mrf.mxu0
        %3172 = vdwg.mxu0
        %v3173 = vadd.f32 %v2779, %v2995
        %v3174 = vadd.f32 %v2780, %v3000
        %v3175 = vadd.f32 %v2781, %v3005
        %v3176 = vadd.f32 %v2782, %v3010
        %v3177 = vadd.f32 %v2783, %v3015
        %v3178 = vadd.f32 %v2784, %v3020
        %v3179 = vadd.f32 %v2785, %v3025
        %v3180 = vadd.f32 %v2786, %v3030
        %v3181 = vadd.f32 %v2787, %v3035
        %v3182 = vadd.f32 %v2788, %v3040
        %v3183 = vadd.f32 %v2789, %v3045
        %v3184 = vadd.f32 %v2790, %v3050
        %v3185 = vadd.f32 %v2791, %v3055
        %v3186 = vadd.f32 %v2792, %v3060
        %v3187 = vadd.f32 %v2793, %v3065
        %v3188 = vadd.f32 %v2794, %v3070
        %v3189 = vadd.f32 %v2795, %v3075
        %v3190 = vadd.f32 %v2796, %v3080
        %v3191 = vadd.f32 %v2797, %v3085
        %v3192 = vadd.f32 %v2798, %v3090
        %v3193 = vadd.f32 %v2799, %v3095
        %v3194 = vadd.f32 %v2800, %v3100
        %v3195 = vadd.f32 %v2801, %v3105
        %v3196 = vadd.f32 %v2802, %v3110
        %v3197 = vadd.f32 %v2803, %v3115
        %v3198 = vadd.f32 %v2804, %v3120
        %v3199 = vadd.f32 %v2805, %v3125
        %v3200 = vadd.f32 %v2806, %v3130
        %v3201 = vadd.f32 %v2807, %v3135
        %v3202 = vadd.f32 %v2808, %v3140
        %v3203 = vadd.f32 %v2809, %v3145
        %v3204 = vadd.f32 %v2810, %v3150
        %v3205 = vadd.f32 %v2811, %v3155
        %v3206 = vadd.f32 %v2812, %v3160
        %v3207 = vadd.f32 %v2813, %v3165
        %v3208 = vadd.f32 %v2814, %v3170
        %3209 = vst [vmem:[#allocation2] sm:$0xff] %v3173
        %3210 = vst [vmem:[#allocation2 + $0x8] sm:$0xff] %v3174
        %3211 = vst [vmem:[#allocation2 + $0x10] sm:$0xff] %v3175
        %3212 = vst [vmem:[#allocation2 + $0x18] sm:$0xff] %v3176
        %3213 = vst [vmem:[#allocation2 + $0x20] sm:$0xff] %v3177
        %3214 = vst [vmem:[#allocation2 + $0x28] sm:$0xff] %v3178
        %3215 = vst [vmem:[#allocation2 + $0x30] sm:$0xff] %v3179
        %3216 = vst [vmem:[#allocation2 + $0x38] sm:$0xff] %v3180
        %3217 = vst [vmem:[#allocation2 + $0x40] sm:$0xff] %v3181
        %3218 = vst [vmem:[#allocation2 + $0x48] sm:$0xff] %v3182
        %3219 = vst [vmem:[#allocation2 + $0x50] sm:$0xff] %v3183
        %3220 = vst [vmem:[#allocation2 + $0x58] sm:$0xff] %v3184
        %3221 = vst [vmem:[#allocation2 + $0x60] sm:$0xff] %v3185
        %3222 = vst [vmem:[#allocation2 + $0x68] sm:$0xff] %v3186
        %3223 = vst [vmem:[#allocation2 + $0x70] sm:$0xff] %v3187
        %3224 = vst [vmem:[#allocation2 + $0x78] sm:$0xff] %v3188
        %3225 = vst [vmem:[#allocation2 + $0x80] sm:$0xff] %v3189
        %3226 = vst [vmem:[#allocation2 + $0x88] sm:$0xff] %v3190
        %3227 = vst [vmem:[#allocation2 + $0x90] sm:$0xff] %v3191
        %3228 = vst [vmem:[#allocation2 + $0x98] sm:$0xff] %v3192
        %3229 = vst [vmem:[#allocation2 + $0xa0] sm:$0xff] %v3193
        %3230 = vst [vmem:[#allocation2 + $0xa8] sm:$0xff] %v3194
        %3231 = vst [vmem:[#allocation2 + $0xb0] sm:$0xff] %v3195
        %3232 = vst [vmem:[#allocation2 + $0xb8] sm:$0xff] %v3196
        %3233 = vst [vmem:[#allocation2 + $0xc0] sm:$0xff] %v3197
        %3234 = vst [vmem:[#allocation2 + $0xc8] sm:$0xff] %v3198
        %3235 = vst [vmem:[#allocation2 + $0xd0] sm:$0xff] %v3199
        %3236 = vst [vmem:[#allocation2 + $0xd8] sm:$0xff] %v3200
        %3237 = vst [vmem:[#allocation2 + $0xe0] sm:$0xff] %v3201
        %3238 = vst [vmem:[#allocation2 + $0xe8] sm:$0xff] %v3202
        %3239 = vst [vmem:[#allocation2 + $0xf0] sm:$0xff] %v3203
        %3240 = vst [vmem:[#allocation2 + $0xf8] sm:$0xff] %v3204
        %3241 = vst [vmem:[#allocation2 + $0x100] sm:$0xff] %v3205
        %3242 = vst [vmem:[#allocation2 + $0x108] sm:$0xff] %v3206
        %3243 = vst [vmem:[#allocation2 + $0x110] sm:$0xff] %v3207
        %3244 = vst [vmem:[#allocation2 + $0x118] sm:$0xff] %v3208
        %s3245 = sadd.s32 %s184, 36
        %s3246 = scalar_lea.vmem %s182, %s3245
        %v3247 = vld [vmem:[%s3246] sm:$0xff]
        %v3248 = vld [vmem:[%s3246 + $0x8] sm:$0xff]
        %v3249 = vld [vmem:[%s3246 + $0x10] sm:$0xff]
        %v3250 = vld [vmem:[%s3246 + $0x18] sm:$0xff]
        %v3251 = vld [vmem:[%s3246 + $0x20] sm:$0xff]
        %v3252 = vld [vmem:[%s3246 + $0x28] sm:$0xff]
        %v3253 = vld [vmem:[%s3246 + $0x30] sm:$0xff]
        %v3254 = vld [vmem:[%s3246 + $0x38] sm:$0xff]
        %v3255 = vld [vmem:[%s3246 + $0x40] sm:$0xff]
        %v3256 = vld [vmem:[%s3246 + $0x48] sm:$0xff]
        %v3257 = vld [vmem:[%s3246 + $0x50] sm:$0xff]
        %v3258 = vld [vmem:[%s3246 + $0x58] sm:$0xff]
        %v3259 = vld [vmem:[%s3246 + $0x60] sm:$0xff]
        %v3260 = vld [vmem:[%s3246 + $0x68] sm:$0xff]
        %v3261 = vld [vmem:[%s3246 + $0x70] sm:$0xff]
        %v3262 = vld [vmem:[%s3246 + $0x78] sm:$0xff]
        %v3263 = vld [vmem:[%s3246 + $0x80] sm:$0xff]
        %v3264 = vld [vmem:[%s3246 + $0x88] sm:$0xff]
        %v3265 = vld [vmem:[%s3246 + $0x90] sm:$0xff]
        %v3266 = vld [vmem:[%s3246 + $0x98] sm:$0xff]
        %v3267 = vld [vmem:[%s3246 + $0xa0] sm:$0xff]
        %v3268 = vld [vmem:[%s3246 + $0xa8] sm:$0xff]
        %v3269 = vld [vmem:[%s3246 + $0xb0] sm:$0xff]
        %v3270 = vld [vmem:[%s3246 + $0xb8] sm:$0xff]
        %v3271 = vld [vmem:[%s3246 + $0xc0] sm:$0xff]
        %v3272 = vld [vmem:[%s3246 + $0xc8] sm:$0xff]
        %v3273 = vld [vmem:[%s3246 + $0xd0] sm:$0xff]
        %v3274 = vld [vmem:[%s3246 + $0xd8] sm:$0xff]
        %v3275 = vld [vmem:[%s3246 + $0xe0] sm:$0xff]
        %v3276 = vld [vmem:[%s3246 + $0xe8] sm:$0xff]
        %v3277 = vld [vmem:[%s3246 + $0xf0] sm:$0xff]
        %v3278 = vld [vmem:[%s3246 + $0xf8] sm:$0xff]
        %v3279 = vld [vmem:[%s3246 + $0x100] sm:$0xff]
        %v3280 = vld [vmem:[%s3246 + $0x108] sm:$0xff]
        %v3281 = vld [vmem:[%s3246 + $0x110] sm:$0xff]
        %v3282 = vld [vmem:[%s3246 + $0x118] sm:$0xff]
        %v3283 = vld [vmem:[#allocation2] sm:$0xff]
        %v3284 = vld [vmem:[#allocation2 + $0x8] sm:$0xff]
        %v3285 = vld [vmem:[#allocation2 + $0x10] sm:$0xff]
        %v3286 = vld [vmem:[#allocation2 + $0x18] sm:$0xff]
        %v3287 = vld [vmem:[#allocation2 + $0x20] sm:$0xff]
        %v3288 = vld [vmem:[#allocation2 + $0x28] sm:$0xff]
        %v3289 = vld [vmem:[#allocation2 + $0x30] sm:$0xff]
        %v3290 = vld [vmem:[#allocation2 + $0x38] sm:$0xff]
        %v3291 = vld [vmem:[#allocation2 + $0x40] sm:$0xff]
        %v3292 = vld [vmem:[#allocation2 + $0x48] sm:$0xff]
        %v3293 = vld [vmem:[#allocation2 + $0x50] sm:$0xff]
        %v3294 = vld [vmem:[#allocation2 + $0x58] sm:$0xff]
        %v3295 = vld [vmem:[#allocation2 + $0x60] sm:$0xff]
        %v3296 = vld [vmem:[#allocation2 + $0x68] sm:$0xff]
        %v3297 = vld [vmem:[#allocation2 + $0x70] sm:$0xff]
        %v3298 = vld [vmem:[#allocation2 + $0x78] sm:$0xff]
        %v3299 = vld [vmem:[#allocation2 + $0x80] sm:$0xff]
        %v3300 = vld [vmem:[#allocation2 + $0x88] sm:$0xff]
        %v3301 = vld [vmem:[#allocation2 + $0x90] sm:$0xff]
        %v3302 = vld [vmem:[#allocation2 + $0x98] sm:$0xff]
        %v3303 = vld [vmem:[#allocation2 + $0xa0] sm:$0xff]
        %v3304 = vld [vmem:[#allocation2 + $0xa8] sm:$0xff]
        %v3305 = vld [vmem:[#allocation2 + $0xb0] sm:$0xff]
        %v3306 = vld [vmem:[#allocation2 + $0xb8] sm:$0xff]
        %v3307 = vld [vmem:[#allocation2 + $0xc0] sm:$0xff]
        %v3308 = vld [vmem:[#allocation2 + $0xc8] sm:$0xff]
        %v3309 = vld [vmem:[#allocation2 + $0xd0] sm:$0xff]
        %v3310 = vld [vmem:[#allocation2 + $0xd8] sm:$0xff]
        %v3311 = vld [vmem:[#allocation2 + $0xe0] sm:$0xff]
        %v3312 = vld [vmem:[#allocation2 + $0xe8] sm:$0xff]
        %v3313 = vld [vmem:[#allocation2 + $0xf0] sm:$0xff]
        %v3314 = vld [vmem:[#allocation2 + $0xf8] sm:$0xff]
        %v3315 = vld [vmem:[#allocation2 + $0x100] sm:$0xff]
        %v3316 = vld [vmem:[#allocation2 + $0x108] sm:$0xff]
        %v3317 = vld [vmem:[#allocation2 + $0x110] sm:$0xff]
        %v3318 = vld [vmem:[#allocation2 + $0x118] sm:$0xff]
        %s3319 = scalar_lea.vmem %s1, 24
        %v3320 = vld [vmem:[%s3319] sm:$0xf]
        %v3322 = vsel %vm295, %v3247, 0
        %v3325 = vsel %vm295, %v3248, 0
        %v3328 = vsel %vm295, %v3249, 0
        %v3331 = vsel %vm295, %v3250, 0
        %v3334 = vsel %vm295, %v3251, 0
        %v3337 = vsel %vm295, %v3252, 0
        %v3340 = vsel %vm295, %v3253, 0
        %v3343 = vsel %vm295, %v3254, 0
        %v3346 = vsel %vm295, %v3255, 0
        %v3349 = vsel %vm295, %v3256, 0
        %v3352 = vsel %vm295, %v3257, 0
        %v3355 = vsel %vm295, %v3258, 0
        %v3358 = vsel %vm295, %v3259, 0
        %v3361 = vsel %vm295, %v3260, 0
        %v3364 = vsel %vm295, %v3261, 0
        %v3367 = vsel %vm295, %v3262, 0
        %v3370 = vsel %vm295, %v3263, 0
        %v3373 = vsel %vm295, %v3264, 0
        %v3376 = vsel %vm295, %v3265, 0
        %v3379 = vsel %vm295, %v3266, 0
        %v3382 = vsel %vm295, %v3267, 0
        %v3385 = vsel %vm295, %v3268, 0
        %v3388 = vsel %vm295, %v3269, 0
        %v3391 = vsel %vm295, %v3270, 0
        %v3394 = vsel %vm295, %v3271, 0
        %v3397 = vsel %vm295, %v3272, 0
        %v3400 = vsel %vm295, %v3273, 0
        %v3403 = vsel %vm295, %v3274, 0
        %v3406 = vsel %vm295, %v3275, 0
        %v3409 = vsel %vm295, %v3276, 0
        %v3412 = vsel %vm295, %v3277, 0
        %v3415 = vsel %vm295, %v3278, 0
        %v3418 = vsel %vm295, %v3279, 0
        %v3421 = vsel %vm295, %v3280, 0
        %v3424 = vsel %vm295, %v3281, 0
        %v3427 = vsel %vm295, %v3282, 0
        %v3430 = vsel %vm404, %v3320, 0
        %3432 = vmatprep.subr.mxu0 0.0
        %3433 = vmatpush1.msra.mxu0 0.0
        %3434 = vmatprep.subr.mxu0 0.0
        %3435 = vmatpush1.msra.mxu0 0.0
        %3436 = vmatprep.subr.mxu0 0.0
        %3437 = vmatpush1.msra.mxu0 0.0
        %3438 = vmatprep.subr.mxu0 0.0
        %3439 = vmatpush1.msra.mxu0 0.0
        %3440 = vmatprep.subr.mxu0 0.0
        %3441 = vmatpush1.msra.mxu0 0.0
        %3442 = vmatprep.subr.mxu0 0.0
        %3443 = vmatpush1.msra.mxu0 0.0
        %3444 = vmatprep.subr.mxu0 0.0
        %3445 = vmatpush1.msra.mxu0 0.0
        %3446 = vmatprep.subr.mxu0 0.0
        %3447 = vmatpush1.msra.mxu0 0.0
        %3448 = vmatprep.subr.mxu0 0.0
        %3449 = vmatpush1.msra.mxu0 0.0
        %3450 = vmatprep.subr.mxu0 0.0
        %3451 = vmatpush1.msra.mxu0 0.0
        %3452 = vmatprep.subr.mxu0 0.0
        %3453 = vmatpush1.msra.mxu0 0.0
        %3454 = vmatprep.subr.mxu0 0.0
        %3455 = vmatpush1.msra.mxu0 0.0
        %3456 = vmatprep.subr.mxu0 0.0
        %3457 = vmatpush1.msra.mxu0 0.0
        %3458 = vmatprep.subr.mxu0 0.0
        %3459 = vmatpush1.msra.mxu0 0.0
        %3460 = vmatprep.subr.mxu0 0.0
        %3461 = vmatpush1.msra.mxu0 0.0
        %3462 = vmatprep.subr.mxu0 0.0
        %3463 = vmatpush1.msra.mxu0 %v3430
        %3464 = vmatprep.subr.mxu0 0.0
        %3465 = vmatpush2.msra.mxu0 0.0
        %3466 = vmatprep.subr.mxu0 0.0
        %3467 = vmatpush2.msra.mxu0 0.0
        %3468 = vmatprep.subr.mxu0 0.0
        %3469 = vmatpush2.msra.mxu0 0.0
        %3470 = vmatprep.subr.mxu0 0.0
        %3471 = vmatpush2.msra.mxu0 0.0
        %3472 = vmatprep.subr.mxu0 0.0
        %3473 = vmatpush2.msra.mxu0 0.0
        %3474 = vmatprep.subr.mxu0 0.0
        %3475 = vmatpush2.msra.mxu0 0.0
        %3476 = vmatprep.subr.mxu0 0.0
        %3477 = vmatpush2.msra.mxu0 0.0
        %3478 = vmatprep.subr.mxu0 0.0
        %3479 = vmatpush2.msra.mxu0 0.0
        %3480 = vmatprep.subr.mxu0 0.0
        %3481 = vmatpush2.msra.mxu0 0.0
        %3482 = vmatprep.subr.mxu0 0.0
        %3483 = vmatpush2.msra.mxu0 0.0
        %3484 = vmatprep.subr.mxu0 0.0
        %3485 = vmatpush2.msra.mxu0 0.0
        %3486 = vmatprep.subr.mxu0 0.0
        %3487 = vmatpush2.msra.mxu0 0.0
        %3488 = vmatprep.subr.mxu0 0.0
        %3489 = vmatpush2.msra.mxu0 0.0
        %3490 = vmatprep.subr.mxu0 0.0
        %3491 = vmatpush2.msra.mxu0 0.0
        %3492 = vmatprep.subr.mxu0 0.0
        %3493 = vmatpush2.msra.mxu0 0.0
        %3494 = vmatprep.subr.mxu0 0.0
        %3495 = vmatpush2.msra.mxu0 0.0
        %3496 = vmatprep.mubr.f32.mxu0 0.0
        %3497 = vmatmul.mubr.f32.gmra.mxu0 %v3322
        %v3498 = vpop.f32.mrf.mxu0
        %v3499 = vadd.f32 0.0, %v3498
        %v3500 = vpop.f32.mrf.mxu0
        %3501 = vmatprep.mubr.f32.mxu0 0.0
        %3502 = vmatmul.mubr.f32.gmra.mxu0 %v3325
        %v3503 = vpop.f32.mrf.mxu0
        %v3504 = vadd.f32 0.0, %v3503
        %v3505 = vpop.f32.mrf.mxu0
        %3506 = vmatprep.mubr.f32.mxu0 0.0
        %3507 = vmatmul.mubr.f32.gmra.mxu0 %v3328
        %v3508 = vpop.f32.mrf.mxu0
        %v3509 = vadd.f32 0.0, %v3508
        %v3510 = vpop.f32.mrf.mxu0
        %3511 = vmatprep.mubr.f32.mxu0 0.0
        %3512 = vmatmul.mubr.f32.gmra.mxu0 %v3331
        %v3513 = vpop.f32.mrf.mxu0
        %v3514 = vadd.f32 0.0, %v3513
        %v3515 = vpop.f32.mrf.mxu0
        %3516 = vmatprep.mubr.f32.mxu0 0.0
        %3517 = vmatmul.mubr.f32.gmra.mxu0 %v3334
        %v3518 = vpop.f32.mrf.mxu0
        %v3519 = vadd.f32 0.0, %v3518
        %v3520 = vpop.f32.mrf.mxu0
        %3521 = vmatprep.mubr.f32.mxu0 0.0
        %3522 = vmatmul.mubr.f32.gmra.mxu0 %v3337
        %v3523 = vpop.f32.mrf.mxu0
        %v3524 = vadd.f32 0.0, %v3523
        %v3525 = vpop.f32.mrf.mxu0
        %3526 = vmatprep.mubr.f32.mxu0 0.0
        %3527 = vmatmul.mubr.f32.gmra.mxu0 %v3340
        %v3528 = vpop.f32.mrf.mxu0
        %v3529 = vadd.f32 0.0, %v3528
        %v3530 = vpop.f32.mrf.mxu0
        %3531 = vmatprep.mubr.f32.mxu0 0.0
        %3532 = vmatmul.mubr.f32.gmra.mxu0 %v3343
        %v3533 = vpop.f32.mrf.mxu0
        %v3534 = vadd.f32 0.0, %v3533
        %v3535 = vpop.f32.mrf.mxu0
        %3536 = vmatprep.mubr.f32.mxu0 0.0
        %3537 = vmatmul.mubr.f32.gmra.mxu0 %v3346
        %v3538 = vpop.f32.mrf.mxu0
        %v3539 = vadd.f32 0.0, %v3538
        %v3540 = vpop.f32.mrf.mxu0
        %3541 = vmatprep.mubr.f32.mxu0 0.0
        %3542 = vmatmul.mubr.f32.gmra.mxu0 %v3349
        %v3543 = vpop.f32.mrf.mxu0
        %v3544 = vadd.f32 0.0, %v3543
        %v3545 = vpop.f32.mrf.mxu0
        %3546 = vmatprep.mubr.f32.mxu0 0.0
        %3547 = vmatmul.mubr.f32.gmra.mxu0 %v3352
        %v3548 = vpop.f32.mrf.mxu0
        %v3549 = vadd.f32 0.0, %v3548
        %v3550 = vpop.f32.mrf.mxu0
        %3551 = vmatprep.mubr.f32.mxu0 0.0
        %3552 = vmatmul.mubr.f32.gmra.mxu0 %v3355
        %v3553 = vpop.f32.mrf.mxu0
        %v3554 = vadd.f32 0.0, %v3553
        %v3555 = vpop.f32.mrf.mxu0
        %3556 = vmatprep.mubr.f32.mxu0 0.0
        %3557 = vmatmul.mubr.f32.gmra.mxu0 %v3358
        %v3558 = vpop.f32.mrf.mxu0
        %v3559 = vadd.f32 0.0, %v3558
        %v3560 = vpop.f32.mrf.mxu0
        %3561 = vmatprep.mubr.f32.mxu0 0.0
        %3562 = vmatmul.mubr.f32.gmra.mxu0 %v3361
        %v3563 = vpop.f32.mrf.mxu0
        %v3564 = vadd.f32 0.0, %v3563
        %v3565 = vpop.f32.mrf.mxu0
        %3566 = vmatprep.mubr.f32.mxu0 0.0
        %3567 = vmatmul.mubr.f32.gmra.mxu0 %v3364
        %v3568 = vpop.f32.mrf.mxu0
        %v3569 = vadd.f32 0.0, %v3568
        %v3570 = vpop.f32.mrf.mxu0
        %3571 = vmatprep.mubr.f32.mxu0 0.0
        %3572 = vmatmul.mubr.f32.gmra.mxu0 %v3367
        %v3573 = vpop.f32.mrf.mxu0
        %v3574 = vadd.f32 0.0, %v3573
        %v3575 = vpop.f32.mrf.mxu0
        %3576 = vmatprep.mubr.f32.mxu0 0.0
        %3577 = vmatmul.mubr.f32.gmra.mxu0 %v3370
        %v3578 = vpop.f32.mrf.mxu0
        %v3579 = vadd.f32 0.0, %v3578
        %v3580 = vpop.f32.mrf.mxu0
        %3581 = vmatprep.mubr.f32.mxu0 0.0
        %3582 = vmatmul.mubr.f32.gmra.mxu0 %v3373
        %v3583 = vpop.f32.mrf.mxu0
        %v3584 = vadd.f32 0.0, %v3583
        %v3585 = vpop.f32.mrf.mxu0
        %3586 = vmatprep.mubr.f32.mxu0 0.0
        %3587 = vmatmul.mubr.f32.gmra.mxu0 %v3376
        %v3588 = vpop.f32.mrf.mxu0
        %v3589 = vadd.f32 0.0, %v3588
        %v3590 = vpop.f32.mrf.mxu0
        %3591 = vmatprep.mubr.f32.mxu0 0.0
        %3592 = vmatmul.mubr.f32.gmra.mxu0 %v3379
        %v3593 = vpop.f32.mrf.mxu0
        %v3594 = vadd.f32 0.0, %v3593
        %v3595 = vpop.f32.mrf.mxu0
        %3596 = vmatprep.mubr.f32.mxu0 0.0
        %3597 = vmatmul.mubr.f32.gmra.mxu0 %v3382
        %v3598 = vpop.f32.mrf.mxu0
        %v3599 = vadd.f32 0.0, %v3598
        %v3600 = vpop.f32.mrf.mxu0
        %3601 = vmatprep.mubr.f32.mxu0 0.0
        %3602 = vmatmul.mubr.f32.gmra.mxu0 %v3385
        %v3603 = vpop.f32.mrf.mxu0
        %v3604 = vadd.f32 0.0, %v3603
        %v3605 = vpop.f32.mrf.mxu0
        %3606 = vmatprep.mubr.f32.mxu0 0.0
        %3607 = vmatmul.mubr.f32.gmra.mxu0 %v3388
        %v3608 = vpop.f32.mrf.mxu0
        %v3609 = vadd.f32 0.0, %v3608
        %v3610 = vpop.f32.mrf.mxu0
        %3611 = vmatprep.mubr.f32.mxu0 0.0
        %3612 = vmatmul.mubr.f32.gmra.mxu0 %v3391
        %v3613 = vpop.f32.mrf.mxu0
        %v3614 = vadd.f32 0.0, %v3613
        %v3615 = vpop.f32.mrf.mxu0
        %3616 = vmatprep.mubr.f32.mxu0 0.0
        %3617 = vmatmul.mubr.f32.gmra.mxu0 %v3394
        %v3618 = vpop.f32.mrf.mxu0
        %v3619 = vadd.f32 0.0, %v3618
        %v3620 = vpop.f32.mrf.mxu0
        %3621 = vmatprep.mubr.f32.mxu0 0.0
        %3622 = vmatmul.mubr.f32.gmra.mxu0 %v3397
        %v3623 = vpop.f32.mrf.mxu0
        %v3624 = vadd.f32 0.0, %v3623
        %v3625 = vpop.f32.mrf.mxu0
        %3626 = vmatprep.mubr.f32.mxu0 0.0
        %3627 = vmatmul.mubr.f32.gmra.mxu0 %v3400
        %v3628 = vpop.f32.mrf.mxu0
        %v3629 = vadd.f32 0.0, %v3628
        %v3630 = vpop.f32.mrf.mxu0
        %3631 = vmatprep.mubr.f32.mxu0 0.0
        %3632 = vmatmul.mubr.f32.gmra.mxu0 %v3403
        %v3633 = vpop.f32.mrf.mxu0
        %v3634 = vadd.f32 0.0, %v3633
        %v3635 = vpop.f32.mrf.mxu0
        %3636 = vmatprep.mubr.f32.mxu0 0.0
        %3637 = vmatmul.mubr.f32.gmra.mxu0 %v3406
        %v3638 = vpop.f32.mrf.mxu0
        %v3639 = vadd.f32 0.0, %v3638
        %v3640 = vpop.f32.mrf.mxu0
        %3641 = vmatprep.mubr.f32.mxu0 0.0
        %3642 = vmatmul.mubr.f32.gmra.mxu0 %v3409
        %v3643 = vpop.f32.mrf.mxu0
        %v3644 = vadd.f32 0.0, %v3643
        %v3645 = vpop.f32.mrf.mxu0
        %3646 = vmatprep.mubr.f32.mxu0 0.0
        %3647 = vmatmul.mubr.f32.gmra.mxu0 %v3412
        %v3648 = vpop.f32.mrf.mxu0
        %v3649 = vadd.f32 0.0, %v3648
        %v3650 = vpop.f32.mrf.mxu0
        %3651 = vmatprep.mubr.f32.mxu0 0.0
        %3652 = vmatmul.mubr.f32.gmra.mxu0 %v3415
        %v3653 = vpop.f32.mrf.mxu0
        %v3654 = vadd.f32 0.0, %v3653
        %v3655 = vpop.f32.mrf.mxu0
        %3656 = vmatprep.mubr.f32.mxu0 0.0
        %3657 = vmatmul.mubr.f32.gmra.mxu0 %v3418
        %v3658 = vpop.f32.mrf.mxu0
        %v3659 = vadd.f32 0.0, %v3658
        %v3660 = vpop.f32.mrf.mxu0
        %3661 = vmatprep.mubr.f32.mxu0 0.0
        %3662 = vmatmul.mubr.f32.gmra.mxu0 %v3421
        %v3663 = vpop.f32.mrf.mxu0
        %v3664 = vadd.f32 0.0, %v3663
        %v3665 = vpop.f32.mrf.mxu0
        %3666 = vmatprep.mubr.f32.mxu0 0.0
        %3667 = vmatmul.mubr.f32.gmra.mxu0 %v3424
        %v3668 = vpop.f32.mrf.mxu0
        %v3669 = vadd.f32 0.0, %v3668
        %v3670 = vpop.f32.mrf.mxu0
        %3671 = vmatprep.mubr.f32.mxu0 0.0
        %3672 = vmatmul.mubr.f32.gmra.mxu0 %v3427
        %v3673 = vpop.f32.mrf.mxu0
        %v3674 = vadd.f32 0.0, %v3673
        %v3675 = vpop.f32.mrf.mxu0
        %3676 = vdwg.mxu0
        %v3677 = vadd.f32 %v3283, %v3499
        %v3678 = vadd.f32 %v3284, %v3504
        %v3679 = vadd.f32 %v3285, %v3509
        %v3680 = vadd.f32 %v3286, %v3514
        %v3681 = vadd.f32 %v3287, %v3519
        %v3682 = vadd.f32 %v3288, %v3524
        %v3683 = vadd.f32 %v3289, %v3529
        %v3684 = vadd.f32 %v3290, %v3534
        %v3685 = vadd.f32 %v3291, %v3539
        %v3686 = vadd.f32 %v3292, %v3544
        %v3687 = vadd.f32 %v3293, %v3549
        %v3688 = vadd.f32 %v3294, %v3554
        %v3689 = vadd.f32 %v3295, %v3559
        %v3690 = vadd.f32 %v3296, %v3564
        %v3691 = vadd.f32 %v3297, %v3569
        %v3692 = vadd.f32 %v3298, %v3574
        %v3693 = vadd.f32 %v3299, %v3579
        %v3694 = vadd.f32 %v3300, %v3584
        %v3695 = vadd.f32 %v3301, %v3589
        %v3696 = vadd.f32 %v3302, %v3594
        %v3697 = vadd.f32 %v3303, %v3599
        %v3698 = vadd.f32 %v3304, %v3604
        %v3699 = vadd.f32 %v3305, %v3609
        %v3700 = vadd.f32 %v3306, %v3614
        %v3701 = vadd.f32 %v3307, %v3619
        %v3702 = vadd.f32 %v3308, %v3624
        %v3703 = vadd.f32 %v3309, %v3629
        %v3704 = vadd.f32 %v3310, %v3634
        %v3705 = vadd.f32 %v3311, %v3639
        %v3706 = vadd.f32 %v3312, %v3644
        %v3707 = vadd.f32 %v3313, %v3649
        %v3708 = vadd.f32 %v3314, %v3654
        %v3709 = vadd.f32 %v3315, %v3659
        %v3710 = vadd.f32 %v3316, %v3664
        %v3711 = vadd.f32 %v3317, %v3669
        %v3712 = vadd.f32 %v3318, %v3674
        %3713 = vst [vmem:[#allocation2] sm:$0xff] %v3677
        %3714 = vst [vmem:[#allocation2 + $0x8] sm:$0xff] %v3678
        %3715 = vst [vmem:[#allocation2 + $0x10] sm:$0xff] %v3679
        %3716 = vst [vmem:[#allocation2 + $0x18] sm:$0xff] %v3680
        %3717 = vst [vmem:[#allocation2 + $0x20] sm:$0xff] %v3681
        %3718 = vst [vmem:[#allocation2 + $0x28] sm:$0xff] %v3682
        %3719 = vst [vmem:[#allocation2 + $0x30] sm:$0xff] %v3683
        %3720 = vst [vmem:[#allocation2 + $0x38] sm:$0xff] %v3684
        %3721 = vst [vmem:[#allocation2 + $0x40] sm:$0xff] %v3685
        %3722 = vst [vmem:[#allocation2 + $0x48] sm:$0xff] %v3686
        %3723 = vst [vmem:[#allocation2 + $0x50] sm:$0xff] %v3687
        %3724 = vst [vmem:[#allocation2 + $0x58] sm:$0xff] %v3688
        %3725 = vst [vmem:[#allocation2 + $0x60] sm:$0xff] %v3689
        %3726 = vst [vmem:[#allocation2 + $0x68] sm:$0xff] %v3690
        %3727 = vst [vmem:[#allocation2 + $0x70] sm:$0xff] %v3691
        %3728 = vst [vmem:[#allocation2 + $0x78] sm:$0xff] %v3692
        %3729 = vst [vmem:[#allocation2 + $0x80] sm:$0xff] %v3693
        %3730 = vst [vmem:[#allocation2 + $0x88] sm:$0xff] %v3694
        %3731 = vst [vmem:[#allocation2 + $0x90] sm:$0xff] %v3695
        %3732 = vst [vmem:[#allocation2 + $0x98] sm:$0xff] %v3696
        %3733 = vst [vmem:[#allocation2 + $0xa0] sm:$0xff] %v3697
        %3734 = vst [vmem:[#allocation2 + $0xa8] sm:$0xff] %v3698
        %3735 = vst [vmem:[#allocation2 + $0xb0] sm:$0xff] %v3699
        %3736 = vst [vmem:[#allocation2 + $0xb8] sm:$0xff] %v3700
        %3737 = vst [vmem:[#allocation2 + $0xc0] sm:$0xff] %v3701
        %3738 = vst [vmem:[#allocation2 + $0xc8] sm:$0xff] %v3702
        %3739 = vst [vmem:[#allocation2 + $0xd0] sm:$0xff] %v3703
        %3740 = vst [vmem:[#allocation2 + $0xd8] sm:$0xff] %v3704
        %3741 = vst [vmem:[#allocation2 + $0xe0] sm:$0xff] %v3705
        %3742 = vst [vmem:[#allocation2 + $0xe8] sm:$0xff] %v3706
        %3743 = vst [vmem:[#allocation2 + $0xf0] sm:$0xff] %v3707
        %3744 = vst [vmem:[#allocation2 + $0xf8] sm:$0xff] %v3708
        %3745 = vst [vmem:[#allocation2 + $0x100] sm:$0xff] %v3709
        %3746 = vst [vmem:[#allocation2 + $0x108] sm:$0xff] %v3710
        %3747 = vst [vmem:[#allocation2 + $0x110] sm:$0xff] %v3711
        %3748 = vst [vmem:[#allocation2 + $0x118] sm:$0xff] %v3712
        %s3749 = sadd.s32 %s184, 37
        %s3750 = scalar_lea.vmem %s182, %s3749
        %v3751 = vld [vmem:[%s3750] sm:$0xff]
        %v3752 = vld [vmem:[%s3750 + $0x8] sm:$0xff]
        %v3753 = vld [vmem:[%s3750 + $0x10] sm:$0xff]
        %v3754 = vld [vmem:[%s3750 + $0x18] sm:$0xff]
        %v3755 = vld [vmem:[%s3750 + $0x20] sm:$0xff]
        %v3756 = vld [vmem:[%s3750 + $0x28] sm:$0xff]
        %v3757 = vld [vmem:[%s3750 + $0x30] sm:$0xff]
        %v3758 = vld [vmem:[%s3750 + $0x38] sm:$0xff]
        %v3759 = vld [vmem:[%s3750 + $0x40] sm:$0xff]
        %v3760 = vld [vmem:[%s3750 + $0x48] sm:$0xff]
        %v3761 = vld [vmem:[%s3750 + $0x50] sm:$0xff]
        %v3762 = vld [vmem:[%s3750 + $0x58] sm:$0xff]
        %v3763 = vld [vmem:[%s3750 + $0x60] sm:$0xff]
        %v3764 = vld [vmem:[%s3750 + $0x68] sm:$0xff]
        %v3765 = vld [vmem:[%s3750 + $0x70] sm:$0xff]
        %v3766 = vld [vmem:[%s3750 + $0x78] sm:$0xff]
        %v3767 = vld [vmem:[%s3750 + $0x80] sm:$0xff]
        %v3768 = vld [vmem:[%s3750 + $0x88] sm:$0xff]
        %v3769 = vld [vmem:[%s3750 + $0x90] sm:$0xff]
        %v3770 = vld [vmem:[%s3750 + $0x98] sm:$0xff]
        %v3771 = vld [vmem:[%s3750 + $0xa0] sm:$0xff]
        %v3772 = vld [vmem:[%s3750 + $0xa8] sm:$0xff]
        %v3773 = vld [vmem:[%s3750 + $0xb0] sm:$0xff]
        %v3774 = vld [vmem:[%s3750 + $0xb8] sm:$0xff]
        %v3775 = vld [vmem:[%s3750 + $0xc0] sm:$0xff]
        %v3776 = vld [vmem:[%s3750 + $0xc8] sm:$0xff]
        %v3777 = vld [vmem:[%s3750 + $0xd0] sm:$0xff]
        %v3778 = vld [vmem:[%s3750 + $0xd8] sm:$0xff]
        %v3779 = vld [vmem:[%s3750 + $0xe0] sm:$0xff]
        %v3780 = vld [vmem:[%s3750 + $0xe8] sm:$0xff]
        %v3781 = vld [vmem:[%s3750 + $0xf0] sm:$0xff]
        %v3782 = vld [vmem:[%s3750 + $0xf8] sm:$0xff]
        %v3783 = vld [vmem:[%s3750 + $0x100] sm:$0xff]
        %v3784 = vld [vmem:[%s3750 + $0x108] sm:$0xff]
        %v3785 = vld [vmem:[%s3750 + $0x110] sm:$0xff]
        %v3786 = vld [vmem:[%s3750 + $0x118] sm:$0xff]
        %v3787 = vld [vmem:[#allocation2] sm:$0xff]
        %v3788 = vld [vmem:[#allocation2 + $0x8] sm:$0xff]
        %v3789 = vld [vmem:[#allocation2 + $0x10] sm:$0xff]
        %v3790 = vld [vmem:[#allocation2 + $0x18] sm:$0xff]
        %v3791 = vld [vmem:[#allocation2 + $0x20] sm:$0xff]
        %v3792 = vld [vmem:[#allocation2 + $0x28] sm:$0xff]
        %v3793 = vld [vmem:[#allocation2 + $0x30] sm:$0xff]
        %v3794 = vld [vmem:[#allocation2 + $0x38] sm:$0xff]
        %v3795 = vld [vmem:[#allocation2 + $0x40] sm:$0xff]
        %v3796 = vld [vmem:[#allocation2 + $0x48] sm:$0xff]
        %v3797 = vld [vmem:[#allocation2 + $0x50] sm:$0xff]
        %v3798 = vld [vmem:[#allocation2 + $0x58] sm:$0xff]
        %v3799 = vld [vmem:[#allocation2 + $0x60] sm:$0xff]
        %v3800 = vld [vmem:[#allocation2 + $0x68] sm:$0xff]
        %v3801 = vld [vmem:[#allocation2 + $0x70] sm:$0xff]
        %v3802 = vld [vmem:[#allocation2 + $0x78] sm:$0xff]
        %v3803 = vld [vmem:[#allocation2 + $0x80] sm:$0xff]
        %v3804 = vld [vmem:[#allocation2 + $0x88] sm:$0xff]
        %v3805 = vld [vmem:[#allocation2 + $0x90] sm:$0xff]
        %v3806 = vld [vmem:[#allocation2 + $0x98] sm:$0xff]
        %v3807 = vld [vmem:[#allocation2 + $0xa0] sm:$0xff]
        %v3808 = vld [vmem:[#allocation2 + $0xa8] sm:$0xff]
        %v3809 = vld [vmem:[#allocation2 + $0xb0] sm:$0xff]
        %v3810 = vld [vmem:[#allocation2 + $0xb8] sm:$0xff]
        %v3811 = vld [vmem:[#allocation2 + $0xc0] sm:$0xff]
        %v3812 = vld [vmem:[#allocation2 + $0xc8] sm:$0xff]
        %v3813 = vld [vmem:[#allocation2 + $0xd0] sm:$0xff]
        %v3814 = vld [vmem:[#allocation2 + $0xd8] sm:$0xff]
        %v3815 = vld [vmem:[#allocation2 + $0xe0] sm:$0xff]
        %v3816 = vld [vmem:[#allocation2 + $0xe8] sm:$0xff]
        %v3817 = vld [vmem:[#allocation2 + $0xf0] sm:$0xff]
        %v3818 = vld [vmem:[#allocation2 + $0xf8] sm:$0xff]
        %v3819 = vld [vmem:[#allocation2 + $0x100] sm:$0xff]
        %v3820 = vld [vmem:[#allocation2 + $0x108] sm:$0xff]
        %v3821 = vld [vmem:[#allocation2 + $0x110] sm:$0xff]
        %v3822 = vld [vmem:[#allocation2 + $0x118] sm:$0xff]
        %s3823 = scalar_lea.vmem %s1, 28
        %v3824 = vld [vmem:[%s3823] sm:$0xf]
        %v3826 = vsel %vm295, %v3751, 0
        %v3829 = vsel %vm295, %v3752, 0
        %v3832 = vsel %vm295, %v3753, 0
        %v3835 = vsel %vm295, %v3754, 0
        %v3838 = vsel %vm295, %v3755, 0
        %v3841 = vsel %vm295, %v3756, 0
        %v3844 = vsel %vm295, %v3757, 0
        %v3847 = vsel %vm295, %v3758, 0
        %v3850 = vsel %vm295, %v3759, 0
        %v3853 = vsel %vm295, %v3760, 0
        %v3856 = vsel %vm295, %v3761, 0
        %v3859 = vsel %vm295, %v3762, 0
        %v3862 = vsel %vm295, %v3763, 0
        %v3865 = vsel %vm295, %v3764, 0
        %v3868 = vsel %vm295, %v3765, 0
        %v3871 = vsel %vm295, %v3766, 0
        %v3874 = vsel %vm295, %v3767, 0
        %v3877 = vsel %vm295, %v3768, 0
        %v3880 = vsel %vm295, %v3769, 0
        %v3883 = vsel %vm295, %v3770, 0
        %v3886 = vsel %vm295, %v3771, 0
        %v3889 = vsel %vm295, %v3772, 0
        %v3892 = vsel %vm295, %v3773, 0
        %v3895 = vsel %vm295, %v3774, 0
        %v3898 = vsel %vm295, %v3775, 0
        %v3901 = vsel %vm295, %v3776, 0
        %v3904 = vsel %vm295, %v3777, 0
        %v3907 = vsel %vm295, %v3778, 0
        %v3910 = vsel %vm295, %v3779, 0
        %v3913 = vsel %vm295, %v3780, 0
        %v3916 = vsel %vm295, %v3781, 0
        %v3919 = vsel %vm295, %v3782, 0
        %v3922 = vsel %vm295, %v3783, 0
        %v3925 = vsel %vm295, %v3784, 0
        %v3928 = vsel %vm295, %v3785, 0
        %v3931 = vsel %vm295, %v3786, 0
        %v3934 = vsel %vm404, %v3824, 0
        %3936 = vmatprep.subr.mxu0 0.0
        %3937 = vmatpush1.msra.mxu0 0.0
        %3938 = vmatprep.subr.mxu0 0.0
        %3939 = vmatpush1.msra.mxu0 0.0
        %3940 = vmatprep.subr.mxu0 0.0
        %3941 = vmatpush1.msra.mxu0 0.0
        %3942 = vmatprep.subr.mxu0 0.0
        %3943 = vmatpush1.msra.mxu0 0.0
        %3944 = vmatprep.subr.mxu0 0.0
        %3945 = vmatpush1.msra.mxu0 0.0
        %3946 = vmatprep.subr.mxu0 0.0
        %3947 = vmatpush1.msra.mxu0 0.0
        %3948 = vmatprep.subr.mxu0 0.0
        %3949 = vmatpush1.msra.mxu0 0.0
        %3950 = vmatprep.subr.mxu0 0.0
        %3951 = vmatpush1.msra.mxu0 0.0
        %3952 = vmatprep.subr.mxu0 0.0
        %3953 = vmatpush1.msra.mxu0 0.0
        %3954 = vmatprep.subr.mxu0 0.0
        %3955 = vmatpush1.msra.mxu0 0.0
        %3956 = vmatprep.subr.mxu0 0.0
        %3957 = vmatpush1.msra.mxu0 0.0
        %3958 = vmatprep.subr.mxu0 0.0
        %3959 = vmatpush1.msra.mxu0 0.0
        %3960 = vmatprep.subr.mxu0 0.0
        %3961 = vmatpush1.msra.mxu0 0.0
        %3962 = vmatprep.subr.mxu0 0.0
        %3963 = vmatpush1.msra.mxu0 0.0
        %3964 = vmatprep.subr.mxu0 0.0
        %3965 = vmatpush1.msra.mxu0 0.0
        %3966 = vmatprep.subr.mxu0 0.0
        %3967 = vmatpush1.msra.mxu0 %v3934
        %3968 = vmatprep.subr.mxu0 0.0
        %3969 = vmatpush2.msra.mxu0 0.0
        %3970 = vmatprep.subr.mxu0 0.0
        %3971 = vmatpush2.msra.mxu0 0.0
        %3972 = vmatprep.subr.mxu0 0.0
        %3973 = vmatpush2.msra.mxu0 0.0
        %3974 = vmatprep.subr.mxu0 0.0
        %3975 = vmatpush2.msra.mxu0 0.0
        %3976 = vmatprep.subr.mxu0 0.0
        %3977 = vmatpush2.msra.mxu0 0.0
        %3978 = vmatprep.subr.mxu0 0.0
        %3979 = vmatpush2.msra.mxu0 0.0
        %3980 = vmatprep.subr.mxu0 0.0
        %3981 = vmatpush2.msra.mxu0 0.0
        %3982 = vmatprep.subr.mxu0 0.0
        %3983 = vmatpush2.msra.mxu0 0.0
        %3984 = vmatprep.subr.mxu0 0.0
        %3985 = vmatpush2.msra.mxu0 0.0
        %3986 = vmatprep.subr.mxu0 0.0
        %3987 = vmatpush2.msra.mxu0 0.0
        %3988 = vmatprep.subr.mxu0 0.0
        %3989 = vmatpush2.msra.mxu0 0.0
        %3990 = vmatprep.subr.mxu0 0.0
        %3991 = vmatpush2.msra.mxu0 0.0
        %3992 = vmatprep.subr.mxu0 0.0
        %3993 = vmatpush2.msra.mxu0 0.0
        %3994 = vmatprep.subr.mxu0 0.0
        %3995 = vmatpush2.msra.mxu0 0.0
        %3996 = vmatprep.subr.mxu0 0.0
        %3997 = vmatpush2.msra.mxu0 0.0
        %3998 = vmatprep.subr.mxu0 0.0
        %3999 = vmatpush2.msra.mxu0 0.0
        %4000 = vmatprep.mubr.f32.mxu0 0.0
        %4001 = vmatmul.mubr.f32.gmra.mxu0 %v3826
        %v4002 = vpop.f32.mrf.mxu0
        %v4003 = vadd.f32 0.0, %v4002
        %v4004 = vpop.f32.mrf.mxu0
        %4005 = vmatprep.mubr.f32.mxu0 0.0
        %4006 = vmatmul.mubr.f32.gmra.mxu0 %v3829
        %v4007 = vpop.f32.mrf.mxu0
        %v4008 = vadd.f32 0.0, %v4007
        %v4009 = vpop.f32.mrf.mxu0
        %4010 = vmatprep.mubr.f32.mxu0 0.0
        %4011 = vmatmul.mubr.f32.gmra.mxu0 %v3832
        %v4012 = vpop.f32.mrf.mxu0
        %v4013 = vadd.f32 0.0, %v4012
        %v4014 = vpop.f32.mrf.mxu0
        %4015 = vmatprep.mubr.f32.mxu0 0.0
        %4016 = vmatmul.mubr.f32.gmra.mxu0 %v3835
        %v4017 = vpop.f32.mrf.mxu0
        %v4018 = vadd.f32 0.0, %v4017
        %v4019 = vpop.f32.mrf.mxu0
        %4020 = vmatprep.mubr.f32.mxu0 0.0
        %4021 = vmatmul.mubr.f32.gmra.mxu0 %v3838
        %v4022 = vpop.f32.mrf.mxu0
        %v4023 = vadd.f32 0.0, %v4022
        %v4024 = vpop.f32.mrf.mxu0
        %4025 = vmatprep.mubr.f32.mxu0 0.0
        %4026 = vmatmul.mubr.f32.gmra.mxu0 %v3841
        %v4027 = vpop.f32.mrf.mxu0
        %v4028 = vadd.f32 0.0, %v4027
        %v4029 = vpop.f32.mrf.mxu0
        %4030 = vmatprep.mubr.f32.mxu0 0.0
        %4031 = vmatmul.mubr.f32.gmra.mxu0 %v3844
        %v4032 = vpop.f32.mrf.mxu0
        %v4033 = vadd.f32 0.0, %v4032
        %v4034 = vpop.f32.mrf.mxu0
        %4035 = vmatprep.mubr.f32.mxu0 0.0
        %4036 = vmatmul.mubr.f32.gmra.mxu0 %v3847
        %v4037 = vpop.f32.mrf.mxu0
        %v4038 = vadd.f32 0.0, %v4037
        %v4039 = vpop.f32.mrf.mxu0
        %4040 = vmatprep.mubr.f32.mxu0 0.0
        %4041 = vmatmul.mubr.f32.gmra.mxu0 %v3850
        %v4042 = vpop.f32.mrf.mxu0
        %v4043 = vadd.f32 0.0, %v4042
        %v4044 = vpop.f32.mrf.mxu0
        %4045 = vmatprep.mubr.f32.mxu0 0.0
        %4046 = vmatmul.mubr.f32.gmra.mxu0 %v3853
        %v4047 = vpop.f32.mrf.mxu0
        %v4048 = vadd.f32 0.0, %v4047
        %v4049 = vpop.f32.mrf.mxu0
        %4050 = vmatprep.mubr.f32.mxu0 0.0
        %4051 = vmatmul.mubr.f32.gmra.mxu0 %v3856
        %v4052 = vpop.f32.mrf.mxu0
        %v4053 = vadd.f32 0.0, %v4052
        %v4054 = vpop.f32.mrf.mxu0
        %4055 = vmatprep.mubr.f32.mxu0 0.0
        %4056 = vmatmul.mubr.f32.gmra.mxu0 %v3859
        %v4057 = vpop.f32.mrf.mxu0
        %v4058 = vadd.f32 0.0, %v4057
        %v4059 = vpop.f32.mrf.mxu0
        %4060 = vmatprep.mubr.f32.mxu0 0.0
        %4061 = vmatmul.mubr.f32.gmra.mxu0 %v3862
        %v4062 = vpop.f32.mrf.mxu0
        %v4063 = vadd.f32 0.0, %v4062
        %v4064 = vpop.f32.mrf.mxu0
        %4065 = vmatprep.mubr.f32.mxu0 0.0
        %4066 = vmatmul.mubr.f32.gmra.mxu0 %v3865
        %v4067 = vpop.f32.mrf.mxu0
        %v4068 = vadd.f32 0.0, %v4067
        %v4069 = vpop.f32.mrf.mxu0
        %4070 = vmatprep.mubr.f32.mxu0 0.0
        %4071 = vmatmul.mubr.f32.gmra.mxu0 %v3868
        %v4072 = vpop.f32.mrf.mxu0
        %v4073 = vadd.f32 0.0, %v4072
        %v4074 = vpop.f32.mrf.mxu0
        %4075 = vmatprep.mubr.f32.mxu0 0.0
        %4076 = vmatmul.mubr.f32.gmra.mxu0 %v3871
        %v4077 = vpop.f32.mrf.mxu0
        %v4078 = vadd.f32 0.0, %v4077
        %v4079 = vpop.f32.mrf.mxu0
        %4080 = vmatprep.mubr.f32.mxu0 0.0
        %4081 = vmatmul.mubr.f32.gmra.mxu0 %v3874
        %v4082 = vpop.f32.mrf.mxu0
        %v4083 = vadd.f32 0.0, %v4082
        %v4084 = vpop.f32.mrf.mxu0
        %4085 = vmatprep.mubr.f32.mxu0 0.0
        %4086 = vmatmul.mubr.f32.gmra.mxu0 %v3877
        %v4087 = vpop.f32.mrf.mxu0
        %v4088 = vadd.f32 0.0, %v4087
        %v4089 = vpop.f32.mrf.mxu0
        %4090 = vmatprep.mubr.f32.mxu0 0.0
        %4091 = vmatmul.mubr.f32.gmra.mxu0 %v3880
        %v4092 = vpop.f32.mrf.mxu0
        %v4093 = vadd.f32 0.0, %v4092
        %v4094 = vpop.f32.mrf.mxu0
        %4095 = vmatprep.mubr.f32.mxu0 0.0
        %4096 = vmatmul.mubr.f32.gmra.mxu0 %v3883
        %v4097 = vpop.f32.mrf.mxu0
        %v4098 = vadd.f32 0.0, %v4097
        %v4099 = vpop.f32.mrf.mxu0
        %4100 = vmatprep.mubr.f32.mxu0 0.0
        %4101 = vmatmul.mubr.f32.gmra.mxu0 %v3886
        %v4102 = vpop.f32.mrf.mxu0
        %v4103 = vadd.f32 0.0, %v4102
        %v4104 = vpop.f32.mrf.mxu0
        %4105 = vmatprep.mubr.f32.mxu0 0.0
        %4106 = vmatmul.mubr.f32.gmra.mxu0 %v3889
        %v4107 = vpop.f32.mrf.mxu0
        %v4108 = vadd.f32 0.0, %v4107
        %v4109 = vpop.f32.mrf.mxu0
        %4110 = vmatprep.mubr.f32.mxu0 0.0
        %4111 = vmatmul.mubr.f32.gmra.mxu0 %v3892
        %v4112 = vpop.f32.mrf.mxu0
        %v4113 = vadd.f32 0.0, %v4112
        %v4114 = vpop.f32.mrf.mxu0
        %4115 = vmatprep.mubr.f32.mxu0 0.0
        %4116 = vmatmul.mubr.f32.gmra.mxu0 %v3895
        %v4117 = vpop.f32.mrf.mxu0
        %v4118 = vadd.f32 0.0, %v4117
        %v4119 = vpop.f32.mrf.mxu0
        %4120 = vmatprep.mubr.f32.mxu0 0.0
        %4121 = vmatmul.mubr.f32.gmra.mxu0 %v3898
        %v4122 = vpop.f32.mrf.mxu0
        %v4123 = vadd.f32 0.0, %v4122
        %v4124 = vpop.f32.mrf.mxu0
        %4125 = vmatprep.mubr.f32.mxu0 0.0
        %4126 = vmatmul.mubr.f32.gmra.mxu0 %v3901
        %v4127 = vpop.f32.mrf.mxu0
        %v4128 = vadd.f32 0.0, %v4127
        %v4129 = vpop.f32.mrf.mxu0
        %4130 = vmatprep.mubr.f32.mxu0 0.0
        %4131 = vmatmul.mubr.f32.gmra.mxu0 %v3904
        %v4132 = vpop.f32.mrf.mxu0
        %v4133 = vadd.f32 0.0, %v4132
        %v4134 = vpop.f32.mrf.mxu0
        %4135 = vmatprep.mubr.f32.mxu0 0.0
        %4136 = vmatmul.mubr.f32.gmra.mxu0 %v3907
        %v4137 = vpop.f32.mrf.mxu0
        %v4138 = vadd.f32 0.0, %v4137
        %v4139 = vpop.f32.mrf.mxu0
        %4140 = vmatprep.mubr.f32.mxu0 0.0
        %4141 = vmatmul.mubr.f32.gmra.mxu0 %v3910
        %v4142 = vpop.f32.mrf.mxu0
        %v4143 = vadd.f32 0.0, %v4142
        %v4144 = vpop.f32.mrf.mxu0
        %4145 = vmatprep.mubr.f32.mxu0 0.0
        %4146 = vmatmul.mubr.f32.gmra.mxu0 %v3913
        %v4147 = vpop.f32.mrf.mxu0
        %v4148 = vadd.f32 0.0, %v4147
        %v4149 = vpop.f32.mrf.mxu0
        %4150 = vmatprep.mubr.f32.mxu0 0.0
        %4151 = vmatmul.mubr.f32.gmra.mxu0 %v3916
        %v4152 = vpop.f32.mrf.mxu0
        %v4153 = vadd.f32 0.0, %v4152
        %v4154 = vpop.f32.mrf.mxu0
        %4155 = vmatprep.mubr.f32.mxu0 0.0
        %4156 = vmatmul.mubr.f32.gmra.mxu0 %v3919
        %v4157 = vpop.f32.mrf.mxu0
        %v4158 = vadd.f32 0.0, %v4157
        %v4159 = vpop.f32.mrf.mxu0
        %4160 = vmatprep.mubr.f32.mxu0 0.0
        %4161 = vmatmul.mubr.f32.gmra.mxu0 %v3922
        %v4162 = vpop.f32.mrf.mxu0
        %v4163 = vadd.f32 0.0, %v4162
        %v4164 = vpop.f32.mrf.mxu0
        %4165 = vmatprep.mubr.f32.mxu0 0.0
        %4166 = vmatmul.mubr.f32.gmra.mxu0 %v3925
        %v4167 = vpop.f32.mrf.mxu0
        %v4168 = vadd.f32 0.0, %v4167
        %v4169 = vpop.f32.mrf.mxu0
        %4170 = vmatprep.mubr.f32.mxu0 0.0
        %4171 = vmatmul.mubr.f32.gmra.mxu0 %v3928
        %v4172 = vpop.f32.mrf.mxu0
        %v4173 = vadd.f32 0.0, %v4172
        %v4174 = vpop.f32.mrf.mxu0
        %4175 = vmatprep.mubr.f32.mxu0 0.0
        %4176 = vmatmul.mubr.f32.gmra.mxu0 %v3931
        %v4177 = vpop.f32.mrf.mxu0
        %v4178 = vadd.f32 0.0, %v4177
        %v4179 = vpop.f32.mrf.mxu0
        %4180 = vdwg.mxu0
        %v4181 = vadd.f32 %v3787, %v4003
        %v4182 = vadd.f32 %v3788, %v4008
        %v4183 = vadd.f32 %v3789, %v4013
        %v4184 = vadd.f32 %v3790, %v4018
        %v4185 = vadd.f32 %v3791, %v4023
        %v4186 = vadd.f32 %v3792, %v4028
        %v4187 = vadd.f32 %v3793, %v4033
        %v4188 = vadd.f32 %v3794, %v4038
        %v4189 = vadd.f32 %v3795, %v4043
        %v4190 = vadd.f32 %v3796, %v4048
        %v4191 = vadd.f32 %v3797, %v4053
        %v4192 = vadd.f32 %v3798, %v4058
        %v4193 = vadd.f32 %v3799, %v4063
        %v4194 = vadd.f32 %v3800, %v4068
        %v4195 = vadd.f32 %v3801, %v4073
        %v4196 = vadd.f32 %v3802, %v4078
        %v4197 = vadd.f32 %v3803, %v4083
        %v4198 = vadd.f32 %v3804, %v4088
        %v4199 = vadd.f32 %v3805, %v4093
        %v4200 = vadd.f32 %v3806, %v4098
        %v4201 = vadd.f32 %v3807, %v4103
        %v4202 = vadd.f32 %v3808, %v4108
        %v4203 = vadd.f32 %v3809, %v4113
        %v4204 = vadd.f32 %v3810, %v4118
        %v4205 = vadd.f32 %v3811, %v4123
        %v4206 = vadd.f32 %v3812, %v4128
        %v4207 = vadd.f32 %v3813, %v4133
        %v4208 = vadd.f32 %v3814, %v4138
        %v4209 = vadd.f32 %v3815, %v4143
        %v4210 = vadd.f32 %v3816, %v4148
        %v4211 = vadd.f32 %v3817, %v4153
        %v4212 = vadd.f32 %v3818, %v4158
        %v4213 = vadd.f32 %v3819, %v4163
        %v4214 = vadd.f32 %v3820, %v4168
        %v4215 = vadd.f32 %v3821, %v4173
        %v4216 = vadd.f32 %v3822, %v4178
        %4217 = vst [vmem:[#allocation2] sm:$0xff] %v4181
        %4218 = vst [vmem:[#allocation2 + $0x8] sm:$0xff] %v4182
        %4219 = vst [vmem:[#allocation2 + $0x10] sm:$0xff] %v4183
        %4220 = vst [vmem:[#allocation2 + $0x18] sm:$0xff] %v4184
        %4221 = vst [vmem:[#allocation2 + $0x20] sm:$0xff] %v4185
        %4222 = vst [vmem:[#allocation2 + $0x28] sm:$0xff] %v4186
        %4223 = vst [vmem:[#allocation2 + $0x30] sm:$0xff] %v4187
        %4224 = vst [vmem:[#allocation2 + $0x38] sm:$0xff] %v4188
        %4225 = vst [vmem:[#allocation2 + $0x40] sm:$0xff] %v4189
        %4226 = vst [vmem:[#allocation2 + $0x48] sm:$0xff] %v4190
        %4227 = vst [vmem:[#allocation2 + $0x50] sm:$0xff] %v4191
        %4228 = vst [vmem:[#allocation2 + $0x58] sm:$0xff] %v4192
        %4229 = vst [vmem:[#allocation2 + $0x60] sm:$0xff] %v4193
        %4230 = vst [vmem:[#allocation2 + $0x68] sm:$0xff] %v4194
        %4231 = vst [vmem:[#allocation2 + $0x70] sm:$0xff] %v4195
        %4232 = vst [vmem:[#allocation2 + $0x78] sm:$0xff] %v4196
        %4233 = vst [vmem:[#allocation2 + $0x80] sm:$0xff] %v4197
        %4234 = vst [vmem:[#allocation2 + $0x88] sm:$0xff] %v4198
        %4235 = vst [vmem:[#allocation2 + $0x90] sm:$0xff] %v4199
        %4236 = vst [vmem:[#allocation2 + $0x98] sm:$0xff] %v4200
        %4237 = vst [vmem:[#allocation2 + $0xa0] sm:$0xff] %v4201
        %4238 = vst [vmem:[#allocation2 + $0xa8] sm:$0xff] %v4202
        %4239 = vst [vmem:[#allocation2 + $0xb0] sm:$0xff] %v4203
        %4240 = vst [vmem:[#allocation2 + $0xb8] sm:$0xff] %v4204
        %4241 = vst [vmem:[#allocation2 + $0xc0] sm:$0xff] %v4205
        %4242 = vst [vmem:[#allocation2 + $0xc8] sm:$0xff] %v4206
        %4243 = vst [vmem:[#allocation2 + $0xd0] sm:$0xff] %v4207
        %4244 = vst [vmem:[#allocation2 + $0xd8] sm:$0xff] %v4208
        %4245 = vst [vmem:[#allocation2 + $0xe0] sm:$0xff] %v4209
        %4246 = vst [vmem:[#allocation2 + $0xe8] sm:$0xff] %v4210
        %4247 = vst [vmem:[#allocation2 + $0xf0] sm:$0xff] %v4211
        %4248 = vst [vmem:[#allocation2 + $0xf8] sm:$0xff] %v4212
        %4249 = vst [vmem:[#allocation2 + $0x100] sm:$0xff] %v4213
        %4250 = vst [vmem:[#allocation2 + $0x108] sm:$0xff] %v4214
        %4251 = vst [vmem:[#allocation2 + $0x110] sm:$0xff] %v4215
        %4252 = vst [vmem:[#allocation2 + $0x118] sm:$0xff] %v4216
        %s4253 = sadd.s32 %s184, 38
        %s4254 = scalar_lea.vmem %s182, %s4253
        %v4255 = vld [vmem:[%s4254] sm:$0xff]
        %v4256 = vld [vmem:[%s4254 + $0x8] sm:$0xff]
        %v4257 = vld [vmem:[%s4254 + $0x10] sm:$0xff]
        %v4258 = vld [vmem:[%s4254 + $0x18] sm:$0xff]
        %v4259 = vld [vmem:[%s4254 + $0x20] sm:$0xff]
        %v4260 = vld [vmem:[%s4254 + $0x28] sm:$0xff]
        %v4261 = vld [vmem:[%s4254 + $0x30] sm:$0xff]
        %v4262 = vld [vmem:[%s4254 + $0x38] sm:$0xff]
        %v4263 = vld [vmem:[%s4254 + $0x40] sm:$0xff]
        %v4264 = vld [vmem:[%s4254 + $0x48] sm:$0xff]
        %v4265 = vld [vmem:[%s4254 + $0x50] sm:$0xff]
        %v4266 = vld [vmem:[%s4254 + $0x58] sm:$0xff]
        %v4267 = vld [vmem:[%s4254 + $0x60] sm:$0xff]
        %v4268 = vld [vmem:[%s4254 + $0x68] sm:$0xff]
        %v4269 = vld [vmem:[%s4254 + $0x70] sm:$0xff]
        %v4270 = vld [vmem:[%s4254 + $0x78] sm:$0xff]
        %v4271 = vld [vmem:[%s4254 + $0x80] sm:$0xff]
        %v4272 = vld [vmem:[%s4254 + $0x88] sm:$0xff]
        %v4273 = vld [vmem:[%s4254 + $0x90] sm:$0xff]
        %v4274 = vld [vmem:[%s4254 + $0x98] sm:$0xff]
        %v4275 = vld [vmem:[%s4254 + $0xa0] sm:$0xff]
        %v4276 = vld [vmem:[%s4254 + $0xa8] sm:$0xff]
        %v4277 = vld [vmem:[%s4254 + $0xb0] sm:$0xff]
        %v4278 = vld [vmem:[%s4254 + $0xb8] sm:$0xff]
        %v4279 = vld [vmem:[%s4254 + $0xc0] sm:$0xff]
        %v4280 = vld [vmem:[%s4254 + $0xc8] sm:$0xff]
        %v4281 = vld [vmem:[%s4254 + $0xd0] sm:$0xff]
        %v4282 = vld [vmem:[%s4254 + $0xd8] sm:$0xff]
        %v4283 = vld [vmem:[%s4254 + $0xe0] sm:$0xff]
        %v4284 = vld [vmem:[%s4254 + $0xe8] sm:$0xff]
        %v4285 = vld [vmem:[%s4254 + $0xf0] sm:$0xff]
        %v4286 = vld [vmem:[%s4254 + $0xf8] sm:$0xff]
        %v4287 = vld [vmem:[%s4254 + $0x100] sm:$0xff]
        %v4288 = vld [vmem:[%s4254 + $0x108] sm:$0xff]
        %v4289 = vld [vmem:[%s4254 + $0x110] sm:$0xff]
        %v4290 = vld [vmem:[%s4254 + $0x118] sm:$0xff]
        %v4291 = vld [vmem:[#allocation2] sm:$0xff]
        %v4292 = vld [vmem:[#allocation2 + $0x8] sm:$0xff]
        %v4293 = vld [vmem:[#allocation2 + $0x10] sm:$0xff]
        %v4294 = vld [vmem:[#allocation2 + $0x18] sm:$0xff]
        %v4295 = vld [vmem:[#allocation2 + $0x20] sm:$0xff]
        %v4296 = vld [vmem:[#allocation2 + $0x28] sm:$0xff]
        %v4297 = vld [vmem:[#allocation2 + $0x30] sm:$0xff]
        %v4298 = vld [vmem:[#allocation2 + $0x38] sm:$0xff]
        %v4299 = vld [vmem:[#allocation2 + $0x40] sm:$0xff]
        %v4300 = vld [vmem:[#allocation2 + $0x48] sm:$0xff]
        %v4301 = vld [vmem:[#allocation2 + $0x50] sm:$0xff]
        %v4302 = vld [vmem:[#allocation2 + $0x58] sm:$0xff]
        %v4303 = vld [vmem:[#allocation2 + $0x60] sm:$0xff]
        %v4304 = vld [vmem:[#allocation2 + $0x68] sm:$0xff]
        %v4305 = vld [vmem:[#allocation2 + $0x70] sm:$0xff]
        %v4306 = vld [vmem:[#allocation2 + $0x78] sm:$0xff]
        %v4307 = vld [vmem:[#allocation2 + $0x80] sm:$0xff]
        %v4308 = vld [vmem:[#allocation2 + $0x88] sm:$0xff]
        %v4309 = vld [vmem:[#allocation2 + $0x90] sm:$0xff]
        %v4310 = vld [vmem:[#allocation2 + $0x98] sm:$0xff]
        %v4311 = vld [vmem:[#allocation2 + $0xa0] sm:$0xff]
        %v4312 = vld [vmem:[#allocation2 + $0xa8] sm:$0xff]
        %v4313 = vld [vmem:[#allocation2 + $0xb0] sm:$0xff]
        %v4314 = vld [vmem:[#allocation2 + $0xb8] sm:$0xff]
        %v4315 = vld [vmem:[#allocation2 + $0xc0] sm:$0xff]
        %v4316 = vld [vmem:[#allocation2 + $0xc8] sm:$0xff]
        %v4317 = vld [vmem:[#allocation2 + $0xd0] sm:$0xff]
        %v4318 = vld [vmem:[#allocation2 + $0xd8] sm:$0xff]
        %v4319 = vld [vmem:[#allocation2 + $0xe0] sm:$0xff]
        %v4320 = vld [vmem:[#allocation2 + $0xe8] sm:$0xff]
        %v4321 = vld [vmem:[#allocation2 + $0xf0] sm:$0xff]
        %v4322 = vld [vmem:[#allocation2 + $0xf8] sm:$0xff]
        %v4323 = vld [vmem:[#allocation2 + $0x100] sm:$0xff]
        %v4324 = vld [vmem:[#allocation2 + $0x108] sm:$0xff]
        %v4325 = vld [vmem:[#allocation2 + $0x110] sm:$0xff]
        %v4326 = vld [vmem:[#allocation2 + $0x118] sm:$0xff]
        %s4327 = scalar_lea.vmem %s1, 32
        %v4328 = vld [vmem:[%s4327] sm:$0xf]
        %v4330 = vsel %vm295, %v4255, 0
        %v4333 = vsel %vm295, %v4256, 0
        %v4336 = vsel %vm295, %v4257, 0
        %v4339 = vsel %vm295, %v4258, 0
        %v4342 = vsel %vm295, %v4259, 0
        %v4345 = vsel %vm295, %v4260, 0
        %v4348 = vsel %vm295, %v4261, 0
        %v4351 = vsel %vm295, %v4262, 0
        %v4354 = vsel %vm295, %v4263, 0
        %v4357 = vsel %vm295, %v4264, 0
        %v4360 = vsel %vm295, %v4265, 0
        %v4363 = vsel %vm295, %v4266, 0
        %v4366 = vsel %vm295, %v4267, 0
        %v4369 = vsel %vm295, %v4268, 0
        %v4372 = vsel %vm295, %v4269, 0
        %v4375 = vsel %vm295, %v4270, 0
        %v4378 = vsel %vm295, %v4271, 0
        %v4381 = vsel %vm295, %v4272, 0
        %v4384 = vsel %vm295, %v4273, 0
        %v4387 = vsel %vm295, %v4274, 0
        %v4390 = vsel %vm295, %v4275, 0
        %v4393 = vsel %vm295, %v4276, 0
        %v4396 = vsel %vm295, %v4277, 0
        %v4399 = vsel %vm295, %v4278, 0
        %v4402 = vsel %vm295, %v4279, 0
        %v4405 = vsel %vm295, %v4280, 0
        %v4408 = vsel %vm295, %v4281, 0
        %v4411 = vsel %vm295, %v4282, 0
        %v4414 = vsel %vm295, %v4283, 0
        %v4417 = vsel %vm295, %v4284, 0
        %v4420 = vsel %vm295, %v4285, 0
        %v4423 = vsel %vm295, %v4286, 0
        %v4426 = vsel %vm295, %v4287, 0
        %v4429 = vsel %vm295, %v4288, 0
        %v4432 = vsel %vm295, %v4289, 0
        %v4435 = vsel %vm295, %v4290, 0
        %v4438 = vsel %vm404, %v4328, 0
        %4440 = vmatprep.subr.mxu0 0.0
        %4441 = vmatpush1.msra.mxu0 0.0
        %4442 = vmatprep.subr.mxu0 0.0
        %4443 = vmatpush1.msra.mxu0 0.0
        %4444 = vmatprep.subr.mxu0 0.0
        %4445 = vmatpush1.msra.mxu0 0.0
        %4446 = vmatprep.subr.mxu0 0.0
        %4447 = vmatpush1.msra.mxu0 0.0
        %4448 = vmatprep.subr.mxu0 0.0
        %4449 = vmatpush1.msra.mxu0 0.0
        %4450 = vmatprep.subr.mxu0 0.0
        %4451 = vmatpush1.msra.mxu0 0.0
        %4452 = vmatprep.subr.mxu0 0.0
        %4453 = vmatpush1.msra.mxu0 0.0
        %4454 = vmatprep.subr.mxu0 0.0
        %4455 = vmatpush1.msra.mxu0 0.0
        %4456 = vmatprep.subr.mxu0 0.0
        %4457 = vmatpush1.msra.mxu0 0.0
        %4458 = vmatprep.subr.mxu0 0.0
        %4459 = vmatpush1.msra.mxu0 0.0
        %4460 = vmatprep.subr.mxu0 0.0
        %4461 = vmatpush1.msra.mxu0 0.0
        %4462 = vmatprep.subr.mxu0 0.0
        %4463 = vmatpush1.msra.mxu0 0.0
        %4464 = vmatprep.subr.mxu0 0.0
        %4465 = vmatpush1.msra.mxu0 0.0
        %4466 = vmatprep.subr.mxu0 0.0
        %4467 = vmatpush1.msra.mxu0 0.0
        %4468 = vmatprep.subr.mxu0 0.0
        %4469 = vmatpush1.msra.mxu0 0.0
        %4470 = vmatprep.subr.mxu0 0.0
        %4471 = vmatpush1.msra.mxu0 %v4438
        %4472 = vmatprep.subr.mxu0 0.0
        %4473 = vmatpush2.msra.mxu0 0.0
        %4474 = vmatprep.subr.mxu0 0.0
        %4475 = vmatpush2.msra.mxu0 0.0
        %4476 = vmatprep.subr.mxu0 0.0
        %4477 = vmatpush2.msra.mxu0 0.0
        %4478 = vmatprep.subr.mxu0 0.0
        %4479 = vmatpush2.msra.mxu0 0.0
        %4480 = vmatprep.subr.mxu0 0.0
        %4481 = vmatpush2.msra.mxu0 0.0
        %4482 = vmatprep.subr.mxu0 0.0
        %4483 = vmatpush2.msra.mxu0 0.0
        %4484 = vmatprep.subr.mxu0 0.0
        %4485 = vmatpush2.msra.mxu0 0.0
        %4486 = vmatprep.subr.mxu0 0.0
        %4487 = vmatpush2.msra.mxu0 0.0
        %4488 = vmatprep.subr.mxu0 0.0
        %4489 = vmatpush2.msra.mxu0 0.0
        %4490 = vmatprep.subr.mxu0 0.0
        %4491 = vmatpush2.msra.mxu0 0.0
        %4492 = vmatprep.subr.mxu0 0.0
        %4493 = vmatpush2.msra.mxu0 0.0
        %4494 = vmatprep.subr.mxu0 0.0
        %4495 = vmatpush2.msra.mxu0 0.0
        %4496 = vmatprep.subr.mxu0 0.0
        %4497 = vmatpush2.msra.mxu0 0.0
        %4498 = vmatprep.subr.mxu0 0.0
        %4499 = vmatpush2.msra.mxu0 0.0
        %4500 = vmatprep.subr.mxu0 0.0
        %4501 = vmatpush2.msra.mxu0 0.0
        %4502 = vmatprep.subr.mxu0 0.0
        %4503 = vmatpush2.msra.mxu0 0.0
        %4504 = vmatprep.mubr.f32.mxu0 0.0
        %4505 = vmatmul.mubr.f32.gmra.mxu0 %v4330
        %v4506 = vpop.f32.mrf.mxu0
        %v4507 = vadd.f32 0.0, %v4506
        %v4508 = vpop.f32.mrf.mxu0
        %4509 = vmatprep.mubr.f32.mxu0 0.0
        %4510 = vmatmul.mubr.f32.gmra.mxu0 %v4333
        %v4511 = vpop.f32.mrf.mxu0
        %v4512 = vadd.f32 0.0, %v4511
        %v4513 = vpop.f32.mrf.mxu0
        %4514 = vmatprep.mubr.f32.mxu0 0.0
        %4515 = vmatmul.mubr.f32.gmra.mxu0 %v4336
        %v4516 = vpop.f32.mrf.mxu0
        %v4517 = vadd.f32 0.0, %v4516
        %v4518 = vpop.f32.mrf.mxu0
        %4519 = vmatprep.mubr.f32.mxu0 0.0
        %4520 = vmatmul.mubr.f32.gmra.mxu0 %v4339
        %v4521 = vpop.f32.mrf.mxu0
        %v4522 = vadd.f32 0.0, %v4521
        %v4523 = vpop.f32.mrf.mxu0
        %4524 = vmatprep.mubr.f32.mxu0 0.0
        %4525 = vmatmul.mubr.f32.gmra.mxu0 %v4342
        %v4526 = vpop.f32.mrf.mxu0
        %v4527 = vadd.f32 0.0, %v4526
        %v4528 = vpop.f32.mrf.mxu0
        %4529 = vmatprep.mubr.f32.mxu0 0.0
        %4530 = vmatmul.mubr.f32.gmra.mxu0 %v4345
        %v4531 = vpop.f32.mrf.mxu0
        %v4532 = vadd.f32 0.0, %v4531
        %v4533 = vpop.f32.mrf.mxu0
        %4534 = vmatprep.mubr.f32.mxu0 0.0
        %4535 = vmatmul.mubr.f32.gmra.mxu0 %v4348
        %v4536 = vpop.f32.mrf.mxu0
        %v4537 = vadd.f32 0.0, %v4536
        %v4538 = vpop.f32.mrf.mxu0
        %4539 = vmatprep.mubr.f32.mxu0 0.0
        %4540 = vmatmul.mubr.f32.gmra.mxu0 %v4351
        %v4541 = vpop.f32.mrf.mxu0
        %v4542 = vadd.f32 0.0, %v4541
        %v4543 = vpop.f32.mrf.mxu0
        %4544 = vmatprep.mubr.f32.mxu0 0.0
        %4545 = vmatmul.mubr.f32.gmra.mxu0 %v4354
        %v4546 = vpop.f32.mrf.mxu0
        %v4547 = vadd.f32 0.0, %v4546
        %v4548 = vpop.f32.mrf.mxu0
        %4549 = vmatprep.mubr.f32.mxu0 0.0
        %4550 = vmatmul.mubr.f32.gmra.mxu0 %v4357
        %v4551 = vpop.f32.mrf.mxu0
        %v4552 = vadd.f32 0.0, %v4551
        %v4553 = vpop.f32.mrf.mxu0
        %4554 = vmatprep.mubr.f32.mxu0 0.0
        %4555 = vmatmul.mubr.f32.gmra.mxu0 %v4360
        %v4556 = vpop.f32.mrf.mxu0
        %v4557 = vadd.f32 0.0, %v4556
        %v4558 = vpop.f32.mrf.mxu0
        %4559 = vmatprep.mubr.f32.mxu0 0.0
        %4560 = vmatmul.mubr.f32.gmra.mxu0 %v4363
        %v4561 = vpop.f32.mrf.mxu0
        %v4562 = vadd.f32 0.0, %v4561
        %v4563 = vpop.f32.mrf.mxu0
        %4564 = vmatprep.mubr.f32.mxu0 0.0
        %4565 = vmatmul.mubr.f32.gmra.mxu0 %v4366
        %v4566 = vpop.f32.mrf.mxu0
        %v4567 = vadd.f32 0.0, %v4566
        %v4568 = vpop.f32.mrf.mxu0
        %4569 = vmatprep.mubr.f32.mxu0 0.0
        %4570 = vmatmul.mubr.f32.gmra.mxu0 %v4369
        %v4571 = vpop.f32.mrf.mxu0
        %v4572 = vadd.f32 0.0, %v4571
        %v4573 = vpop.f32.mrf.mxu0
        %4574 = vmatprep.mubr.f32.mxu0 0.0
        %4575 = vmatmul.mubr.f32.gmra.mxu0 %v4372
        %v4576 = vpop.f32.mrf.mxu0
        %v4577 = vadd.f32 0.0, %v4576
        %v4578 = vpop.f32.mrf.mxu0
        %4579 = vmatprep.mubr.f32.mxu0 0.0
        %4580 = vmatmul.mubr.f32.gmra.mxu0 %v4375
        %v4581 = vpop.f32.mrf.mxu0
        %v4582 = vadd.f32 0.0, %v4581
        %v4583 = vpop.f32.mrf.mxu0
        %4584 = vmatprep.mubr.f32.mxu0 0.0
        %4585 = vmatmul.mubr.f32.gmra.mxu0 %v4378
        %v4586 = vpop.f32.mrf.mxu0
        %v4587 = vadd.f32 0.0, %v4586
        %v4588 = vpop.f32.mrf.mxu0
        %4589 = vmatprep.mubr.f32.mxu0 0.0
        %4590 = vmatmul.mubr.f32.gmra.mxu0 %v4381
        %v4591 = vpop.f32.mrf.mxu0
        %v4592 = vadd.f32 0.0, %v4591
        %v4593 = vpop.f32.mrf.mxu0
        %4594 = vmatprep.mubr.f32.mxu0 0.0
        %4595 = vmatmul.mubr.f32.gmra.mxu0 %v4384
        %v4596 = vpop.f32.mrf.mxu0
        %v4597 = vadd.f32 0.0, %v4596
        %v4598 = vpop.f32.mrf.mxu0
        %4599 = vmatprep.mubr.f32.mxu0 0.0
        %4600 = vmatmul.mubr.f32.gmra.mxu0 %v4387
        %v4601 = vpop.f32.mrf.mxu0
        %v4602 = vadd.f32 0.0, %v4601
        %v4603 = vpop.f32.mrf.mxu0
        %4604 = vmatprep.mubr.f32.mxu0 0.0
        %4605 = vmatmul.mubr.f32.gmra.mxu0 %v4390
        %v4606 = vpop.f32.mrf.mxu0
        %v4607 = vadd.f32 0.0, %v4606
        %v4608 = vpop.f32.mrf.mxu0
        %4609 = vmatprep.mubr.f32.mxu0 0.0
        %4610 = vmatmul.mubr.f32.gmra.mxu0 %v4393
        %v4611 = vpop.f32.mrf.mxu0
        %v4612 = vadd.f32 0.0, %v4611
        %v4613 = vpop.f32.mrf.mxu0
        %4614 = vmatprep.mubr.f32.mxu0 0.0
        %4615 = vmatmul.mubr.f32.gmra.mxu0 %v4396
        %v4616 = vpop.f32.mrf.mxu0
        %v4617 = vadd.f32 0.0, %v4616
        %v4618 = vpop.f32.mrf.mxu0
        %4619 = vmatprep.mubr.f32.mxu0 0.0
        %4620 = vmatmul.mubr.f32.gmra.mxu0 %v4399
        %v4621 = vpop.f32.mrf.mxu0
        %v4622 = vadd.f32 0.0, %v4621
        %v4623 = vpop.f32.mrf.mxu0
        %4624 = vmatprep.mubr.f32.mxu0 0.0
        %4625 = vmatmul.mubr.f32.gmra.mxu0 %v4402
        %v4626 = vpop.f32.mrf.mxu0
        %v4627 = vadd.f32 0.0, %v4626
        %v4628 = vpop.f32.mrf.mxu0
        %4629 = vmatprep.mubr.f32.mxu0 0.0
        %4630 = vmatmul.mubr.f32.gmra.mxu0 %v4405
        %v4631 = vpop.f32.mrf.mxu0
        %v4632 = vadd.f32 0.0, %v4631
        %v4633 = vpop.f32.mrf.mxu0
        %4634 = vmatprep.mubr.f32.mxu0 0.0
        %4635 = vmatmul.mubr.f32.gmra.mxu0 %v4408
        %v4636 = vpop.f32.mrf.mxu0
        %v4637 = vadd.f32 0.0, %v4636
        %v4638 = vpop.f32.mrf.mxu0
        %4639 = vmatprep.mubr.f32.mxu0 0.0
        %4640 = vmatmul.mubr.f32.gmra.mxu0 %v4411
        %v4641 = vpop.f32.mrf.mxu0
        %v4642 = vadd.f32 0.0, %v4641
        %v4643 = vpop.f32.mrf.mxu0
        %4644 = vmatprep.mubr.f32.mxu0 0.0
        %4645 = vmatmul.mubr.f32.gmra.mxu0 %v4414
        %v4646 = vpop.f32.mrf.mxu0
        %v4647 = vadd.f32 0.0, %v4646
        %v4648 = vpop.f32.mrf.mxu0
        %4649 = vmatprep.mubr.f32.mxu0 0.0
        %4650 = vmatmul.mubr.f32.gmra.mxu0 %v4417
        %v4651 = vpop.f32.mrf.mxu0
        %v4652 = vadd.f32 0.0, %v4651
        %v4653 = vpop.f32.mrf.mxu0
        %4654 = vmatprep.mubr.f32.mxu0 0.0
        %4655 = vmatmul.mubr.f32.gmra.mxu0 %v4420
        %v4656 = vpop.f32.mrf.mxu0
        %v4657 = vadd.f32 0.0, %v4656
        %v4658 = vpop.f32.mrf.mxu0
        %4659 = vmatprep.mubr.f32.mxu0 0.0
        %4660 = vmatmul.mubr.f32.gmra.mxu0 %v4423
        %v4661 = vpop.f32.mrf.mxu0
        %v4662 = vadd.f32 0.0, %v4661
        %v4663 = vpop.f32.mrf.mxu0
        %4664 = vmatprep.mubr.f32.mxu0 0.0
        %4665 = vmatmul.mubr.f32.gmra.mxu0 %v4426
        %v4666 = vpop.f32.mrf.mxu0
        %v4667 = vadd.f32 0.0, %v4666
        %v4668 = vpop.f32.mrf.mxu0
        %4669 = vmatprep.mubr.f32.mxu0 0.0
        %4670 = vmatmul.mubr.f32.gmra.mxu0 %v4429
        %v4671 = vpop.f32.mrf.mxu0
        %v4672 = vadd.f32 0.0, %v4671
        %v4673 = vpop.f32.mrf.mxu0
        %4674 = vmatprep.mubr.f32.mxu0 0.0
        %4675 = vmatmul.mubr.f32.gmra.mxu0 %v4432
        %v4676 = vpop.f32.mrf.mxu0
        %v4677 = vadd.f32 0.0, %v4676
        %v4678 = vpop.f32.mrf.mxu0
        %4679 = vmatprep.mubr.f32.mxu0 0.0
        %4680 = vmatmul.mubr.f32.gmra.mxu0 %v4435
        %v4681 = vpop.f32.mrf.mxu0
        %v4682 = vadd.f32 0.0, %v4681
        %v4683 = vpop.f32.mrf.mxu0
        %4684 = vdwg.mxu0
        %v4685 = vadd.f32 %v4291, %v4507
        %v4686 = vadd.f32 %v4292, %v4512
        %v4687 = vadd.f32 %v4293, %v4517
        %v4688 = vadd.f32 %v4294, %v4522
        %v4689 = vadd.f32 %v4295, %v4527
        %v4690 = vadd.f32 %v4296, %v4532
        %v4691 = vadd.f32 %v4297, %v4537
        %v4692 = vadd.f32 %v4298, %v4542
        %v4693 = vadd.f32 %v4299, %v4547
        %v4694 = vadd.f32 %v4300, %v4552
        %v4695 = vadd.f32 %v4301, %v4557
        %v4696 = vadd.f32 %v4302, %v4562
        %v4697 = vadd.f32 %v4303, %v4567
        %v4698 = vadd.f32 %v4304, %v4572
        %v4699 = vadd.f32 %v4305, %v4577
        %v4700 = vadd.f32 %v4306, %v4582
        %v4701 = vadd.f32 %v4307, %v4587
        %v4702 = vadd.f32 %v4308, %v4592
        %v4703 = vadd.f32 %v4309, %v4597
        %v4704 = vadd.f32 %v4310, %v4602
        %v4705 = vadd.f32 %v4311, %v4607
        %v4706 = vadd.f32 %v4312, %v4612
        %v4707 = vadd.f32 %v4313, %v4617
        %v4708 = vadd.f32 %v4314, %v4622
        %v4709 = vadd.f32 %v4315, %v4627
        %v4710 = vadd.f32 %v4316, %v4632
        %v4711 = vadd.f32 %v4317, %v4637
        %v4712 = vadd.f32 %v4318, %v4642
        %v4713 = vadd.f32 %v4319, %v4647
        %v4714 = vadd.f32 %v4320, %v4652
        %v4715 = vadd.f32 %v4321, %v4657
        %v4716 = vadd.f32 %v4322, %v4662
        %v4717 = vadd.f32 %v4323, %v4667
        %v4718 = vadd.f32 %v4324, %v4672
        %v4719 = vadd.f32 %v4325, %v4677
        %v4720 = vadd.f32 %v4326, %v4682
        %4721 = vst [vmem:[#allocation2] sm:$0xff] %v4685
        %4722 = vst [vmem:[#allocation2 + $0x8] sm:$0xff] %v4686
        %4723 = vst [vmem:[#allocation2 + $0x10] sm:$0xff] %v4687
        %4724 = vst [vmem:[#allocation2 + $0x18] sm:$0xff] %v4688
        %4725 = vst [vmem:[#allocation2 + $0x20] sm:$0xff] %v4689
        %4726 = vst [vmem:[#allocation2 + $0x28] sm:$0xff] %v4690
        %4727 = vst [vmem:[#allocation2 + $0x30] sm:$0xff] %v4691
        %4728 = vst [vmem:[#allocation2 + $0x38] sm:$0xff] %v4692
        %4729 = vst [vmem:[#allocation2 + $0x40] sm:$0xff] %v4693
        %4730 = vst [vmem:[#allocation2 + $0x48] sm:$0xff] %v4694
        %4731 = vst [vmem:[#allocation2 + $0x50] sm:$0xff] %v4695
        %4732 = vst [vmem:[#allocation2 + $0x58] sm:$0xff] %v4696
        %4733 = vst [vmem:[#allocation2 + $0x60] sm:$0xff] %v4697
        %4734 = vst [vmem:[#allocation2 + $0x68] sm:$0xff] %v4698
        %4735 = vst [vmem:[#allocation2 + $0x70] sm:$0xff] %v4699
        %4736 = vst [vmem:[#allocation2 + $0x78] sm:$0xff] %v4700
        %4737 = vst [vmem:[#allocation2 + $0x80] sm:$0xff] %v4701
        %4738 = vst [vmem:[#allocation2 + $0x88] sm:$0xff] %v4702
        %4739 = vst [vmem:[#allocation2 + $0x90] sm:$0xff] %v4703
        %4740 = vst [vmem:[#allocation2 + $0x98] sm:$0xff] %v4704
        %4741 = vst [vmem:[#allocation2 + $0xa0] sm:$0xff] %v4705
        %4742 = vst [vmem:[#allocation2 + $0xa8] sm:$0xff] %v4706
        %4743 = vst [vmem:[#allocation2 + $0xb0] sm:$0xff] %v4707
        %4744 = vst [vmem:[#allocation2 + $0xb8] sm:$0xff] %v4708
        %4745 = vst [vmem:[#allocation2 + $0xc0] sm:$0xff] %v4709
        %4746 = vst [vmem:[#allocation2 + $0xc8] sm:$0xff] %v4710
        %4747 = vst [vmem:[#allocation2 + $0xd0] sm:$0xff] %v4711
        %4748 = vst [vmem:[#allocation2 + $0xd8] sm:$0xff] %v4712
        %4749 = vst [vmem:[#allocation2 + $0xe0] sm:$0xff] %v4713
        %4750 = vst [vmem:[#allocation2 + $0xe8] sm:$0xff] %v4714
        %4751 = vst [vmem:[#allocation2 + $0xf0] sm:$0xff] %v4715
        %4752 = vst [vmem:[#allocation2 + $0xf8] sm:$0xff] %v4716
        %4753 = vst [vmem:[#allocation2 + $0x100] sm:$0xff] %v4717
        %4754 = vst [vmem:[#allocation2 + $0x108] sm:$0xff] %v4718
        %4755 = vst [vmem:[#allocation2 + $0x110] sm:$0xff] %v4719
        %4756 = vst [vmem:[#allocation2 + $0x118] sm:$0xff] %v4720
        %v4757 = vld [vmem:[#allocation2] sm:$0xff]
        %v4758 = vld [vmem:[#allocation2 + $0x8] sm:$0xff]
        %v4759 = vld [vmem:[#allocation2 + $0x10] sm:$0xff]
        %v4760 = vld [vmem:[#allocation2 + $0x18] sm:$0xff]
        %v4761 = vld [vmem:[#allocation2 + $0x20] sm:$0xff]
        %v4762 = vld [vmem:[#allocation2 + $0x28] sm:$0xff]
        %v4763 = vld [vmem:[#allocation2 + $0x30] sm:$0xff]
        %v4764 = vld [vmem:[#allocation2 + $0x38] sm:$0xff]
        %v4765 = vld [vmem:[#allocation2 + $0x40] sm:$0xff]
        %v4766 = vld [vmem:[#allocation2 + $0x48] sm:$0xff]
        %v4767 = vld [vmem:[#allocation2 + $0x50] sm:$0xff]
        %v4768 = vld [vmem:[#allocation2 + $0x58] sm:$0xff]
        %v4769 = vld [vmem:[#allocation2 + $0x60] sm:$0xff]
        %v4770 = vld [vmem:[#allocation2 + $0x68] sm:$0xff]
        %v4771 = vld [vmem:[#allocation2 + $0x70] sm:$0xff]
        %v4772 = vld [vmem:[#allocation2 + $0x78] sm:$0xff]
        %v4773 = vld [vmem:[#allocation2 + $0x80] sm:$0xff]
        %v4774 = vld [vmem:[#allocation2 + $0x88] sm:$0xff]
        %v4775 = vld [vmem:[#allocation2 + $0x90] sm:$0xff]
        %v4776 = vld [vmem:[#allocation2 + $0x98] sm:$0xff]
        %v4777 = vld [vmem:[#allocation2 + $0xa0] sm:$0xff]
        %v4778 = vld [vmem:[#allocation2 + $0xa8] sm:$0xff]
        %v4779 = vld [vmem:[#allocation2 + $0xb0] sm:$0xff]
        %v4780 = vld [vmem:[#allocation2 + $0xb8] sm:$0xff]
        %v4781 = vld [vmem:[#allocation2 + $0xc0] sm:$0xff]
        %v4782 = vld [vmem:[#allocation2 + $0xc8] sm:$0xff]
        %v4783 = vld [vmem:[#allocation2 + $0xd0] sm:$0xff]
        %v4784 = vld [vmem:[#allocation2 + $0xd8] sm:$0xff]
        %v4785 = vld [vmem:[#allocation2 + $0xe0] sm:$0xff]
        %v4786 = vld [vmem:[#allocation2 + $0xe8] sm:$0xff]
        %v4787 = vld [vmem:[#allocation2 + $0xf0] sm:$0xff]
        %v4788 = vld [vmem:[#allocation2 + $0xf8] sm:$0xff]
        %v4789 = vld [vmem:[#allocation2 + $0x100] sm:$0xff]
        %v4790 = vld [vmem:[#allocation2 + $0x108] sm:$0xff]
        %v4791 = vld [vmem:[#allocation2 + $0x110] sm:$0xff]
        %v4792 = vld [vmem:[#allocation2 + $0x118] sm:$0xff]
        %v4793 = vld [vmem:[%s2] sm:$0x1]
        %v4795 = vlaneseq
        %v4796 = vshrl.u32 %v4795, 7
        %v4797 = vsub.s32 0, %v4796
        %v4798 = vrot.slane %v4793, %v4797
        %v4800 = vadd.f32 %v4757, %v4798
        %v4801 = vadd.f32 %v4758, %v4798
        %v4802 = vadd.f32 %v4759, %v4798
        %v4803 = vadd.f32 %v4760, %v4798
        %v4804 = vadd.f32 %v4761, %v4798
        %v4805 = vadd.f32 %v4762, %v4798
        %v4806 = vadd.f32 %v4763, %v4798
        %v4807 = vadd.f32 %v4764, %v4798
        %v4808 = vadd.f32 %v4765, %v4798
        %v4809 = vadd.f32 %v4766, %v4798
        %v4810 = vadd.f32 %v4767, %v4798
        %v4811 = vadd.f32 %v4768, %v4798
        %v4812 = vadd.f32 %v4769, %v4798
        %v4813 = vadd.f32 %v4770, %v4798
        %v4814 = vadd.f32 %v4771, %v4798
        %v4815 = vadd.f32 %v4772, %v4798
        %v4816 = vadd.f32 %v4773, %v4798
        %v4817 = vadd.f32 %v4774, %v4798
        %v4818 = vadd.f32 %v4775, %v4798
        %v4819 = vadd.f32 %v4776, %v4798
        %v4820 = vadd.f32 %v4777, %v4798
        %v4821 = vadd.f32 %v4778, %v4798
        %v4822 = vadd.f32 %v4779, %v4798
        %v4823 = vadd.f32 %v4780, %v4798
        %v4824 = vadd.f32 %v4781, %v4798
        %v4825 = vadd.f32 %v4782, %v4798
        %v4826 = vadd.f32 %v4783, %v4798
        %v4827 = vadd.f32 %v4784, %v4798
        %v4828 = vadd.f32 %v4785, %v4798
        %v4829 = vadd.f32 %v4786, %v4798
        %v4830 = vadd.f32 %v4787, %v4798
        %v4831 = vadd.f32 %v4788, %v4798
        %v4832 = vadd.f32 %v4789, %v4798
        %v4833 = vadd.f32 %v4790, %v4798
        %v4834 = vadd.f32 %v4791, %v4798
        %v4835 = vadd.f32 %v4792, %v4798
        %v4836 = vmax.f32 %v4800, 0.0
        %v4837 = vmax.f32 %v4801, 0.0
        %v4838 = vmax.f32 %v4802, 0.0
        %v4839 = vmax.f32 %v4803, 0.0
        %v4840 = vmax.f32 %v4804, 0.0
        %v4841 = vmax.f32 %v4805, 0.0
        %v4842 = vmax.f32 %v4806, 0.0
        %v4843 = vmax.f32 %v4807, 0.0
        %v4844 = vmax.f32 %v4808, 0.0
        %v4845 = vmax.f32 %v4809, 0.0
        %v4846 = vmax.f32 %v4810, 0.0
        %v4847 = vmax.f32 %v4811, 0.0
        %v4848 = vmax.f32 %v4812, 0.0
        %v4849 = vmax.f32 %v4813, 0.0
        %v4850 = vmax.f32 %v4814, 0.0
        %v4851 = vmax.f32 %v4815, 0.0
        %v4852 = vmax.f32 %v4816, 0.0
        %v4853 = vmax.f32 %v4817, 0.0
        %v4854 = vmax.f32 %v4818, 0.0
        %v4855 = vmax.f32 %v4819, 0.0
        %v4856 = vmax.f32 %v4820, 0.0
        %v4857 = vmax.f32 %v4821, 0.0
        %v4858 = vmax.f32 %v4822, 0.0
        %v4859 = vmax.f32 %v4823, 0.0
        %v4860 = vmax.f32 %v4824, 0.0
        %v4861 = vmax.f32 %v4825, 0.0
        %v4862 = vmax.f32 %v4826, 0.0
        %v4863 = vmax.f32 %v4827, 0.0
        %v4864 = vmax.f32 %v4828, 0.0
        %v4865 = vmax.f32 %v4829, 0.0
        %v4866 = vmax.f32 %v4830, 0.0
        %v4867 = vmax.f32 %v4831, 0.0
        %v4868 = vmax.f32 %v4832, 0.0
        %v4869 = vmax.f32 %v4833, 0.0
        %v4870 = vmax.f32 %v4834, 0.0
        %v4871 = vmax.f32 %v4835, 0.0
        %4872 = vst [vmem:[%s177] sm:$0xff] %v4836
        %4873 = vst [vmem:[%s177 + $0x8] sm:$0xff] %v4837
        %4874 = vst [vmem:[%s177 + $0x10] sm:$0xff] %v4838
        %4875 = vst [vmem:[%s177 + $0x18] sm:$0xff] %v4839
        %4876 = vst [vmem:[%s177 + $0x20] sm:$0xff] %v4840
        %4877 = vst [vmem:[%s177 + $0x28] sm:$0xff] %v4841
        %4878 = vst [vmem:[%s177 + $0x30] sm:$0xff] %v4842
        %4879 = vst [vmem:[%s177 + $0x38] sm:$0xff] %v4843
        %4880 = vst [vmem:[%s177 + $0x40] sm:$0xff] %v4844
        %4881 = vst [vmem:[%s177 + $0x48] sm:$0xff] %v4845
        %4882 = vst [vmem:[%s177 + $0x50] sm:$0xff] %v4846
        %4883 = vst [vmem:[%s177 + $0x58] sm:$0xff] %v4847
        %4884 = vst [vmem:[%s177 + $0x60] sm:$0xff] %v4848
        %4885 = vst [vmem:[%s177 + $0x68] sm:$0xff] %v4849
        %4886 = vst [vmem:[%s177 + $0x70] sm:$0xff] %v4850
        %4887 = vst [vmem:[%s177 + $0x78] sm:$0xff] %v4851
        %4888 = vst [vmem:[%s177 + $0x80] sm:$0xff] %v4852
        %4889 = vst [vmem:[%s177 + $0x88] sm:$0xff] %v4853
        %4890 = vst [vmem:[%s177 + $0x90] sm:$0xff] %v4854
        %4891 = vst [vmem:[%s177 + $0x98] sm:$0xff] %v4855
        %4892 = vst [vmem:[%s177 + $0xa0] sm:$0xff] %v4856
        %4893 = vst [vmem:[%s177 + $0xa8] sm:$0xff] %v4857
        %4894 = vst [vmem:[%s177 + $0xb0] sm:$0xff] %v4858
        %4895 = vst [vmem:[%s177 + $0xb8] sm:$0xff] %v4859
        %4896 = vst [vmem:[%s177 + $0xc0] sm:$0xff] %v4860
        %4897 = vst [vmem:[%s177 + $0xc8] sm:$0xff] %v4861
        %4898 = vst [vmem:[%s177 + $0xd0] sm:$0xff] %v4862
        %4899 = vst [vmem:[%s177 + $0xd8] sm:$0xff] %v4863
        %4900 = vst [vmem:[%s177 + $0xe0] sm:$0xff] %v4864
        %4901 = vst [vmem:[%s177 + $0xe8] sm:$0xff] %v4865
        %4902 = vst [vmem:[%s177 + $0xf0] sm:$0xff] %v4866
        %4903 = vst [vmem:[%s177 + $0xf8] sm:$0xff] %v4867
        %4904 = vst [vmem:[%s177 + $0x100] sm:$0xff] %v4868
        %4905 = vst [vmem:[%s177 + $0x108] sm:$0xff] %v4869
        %4906 = vst [vmem:[%s177 + $0x110] sm:$0xff] %v4870
        %4907 = vst [vmem:[%s177 + $0x118] sm:$0xff] %v4871
        %s4908 = sand.u32 %s107, 1
        %s4909 = scalar_lea.sflag [#allocation4], %s4908
        %s4910 = sand.u32 %s107, 1
        %s4911 = smul.addr %s4910, 288
        %s4912 = scalar_lea.vmem [#allocation3], %s4911
        // Predicated region
        $region33: #{tpu_custom_call.1} parent=31 // pred_check
          %p4913 = pneg %p117
        $region34: #{tpu_custom_call.1} parent=31 // pred_check_branch
          %4915 = sbr.rel (%p4913) target = $region36
        $region35: #{tpu_custom_call.1} parent=31 // pred_region
          %s4916 = smul.u32 36, %s22
          %s4918 = ssub.s32 4608, 4608
          %4919 = vsyncadd %s4909, %s4918
          %s4920 = smul.addr %s21, 36
          %s4921 = sadd.s32 %s4916, %s4920
          %s4922 = smul.addr %s4921, 128
          %s4923 = scalar_lea.hbm %s3, %s4922
          %s4924 = sshll.u32 %s4912, 4
          %s4925 = int_to_ptr.vmem [resolvable:$true] %s4924
          %4930 = dma.vmem_to_hbm [thread:$0]  %s4925, 4608, %s4923, %s4909, 128, 128, 8
        $region36: #{tpu_custom_call.1} parent=31 // pred_fallthru
          _
      $region32: #{tpu_custom_call.1} parent=5 // pred_fallthru
        _
      %p4931 = scmp.le.s32.totalorder 2, %s12
      // Predicated region
      $region37: #{tpu_custom_call.1} parent=5 // pred_check
        %p4932 = pneg %p4931
      $region38: #{tpu_custom_call.1} parent=5 // pred_check_branch
        %4934 = sbr.rel (%p4932) target = $region40
      $region39: #{tpu_custom_call.1} parent=5 // pred_region
        %s4935 = ssub.s32 %s12, 2
        // Predicated region
        $region41: #{tpu_custom_call.1} parent=39 // pred_check
          %p4936 = pneg %p123
        $region42: #{tpu_custom_call.1} parent=39 // pred_check_branch
          %4938 = sbr.rel (%p4936) target = $region44
        $region43: #{tpu_custom_call.1} parent=39 // pred_region
          %s4939 = sand.u32 %s108, 1
          %s4940 = scalar_lea.sflag [#allocation4], %s4939
          %s4941 = sand.u32 %s108, 1
          %s4942 = smul.addr %s4941, 288
          %s4943 = scalar_lea.vmem [#allocation3], %s4942
          %4944 = dma.done %s4940, 4608
        $region44: #{tpu_custom_call.1} parent=39 // pred_fallthru
          _
      $region40: #{tpu_custom_call.1} parent=5 // pred_fallthru
        _
    $region6: #{tpu_custom_call.1} parent=1 // loop_footer
      %s16 = sadd.s32 1, %s12
    $region7: #{tpu_custom_call.1} parent=1 // loop_footer_branch
      %11 = sbr.rel target = $region3
    $region8: #{tpu_custom_call.1} parent=1 // loop_exit
      _
    %4945 = vsyncpa [#allocation4], 1
    %s4946 = scalar_lea.sflag [#allocation4], 1
    %4947 = vsyncpa %s4946, 1

</llo_original>
